<compile_context>
chip_gen: v5e
topology: v5e:2x2
jax: 0.10.0
libtpu: 0.0.40
codegen_flags: <defaults>
</compile_context>

<pallas_src>
import functools

import jax
import jax.numpy as jnp
from jax import lax
from jax.experimental import pallas as pl
from jax.experimental.pallas import tpu as pltpu


def _inv_cov_kernel(theta_ref, pos_ref, p_ref, out_ref, *, n, bb, d, gb, il):
    """One grid step: build + invert `gb` groups of `bb` lane-packed covariance matrices."""
    bbn = bb * n
    f32 = jnp.float32

    sigma_sq = theta_ref[0]
    phi = theta_ref[1]
    nugget = theta_ref[2] * sigma_sq                               # tau * sigma_sq

    # small per-step constants (amortised over the gb resident groups)
    sub_i = lax.broadcasted_iota(jnp.int32, (n, 1), 0)             # row index i      (N,1)
    lane_mod = lax.broadcasted_iota(jnp.int32, (1, bbn), 1) % n    # j within block   (1,BBN)
    eye_b = sub_i == lane_mod                                      # packed identity  (N,BBN)
    eye_f = eye_b.astype(f32)
    hi = lax.Precision.HIGHEST

    def bcast_col(x, k):
        """Exact within-block lane broadcast of column k: y[i, b*N+j] = x[i, b*N+k].

        Runs entirely on the XLU (static lane rolls) + VPU adds — no MXU pass, exact f32.
        """
        y = jnp.where(lane_mod == k, x, 0.0)
        if k:
            y = pltpu.roll(y, shift=bbn - k, axis=1)   # move block-column k to block start
        covered = 1
        while covered < n:
            s = min(covered, n - covered)
            shifted = pltpu.roll(y, shift=s, axis=1)
            if s < covered:                            # partial step (non power-of-two N)
                shifted = jnp.where(lane_mod >= covered, shifted, 0.0)
            y = y + shifted
            covered += s
        return y

    def build_cov(pos):
        """pos (D, BB*N) -> packed covariance (N, BB*N)."""
        p_blk = p_ref[...]                                           # (BBN,BBN) block-ones
        sq = jnp.zeros((n, bbn), f32)
        for c in range(d):                                           # D is tiny & static
            pj = pos[c:c + 1, :]                                     # coord of point j (1,BBN)
            # coord of point i lane-broadcast across its block: one small MXU matmul.
            # P is exactly representable in bf16, so the HIGHEST product is exact f32.
            pi = jnp.dot(jnp.where(eye_b, pj, 0.0), p_blk,
                         preferred_element_type=f32, precision=hi)   # (N,BBN)
            diff = pi - pj
            sq = sq + diff * diff
        dists = jnp.sqrt(sq)
        return sigma_sq * jnp.exp(-phi * dists) + nugget * eye_f

    def invert(mats):
        """Gauss-Jordan on `len(mats)` independent packed slabs, fully unrolled.

        The slabs are independent, so the unrolled per-k bodies interleave and the
        exposed EUP/XLU latency of one chain hides under the other.
        TODO(synk): no pivoting; valid because cov is SPD with a strictly positive nugget.
        """
        a_l = list(mats)
        v_l = [eye_f for _ in a_l]
        for k in range(n):
            rowmask = sub_i == k
            facs, a_ks, v_ks = [], [], []
            for a, v in zip(a_l, v_l):                 # phase 1: column bcast + pivot recip
                fac = bcast_col(a, k)                  # fac[i,l] = A[i, block(l)*N + k]
                piv = fac[k:k + 1, :]                  # A[k,k] per block         (1,BBN)
                r = pl.reciprocal(piv, approx=True)    # EUP slot
                inv_p = r * (2.0 - piv * r)            # one Newton step -> ~exact f32
                facs.append(fac)
                a_ks.append(a[k:k + 1, :] * inv_p)
                v_ks.append(v[k:k + 1, :] * inv_p)
            for t in range(len(a_l)):                  # phase 2: row updates
                a_l[t] = jnp.where(rowmask, a_ks[t], a_l[t] - facs[t] * a_ks[t])
                v_l[t] = jnp.where(rowmask, v_ks[t], v_l[t] - facs[t] * v_ks[t])
        return v_l

    # process the gb resident groups `il` at a time (interleaved elimination chains)
    for g0 in range(0, gb, il):
        idxs = list(range(g0, min(g0 + il, gb)))
        covs = [build_cov(pos_ref[gi]) for gi in idxs]
        invs = invert(covs)
        for gi, v in zip(idxs, invs):
            out_ref[gi] = v                            # (N, BB*N) lane-dense store


@functools.partial(jax.jit, static_argnames=("n", "d", "gb_target"))
def inverse_cov_from_positions(neighbor_positions, theta, *, n, d, gb_target=8):
    pos = jnp.asarray(neighbor_positions, jnp.float32).reshape(-1, n, d)
    b = pos.shape[0]

    bb = max(1, 128 // n)                  # matrices packed along lanes per group
    bbn = bb * n
    ng = pl.cdiv(b, bb)                    # number of lane-packed groups
    # groups per grid step: amortise per-step overhead but keep the grid >= 2 steps
    # so v7x's second TensorCore receives work (no-op on v5e/v6e, harmless).
    gb = max(1, min(gb_target, pl.cdiv(ng, 2)))
    g = pl.cdiv(ng, gb)
    bp = g * gb * bb                       # padded batch
    if bp != b:                            # zero-position padding still gives SPD cov
        pos = jnp.concatenate([pos, jnp.zeros((bp - b, n, d), jnp.float32)], axis=0)

    # (Bp,N,D) -> (G*GB, D, BB*N): packed[grp, c, bl*N + j] = pos[grp*BB + bl, j, c]
    pos_packed = (pos.reshape(g * gb, bb, n, d)
                     .transpose(0, 3, 1, 2)
                     .reshape(g * gb, d, bbn))

    # block-selection matrix (resident input): P[m,l] = 1 iff lanes m,l share a packed matrix
    blk = jnp.arange(bbn, dtype=jnp.int32) // n
    p_mat = (blk[:, None] == blk[None, :]).astype(jnp.float32)

    theta = jnp.asarray(theta, jnp.float32).reshape(3)

    kernel = functools.partial(_inv_cov_kernel, n=n, bb=bb, d=d, gb=gb, il=2)
    out_packed = pl.pallas_call(
        kernel,
        out_shape=jax.ShapeDtypeStruct((g * gb, n, bbn), jnp.float32),
        grid=(g,),
        in_specs=[
            pl.BlockSpec(memory_space=pltpu.MemorySpace.SMEM),       # theta scalars
            pl.BlockSpec((gb, d, bbn), lambda i: (i, 0, 0)),          # positions, GB groups/step
            pl.BlockSpec((bbn, bbn), lambda i: (0, 0)),               # P, resident across steps
        ],
        out_specs=pl.BlockSpec((gb, n, bbn), lambda i: (i, 0, 0)),
        compiler_params=pltpu.CompilerParams(
            dimension_semantics=("parallel",)),
    )(theta, pos_packed, p_mat)

    # (G*GB, N, BB*N) -> (Bp, N, N) -> drop padding.
    # TODO(synk): if downstream consumers accept the packed layout, this un-pack (an extra
    # HBM round-trip of the output at large batch) can be skipped.
    out = (out_packed.reshape(g * gb, n, bb, n)
                     .transpose(0, 2, 1, 3)
                     .reshape(bp, n, n))
    return out[:b]


class InverseCovMatrixFromPositions:
    """JAX/Pallas port of nngls.model.InverseCovMatrixFromPositions (forward pass)."""

    def __init__(self, neighbor_size, coord_dimension, theta):
        self.neighbor_size = int(neighbor_size)
        self.coord_dimension = int(coord_dimension)
        # theta = (sigma_sq, phi, tau); kept as an array (SMEM kernel input) so changing
        # it does not retrace/recompile the Pallas kernel.
        self.theta = jnp.asarray(theta, jnp.float32)

    def __call__(self, neighbor_positions, edge_list=None):
        # TODO(synk): forward only — no custom_vjp is provided for gradients.
        return inverse_cov_from_positions(
            neighbor_positions, self.theta,
            n=self.neighbor_size, d=self.coord_dimension)


if __name__ == "__main__":
    key = jax.random.PRNGKey(0)

    batch = 32                      # -> 4 packed groups, GB=2 per step, grid of 2 steps
    neighbor_size = 16
    coord_dim = 2
    theta = (1.5, 0.8, 0.1)         # (sigma_sq, phi, tau)

    # PyTorch forward reshapes to (-1, N, D); feed the flattened layout it expects.
    neighbor_positions = jax.random.normal(
        key, (batch, neighbor_size * coord_dim), dtype=jnp.float32)
    edge_list = jnp.zeros((batch, neighbor_size), jnp.int32)  # unused, API parity only

    module = InverseCovMatrixFromPositions(neighbor_size, coord_dim, theta)
    out = jax.block_until_ready(module(neighbor_positions, edge_list))

    # Pure-JAX reference of the exact PyTorch semantics.
    p = neighbor_positions.reshape(-1, neighbor_size, coord_dim)
    diff = p[:, None, :, :] - p[:, :, None, :]
    dists = jnp.sqrt(jnp.sum(diff ** 2, axis=-1))
    sigma_sq, phi, tau = theta
    cov = sigma_sq * jnp.exp(-phi * dists) + (tau * sigma_sq) * jnp.eye(neighbor_size)
    ref = jnp.linalg.inv(cov)

    assert out.shape == (batch, neighbor_size, neighbor_size)
    assert out.dtype == jnp.float32
    assert jnp.allclose(out, ref, rtol=1e-3, atol=1e-3)
    print("KERNEL_OK")
</pallas_src>

<mosaic_0001>
module attributes {stable_mosaic.version = 11 : i64} {
  func.func @_inv_cov_kernel(%arg0: i32, %arg1: memref<3xf32, #tpu.memory_space<smem>>, %arg2: memref<2x2x128xf32, #tpu.memory_space<vmem>>, %arg3: memref<128x128xf32, #tpu.memory_space<vmem>>, %arg4: memref<2x16x128xf32, #tpu.memory_space<vmem>>) attributes {dimension_semantics = [#tpu.dimension_semantics<parallel>], iteration_bounds = array<i64: 2>, scalar_prefetch = 0 : i64, scratch_operands = 0 : i64, tpu.core_type = #tpu.core_type<tc>, window_params = [{transform_indices = @transform_0, window_bounds = array<i64: 3>}, {transform_indices = @transform_1, window_bounds = array<i64: 2, 2, 128>}, {pipeline_mode = #tpu.pipeline_mode<synchronous>, transform_indices = @transform_2, window_bounds = array<i64: 128, 128>}, {transform_indices = @transform_3, window_bounds = array<i64: 2, 16, 128>}]} {
    %c0 = arith.constant 0 : index
    %0 = memref.load %arg1[%c0] : memref<3xf32, #tpu.memory_space<smem>>
    %c1 = arith.constant 1 : index
    %1 = memref.load %arg1[%c1] : memref<3xf32, #tpu.memory_space<smem>>
    %c2 = arith.constant 2 : index
    %2 = memref.load %arg1[%c2] : memref<3xf32, #tpu.memory_space<smem>>
    %3 = arith.mulf %2, %0 : f32
    %4 = tpu.iota {dimensions = array<i32: 0>} : vector<16x1xi32>
    %5 = tpu.iota {dimensions = array<i32: 1>} : vector<1x128xi32>
    %c16_i32 = arith.constant 16 : i32
    %c0_i32 = arith.constant 0 : i32
    %6 = arith.cmpi eq, %c16_i32, %c0_i32 : i32
    %c1_i32 = arith.constant 1 : i32
    %7 = arith.select %6, %c1_i32, %c16_i32 : i32
    %8 = vector.broadcast %7 : i32 to vector<1x128xi32>
    %9 = arith.remsi %5, %8 : vector<1x128xi32>
    %c0_i32_0 = arith.constant 0 : i32
    %10 = vector.broadcast %c0_i32_0 : i32 to vector<1x128xi32>
    %11 = arith.cmpi ne, %9, %10 : vector<1x128xi32>
    %c0_i32_1 = arith.constant 0 : i32
    %12 = vector.broadcast %c0_i32_1 : i32 to vector<1x128xi32>
    %13 = arith.cmpi slt, %9, %12 : vector<1x128xi32>
    %c0_i32_2 = arith.constant 0 : i32
    %14 = arith.cmpi slt, %7, %c0_i32_2 : i32
    %15 = vector.broadcast %14 : i1 to vector<1x128xi1>
    %16 = vector.broadcast %15 : vector<1x128xi1> to vector<1x128xi1>
    %17 = arith.xori %13, %16 : vector<1x128xi1>
    %18 = arith.andi %17, %11 : vector<1x128xi1>
    %19 = vector.broadcast %7 : i32 to vector<1x128xi32>
    %20 = arith.addi %9, %19 : vector<1x128xi32>
    %21 = arith.select %18, %20, %9 : vector<1x128xi1>, vector<1x128xi32>
    %22 = vector.broadcast %4 : vector<16x1xi32> to vector<16x128xi32>
    %23 = vector.broadcast %21 : vector<1x128xi32> to vector<16x128xi32>
    %24 = arith.cmpi eq, %22, %23 : vector<16x128xi32>
    %25 = arith.extui %24 : vector<16x128xi1> to vector<16x128xi32>
    %26 = arith.sitofp %25 : vector<16x128xi32> to vector<16x128xf32>
    %c0_3 = arith.constant 0 : index
    %c0_4 = arith.constant 0 : index
    %c0_5 = arith.constant 0 : index
    %27 = vector.load %arg2[%c0_3, %c0_4, %c0_5] : memref<2x2x128xf32, #tpu.memory_space<vmem>>, vector<1x2x128xf32>
    %28 = vector.shape_cast %27 : vector<1x2x128xf32> to vector<2x128xf32>
    %c0_6 = arith.constant 0 : index
    %c0_7 = arith.constant 0 : index
    %29 = vector.load %arg3[%c0_6, %c0_7] : memref<128x128xf32, #tpu.memory_space<vmem>>, vector<128x128xf32>
    %cst = arith.constant 0.000000e+00 : f32
    %30 = vector.broadcast %cst : f32 to vector<16x128xf32>
    %31 = vector.extract_strided_slice %28 {offsets = [0, 0], sizes = [1, 128], strides = [1, 1]} : vector<2x128xf32> to vector<1x128xf32>
    %cst_8 = arith.constant 0.000000e+00 : f32
    %32 = vector.shape_cast %31 : vector<1x128xf32> to vector<1x128xf32>
    %33 = vector.broadcast %32 : vector<1x128xf32> to vector<16x128xf32>
    %34 = vector.broadcast %cst_8 : f32 to vector<16x128xf32>
    %35 = arith.select %24, %33, %34 : vector<16x128xi1>, vector<16x128xf32>
    %cst_9 = arith.constant dense<0.000000e+00> : vector<16x128xf32>
    %36 = tpu.matmul %35, %29, %cst_9 {dimension_numbers = #tpu.dot_dimension_numbers<[1], [0], [0], [1], [0, 0, 1, 1], [], []>, precision = #tpu.contract_precision<fp32>} : vector<16x128xf32>, vector<128x128xf32>, vector<16x128xf32> -> vector<16x128xf32>
    %37 = vector.broadcast %31 : vector<1x128xf32> to vector<16x128xf32>
    %38 = arith.subf %36, %37 : vector<16x128xf32>
    %39 = arith.mulf %38, %38 : vector<16x128xf32>
    %40 = arith.addf %30, %39 : vector<16x128xf32>
    %41 = vector.extract_strided_slice %28 {offsets = [1, 0], sizes = [1, 128], strides = [1, 1]} : vector<2x128xf32> to vector<1x128xf32>
    %cst_10 = arith.constant 0.000000e+00 : f32
    %42 = vector.shape_cast %41 : vector<1x128xf32> to vector<1x128xf32>
    %43 = vector.broadcast %42 : vector<1x128xf32> to vector<16x128xf32>
    %44 = vector.broadcast %cst_10 : f32 to vector<16x128xf32>
    %45 = arith.select %24, %43, %44 : vector<16x128xi1>, vector<16x128xf32>
    %cst_11 = arith.constant dense<0.000000e+00> : vector<16x128xf32>
    %46 = tpu.matmul %45, %29, %cst_11 {dimension_numbers = #tpu.dot_dimension_numbers<[1], [0], [0], [1], [0, 0, 1, 1], [], []>, precision = #tpu.contract_precision<fp32>} : vector<16x128xf32>, vector<128x128xf32>, vector<16x128xf32> -> vector<16x128xf32>
    %47 = vector.broadcast %41 : vector<1x128xf32> to vector<16x128xf32>
    %48 = arith.subf %46, %47 : vector<16x128xf32>
    %49 = arith.mulf %48, %48 : vector<16x128xf32>
    %50 = arith.addf %40, %49 : vector<16x128xf32>
    %51 = math.sqrt %50 : vector<16x128xf32>
    %cst_12 = arith.constant 0.000000e+00 : f32
    %52 = arith.subf %cst_12, %1 : f32
    %53 = vector.broadcast %52 : f32 to vector<16x128xf32>
    %54 = arith.mulf %53, %51 : vector<16x128xf32>
    %55 = math.exp %54 : vector<16x128xf32>
    %56 = vector.broadcast %0 : f32 to vector<16x128xf32>
    %57 = arith.mulf %56, %55 : vector<16x128xf32>
    %58 = vector.broadcast %3 : f32 to vector<16x128xf32>
    %59 = arith.mulf %58, %26 : vector<16x128xf32>
    %60 = arith.addf %57, %59 : vector<16x128xf32>
    %c1_13 = arith.constant 1 : index
    %c0_14 = arith.constant 0 : index
    %c0_15 = arith.constant 0 : index
    %61 = vector.load %arg2[%c1_13, %c0_14, %c0_15] : memref<2x2x128xf32, #tpu.memory_space<vmem>>, vector<1x2x128xf32>
    %62 = vector.shape_cast %61 : vector<1x2x128xf32> to vector<2x128xf32>
    %c0_16 = arith.constant 0 : index
    %c0_17 = arith.constant 0 : index
    %63 = vector.load %arg3[%c0_16, %c0_17] : memref<128x128xf32, #tpu.memory_space<vmem>>, vector<128x128xf32>
    %cst_18 = arith.constant 0.000000e+00 : f32
    %64 = vector.broadcast %cst_18 : f32 to vector<16x128xf32>
    %65 = vector.extract_strided_slice %62 {offsets = [0, 0], sizes = [1, 128], strides = [1, 1]} : vector<2x128xf32> to vector<1x128xf32>
    %cst_19 = arith.constant 0.000000e+00 : f32
    %66 = vector.shape_cast %65 : vector<1x128xf32> to vector<1x128xf32>
    %67 = vector.broadcast %66 : vector<1x128xf32> to vector<16x128xf32>
    %68 = vector.broadcast %cst_19 : f32 to vector<16x128xf32>
    %69 = arith.select %24, %67, %68 : vector<16x128xi1>, vector<16x128xf32>
    %cst_20 = arith.constant dense<0.000000e+00> : vector<16x128xf32>
    %70 = tpu.matmul %69, %63, %cst_20 {dimension_numbers = #tpu.dot_dimension_numbers<[1], [0], [0], [1], [0, 0, 1, 1], [], []>, precision = #tpu.contract_precision<fp32>} : vector<16x128xf32>, vector<128x128xf32>, vector<16x128xf32> -> vector<16x128xf32>
    %71 = vector.broadcast %65 : vector<1x128xf32> to vector<16x128xf32>
    %72 = arith.subf %70, %71 : vector<16x128xf32>
    %73 = arith.mulf %72, %72 : vector<16x128xf32>
    %74 = arith.addf %64, %73 : vector<16x128xf32>
    %75 = vector.extract_strided_slice %62 {offsets = [1, 0], sizes = [1, 128], strides = [1, 1]} : vector<2x128xf32> to vector<1x128xf32>
    %cst_21 = arith.constant 0.000000e+00 : f32
    %76 = vector.shape_cast %75 : vector<1x128xf32> to vector<1x128xf32>
    %77 = vector.broadcast %76 : vector<1x128xf32> to vector<16x128xf32>
    %78 = vector.broadcast %cst_21 : f32 to vector<16x128xf32>
    %79 = arith.select %24, %77, %78 : vector<16x128xi1>, vector<16x128xf32>
    %cst_22 = arith.constant dense<0.000000e+00> : vector<16x128xf32>
    %80 = tpu.matmul %79, %63, %cst_22 {dimension_numbers = #tpu.dot_dimension_numbers<[1], [0], [0], [1], [0, 0, 1, 1], [], []>, precision = #tpu.contract_precision<fp32>} : vector<16x128xf32>, vector<128x128xf32>, vector<16x128xf32> -> vector<16x128xf32>
    %81 = vector.broadcast %75 : vector<1x128xf32> to vector<16x128xf32>
    %82 = arith.subf %80, %81 : vector<16x128xf32>
    %83 = arith.mulf %82, %82 : vector<16x128xf32>
    %84 = arith.addf %74, %83 : vector<16x128xf32>
    %85 = math.sqrt %84 : vector<16x128xf32>
    %cst_23 = arith.constant 0.000000e+00 : f32
    %86 = arith.subf %cst_23, %1 : f32
    %87 = vector.broadcast %86 : f32 to vector<16x128xf32>
    %88 = arith.mulf %87, %85 : vector<16x128xf32>
    %89 = math.exp %88 : vector<16x128xf32>
    %90 = vector.broadcast %0 : f32 to vector<16x128xf32>
    %91 = arith.mulf %90, %89 : vector<16x128xf32>
    %92 = vector.broadcast %3 : f32 to vector<16x128xf32>
    %93 = arith.mulf %92, %26 : vector<16x128xf32>
    %94 = arith.addf %91, %93 : vector<16x128xf32>
    %c0_i32_24 = arith.constant 0 : i32
    %95 = vector.broadcast %c0_i32_24 : i32 to vector<16x1xi32>
    %96 = arith.cmpi eq, %4, %95 : vector<16x1xi32>
    %c0_i32_25 = arith.constant 0 : i32
    %97 = vector.broadcast %c0_i32_25 : i32 to vector<1x128xi32>
    %98 = arith.cmpi eq, %21, %97 : vector<1x128xi32>
    %cst_26 = arith.constant 0.000000e+00 : f32
    %99 = vector.shape_cast %98 : vector<1x128xi1> to vector<1x128xi1>
    %100 = vector.broadcast %99 : vector<1x128xi1> to vector<16x128xi1>
    %101 = vector.broadcast %cst_26 : f32 to vector<16x128xf32>
    %102 = arith.select %100, %60, %101 : vector<16x128xi1>, vector<16x128xf32>
    %c1_i32_27 = arith.constant 1 : i32
    %103 = tpu.dynamic_rotate %102 by %c1_i32_27 dim 1 : vector<16x128xf32>, i32 -> vector<16x128xf32>
    %104 = arith.addf %102, %103 : vector<16x128xf32>
    %c2_i32 = arith.constant 2 : i32
    %105 = tpu.dynamic_rotate %104 by %c2_i32 dim 1 : vector<16x128xf32>, i32 -> vector<16x128xf32>
    %106 = arith.addf %104, %105 : vector<16x128xf32>
    %c4_i32 = arith.constant 4 : i32
    %107 = tpu.dynamic_rotate %106 by %c4_i32 dim 1 : vector<16x128xf32>, i32 -> vector<16x128xf32>
    %108 = arith.addf %106, %107 : vector<16x128xf32>
    %c8_i32 = arith.constant 8 : i32
    %109 = tpu.dynamic_rotate %108 by %c8_i32 dim 1 : vector<16x128xf32>, i32 -> vector<16x128xf32>
    %110 = arith.addf %108, %109 : vector<16x128xf32>
    %111 = vector.extract_strided_slice %110 {offsets = [0, 0], sizes = [1, 128], strides = [1, 1]} : vector<16x128xf32> to vector<1x128xf32>
    %112 = tpu.reciprocal %111 {approx = true} : vector<1x128xf32> -> vector<1x128xf32>
    %113 = arith.mulf %111, %112 : vector<1x128xf32>
    %cst_28 = arith.constant 2.000000e+00 : f32
    %114 = vector.broadcast %cst_28 : f32 to vector<1x128xf32>
    %115 = arith.subf %114, %113 : vector<1x128xf32>
    %116 = arith.mulf %112, %115 : vector<1x128xf32>
    %117 = vector.extract_strided_slice %60 {offsets = [0, 0], sizes = [1, 128], strides = [1, 1]} : vector<16x128xf32> to vector<1x128xf32>
    %118 = arith.mulf %117, %116 : vector<1x128xf32>
    %119 = vector.extract_strided_slice %26 {offsets = [0, 0], sizes = [1, 128], strides = [1, 1]} : vector<16x128xf32> to vector<1x128xf32>
    %120 = arith.mulf %119, %116 : vector<1x128xf32>
    %c0_i32_29 = arith.constant 0 : i32
    %121 = vector.broadcast %c0_i32_29 : i32 to vector<1x128xi32>
    %122 = arith.cmpi eq, %21, %121 : vector<1x128xi32>
    %cst_30 = arith.constant 0.000000e+00 : f32
    %123 = vector.shape_cast %122 : vector<1x128xi1> to vector<1x128xi1>
    %124 = vector.broadcast %123 : vector<1x128xi1> to vector<16x128xi1>
    %125 = vector.broadcast %cst_30 : f32 to vector<16x128xf32>
    %126 = arith.select %124, %94, %125 : vector<16x128xi1>, vector<16x128xf32>
    %c1_i32_31 = arith.constant 1 : i32
    %127 = tpu.dynamic_rotate %126 by %c1_i32_31 dim 1 : vector<16x128xf32>, i32 -> vector<16x128xf32>
    %128 = arith.addf %126, %127 : vector<16x128xf32>
    %c2_i32_32 = arith.constant 2 : i32
    %129 = tpu.dynamic_rotate %128 by %c2_i32_32 dim 1 : vector<16x128xf32>, i32 -> vector<16x128xf32>
    %130 = arith.addf %128, %129 : vector<16x128xf32>
    %c4_i32_33 = arith.constant 4 : i32
    %131 = tpu.dynamic_rotate %130 by %c4_i32_33 dim 1 : vector<16x128xf32>, i32 -> vector<16x128xf32>
    %132 = arith.addf %130, %131 : vector<16x128xf32>
    %c8_i32_34 = arith.constant 8 : i32
    %133 = tpu.dynamic_rotate %132 by %c8_i32_34 dim 1 : vector<16x128xf32>, i32 -> vector<16x128xf32>
    %134 = arith.addf %132, %133 : vector<16x128xf32>
    %135 = vector.extract_strided_slice %134 {offsets = [0, 0], sizes = [1, 128], strides = [1, 1]} : vector<16x128xf32> to vector<1x128xf32>
    %136 = tpu.reciprocal %135 {approx = true} : vector<1x128xf32> -> vector<1x128xf32>
    %137 = arith.mulf %135, %136 : vector<1x128xf32>
    %cst_35 = arith.constant 2.000000e+00 : f32
    %138 = vector.broadcast %cst_35 : f32 to vector<1x128xf32>
    %139 = arith.subf %138, %137 : vector<1x128xf32>
    %140 = arith.mulf %136, %139 : vector<1x128xf32>
    %141 = vector.extract_strided_slice %94 {offsets = [0, 0], sizes = [1, 128], strides = [1, 1]} : vector<16x128xf32> to vector<1x128xf32>
    %142 = arith.mulf %141, %140 : vector<1x128xf32>
    %143 = vector.extract_strided_slice %26 {offsets = [0, 0], sizes = [1, 128], strides = [1, 1]} : vector<16x128xf32> to vector<1x128xf32>
    %144 = arith.mulf %143, %140 : vector<1x128xf32>
    %145 = vector.broadcast %118 : vector<1x128xf32> to vector<16x128xf32>
    %146 = arith.mulf %110, %145 : vector<16x128xf32>
    %147 = arith.subf %60, %146 : vector<16x128xf32>
    %148 = vector.shape_cast %96 : vector<16x1xi1> to vector<16x1xi1>
    %149 = vector.broadcast %148 : vector<16x1xi1> to vector<16x128xi1>
    %150 = vector.shape_cast %118 : vector<1x128xf32> to vector<1x128xf32>
    %151 = vector.broadcast %150 : vector<1x128xf32> to vector<16x128xf32>
    %152 = arith.select %149, %151, %147 : vector<16x128xi1>, vector<16x128xf32>
    %153 = vector.broadcast %120 : vector<1x128xf32> to vector<16x128xf32>
    %154 = arith.mulf %110, %153 : vector<16x128xf32>
    %155 = arith.subf %26, %154 : vector<16x128xf32>
    %156 = vector.shape_cast %96 : vector<16x1xi1> to vector<16x1xi1>
    %157 = vector.broadcast %156 : vector<16x1xi1> to vector<16x128xi1>
    %158 = vector.shape_cast %120 : vector<1x128xf32> to vector<1x128xf32>
    %159 = vector.broadcast %158 : vector<1x128xf32> to vector<16x128xf32>
    %160 = arith.select %157, %159, %155 : vector<16x128xi1>, vector<16x128xf32>
    %161 = vector.broadcast %142 : vector<1x128xf32> to vector<16x128xf32>
    %162 = arith.mulf %134, %161 : vector<16x128xf32>
    %163 = arith.subf %94, %162 : vector<16x128xf32>
    %164 = vector.shape_cast %96 : vector<16x1xi1> to vector<16x1xi1>
    %165 = vector.broadcast %164 : vector<16x1xi1> to vector<16x128xi1>
    %166 = vector.shape_cast %142 : vector<1x128xf32> to vector<1x128xf32>
    %167 = vector.broadcast %166 : vector<1x128xf32> to vector<16x128xf32>
    %168 = arith.select %165, %167, %163 : vector<16x128xi1>, vector<16x128xf32>
    %169 = vector.broadcast %144 : vector<1x128xf32> to vector<16x128xf32>
    %170 = arith.mulf %134, %169 : vector<16x128xf32>
    %171 = arith.subf %26, %170 : vector<16x128xf32>
    %172 = vector.shape_cast %96 : vector<16x1xi1> to vector<16x1xi1>
    %173 = vector.broadcast %172 : vector<16x1xi1> to vector<16x128xi1>
    %174 = vector.shape_cast %144 : vector<1x128xf32> to vector<1x128xf32>
    %175 = vector.broadcast %174 : vector<1x128xf32> to vector<16x128xf32>
    %176 = arith.select %173, %175, %171 : vector<16x128xi1>, vector<16x128xf32>
    %c1_i32_36 = arith.constant 1 : i32
    %177 = vector.broadcast %c1_i32_36 : i32 to vector<16x1xi32>
    %178 = arith.cmpi eq, %4, %177 : vector<16x1xi32>
    %c1_i32_37 = arith.constant 1 : i32
    %179 = vector.broadcast %c1_i32_37 : i32 to vector<1x128xi32>
    %180 = arith.cmpi eq, %21, %179 : vector<1x128xi32>
    %cst_38 = arith.constant 0.000000e+00 : f32
    %181 = vector.shape_cast %180 : vector<1x128xi1> to vector<1x128xi1>
    %182 = vector.broadcast %181 : vector<1x128xi1> to vector<16x128xi1>
    %183 = vector.broadcast %cst_38 : f32 to vector<16x128xf32>
    %184 = arith.select %182, %152, %183 : vector<16x128xi1>, vector<16x128xf32>
    %c127_i32 = arith.constant 127 : i32
    %185 = tpu.dynamic_rotate %184 by %c127_i32 dim 1 : vector<16x128xf32>, i32 -> vector<16x128xf32>
    %c1_i32_39 = arith.constant 1 : i32
    %186 = tpu.dynamic_rotate %185 by %c1_i32_39 dim 1 : vector<16x128xf32>, i32 -> vector<16x128xf32>
    %187 = arith.addf %185, %186 : vector<16x128xf32>
    %c2_i32_40 = arith.constant 2 : i32
    %188 = tpu.dynamic_rotate %187 by %c2_i32_40 dim 1 : vector<16x128xf32>, i32 -> vector<16x128xf32>
    %189 = arith.addf %187, %188 : vector<16x128xf32>
    %c4_i32_41 = arith.constant 4 : i32
    %190 = tpu.dynamic_rotate %189 by %c4_i32_41 dim 1 : vector<16x128xf32>, i32 -> vector<16x128xf32>
    %191 = arith.addf %189, %190 : vector<16x128xf32>
    %c8_i32_42 = arith.constant 8 : i32
    %192 = tpu.dynamic_rotate %191 by %c8_i32_42 dim 1 : vector<16x128xf32>, i32 -> vector<16x128xf32>
    %193 = arith.addf %191, %192 : vector<16x128xf32>
    %194 = vector.extract_strided_slice %193 {offsets = [1, 0], sizes = [1, 128], strides = [1, 1]} : vector<16x128xf32> to vector<1x128xf32>
    %195 = tpu.reciprocal %194 {approx = true} : vector<1x128xf32> -> vector<1x128xf32>
    %196 = arith.mulf %194, %195 : vector<1x128xf32>
    %cst_43 = arith.constant 2.000000e+00 : f32
    %197 = vector.broadcast %cst_43 : f32 to vector<1x128xf32>
    %198 = arith.subf %197, %196 : vector<1x128xf32>
    %199 = arith.mulf %195, %198 : vector<1x128xf32>
    %200 = vector.extract_strided_slice %152 {offsets = [1, 0], sizes = [1, 128], strides = [1, 1]} : vector<16x128xf32> to vector<1x128xf32>
    %201 = arith.mulf %200, %199 : vector<1x128xf32>
    %202 = vector.extract_strided_slice %160 {offsets = [1, 0], sizes = [1, 128], strides = [1, 1]} : vector<16x128xf32> to vector<1x128xf32>
    %203 = arith.mulf %202, %199 : vector<1x128xf32>
    %c1_i32_44 = arith.constant 1 : i32
    %204 = vector.broadcast %c1_i32_44 : i32 to vector<1x128xi32>
    %205 = arith.cmpi eq, %21, %204 : vector<1x128xi32>
    %cst_45 = arith.constant 0.000000e+00 : f32
    %206 = vector.shape_cast %205 : vector<1x128xi1> to vector<1x128xi1>
    %207 = vector.broadcast %206 : vector<1x128xi1> to vector<16x128xi1>
    %208 = vector.broadcast %cst_45 : f32 to vector<16x128xf32>
    %209 = arith.select %207, %168, %208 : vector<16x128xi1>, vector<16x128xf32>
    %c127_i32_46 = arith.constant 127 : i32
    %210 = tpu.dynamic_rotate %209 by %c127_i32_46 dim 1 : vector<16x128xf32>, i32 -> vector<16x128xf32>
    %c1_i32_47 = arith.constant 1 : i32
    %211 = tpu.dynamic_rotate %210 by %c1_i32_47 dim 1 : vector<16x128xf32>, i32 -> vector<16x128xf32>
    %212 = arith.addf %210, %211 : vector<16x128xf32>
    %c2_i32_48 = arith.constant 2 : i32
    %213 = tpu.dynamic_rotate %212 by %c2_i32_48 dim 1 : vector<16x128xf32>, i32 -> vector<16x128xf32>
    %214 = arith.addf %212, %213 : vector<16x128xf32>
    %c4_i32_49 = arith.constant 4 : i32
    %215 = tpu.dynamic_rotate %214 by %c4_i32_49 dim 1 : vector<16x128xf32>, i32 -> vector<16x128xf32>
    %216 = arith.addf %214, %215 : vector<16x128xf32>
    %c8_i32_50 = arith.constant 8 : i32
    %217 = tpu.dynamic_rotate %216 by %c8_i32_50 dim 1 : vector<16x128xf32>, i32 -> vector<16x128xf32>
    %218 = arith.addf %216, %217 : vector<16x128xf32>
    %219 = vector.extract_strided_slice %218 {offsets = [1, 0], sizes = [1, 128], strides = [1, 1]} : vector<16x128xf32> to vector<1x128xf32>
    %220 = tpu.reciprocal %219 {approx = true} : vector<1x128xf32> -> vector<1x128xf32>
    %221 = arith.mulf %219, %220 : vector<1x128xf32>
    %cst_51 = arith.constant 2.000000e+00 : f32
    %222 = vector.broadcast %cst_51 : f32 to vector<1x128xf32>
    %223 = arith.subf %222, %221 : vector<1x128xf32>
    %224 = arith.mulf %220, %223 : vector<1x128xf32>
    %225 = vector.extract_strided_slice %168 {offsets = [1, 0], sizes = [1, 128], strides = [1, 1]} : vector<16x128xf32> to vector<1x128xf32>
    %226 = arith.mulf %225, %224 : vector<1x128xf32>
    %227 = vector.extract_strided_slice %176 {offsets = [1, 0], sizes = [1, 128], strides = [1, 1]} : vector<16x128xf32> to vector<1x128xf32>
    %228 = arith.mulf %227, %224 : vector<1x128xf32>
    %229 = vector.broadcast %201 : vector<1x128xf32> to vector<16x128xf32>
    %230 = arith.mulf %193, %229 : vector<16x128xf32>
    %231 = arith.subf %152, %230 : vector<16x128xf32>
    %232 = vector.shape_cast %178 : vector<16x1xi1> to vector<16x1xi1>
    %233 = vector.broadcast %232 : vector<16x1xi1> to vector<16x128xi1>
    %234 = vector.shape_cast %201 : vector<1x128xf32> to vector<1x128xf32>
    %235 = vector.broadcast %234 : vector<1x128xf32> to vector<16x128xf32>
    %236 = arith.select %233, %235, %231 : vector<16x128xi1>, vector<16x128xf32>
    %237 = vector.broadcast %203 : vector<1x128xf32> to vector<16x128xf32>
    %238 = arith.mulf %193, %237 : vector<16x128xf32>
    %239 = arith.subf %160, %238 : vector<16x128xf32>
    %240 = vector.shape_cast %178 : vector<16x1xi1> to vector<16x1xi1>
    %241 = vector.broadcast %240 : vector<16x1xi1> to vector<16x128xi1>
    %242 = vector.shape_cast %203 : vector<1x128xf32> to vector<1x128xf32>
    %243 = vector.broadcast %242 : vector<1x128xf32> to vector<16x128xf32>
    %244 = arith.select %241, %243, %239 : vector<16x128xi1>, vector<16x128xf32>
    %245 = vector.broadcast %226 : vector<1x128xf32> to vector<16x128xf32>
    %246 = arith.mulf %218, %245 : vector<16x128xf32>
    %247 = arith.subf %168, %246 : vector<16x128xf32>
    %248 = vector.shape_cast %178 : vector<16x1xi1> to vector<16x1xi1>
    %249 = vector.broadcast %248 : vector<16x1xi1> to vector<16x128xi1>
    %250 = vector.shape_cast %226 : vector<1x128xf32> to vector<1x128xf32>
    %251 = vector.broadcast %250 : vector<1x128xf32> to vector<16x128xf32>
    %252 = arith.select %249, %251, %247 : vector<16x128xi1>, vector<16x128xf32>
    %253 = vector.broadcast %228 : vector<1x128xf32> to vector<16x128xf32>
    %254 = arith.mulf %218, %253 : vector<16x128xf32>
    %255 = arith.subf %176, %254 : vector<16x128xf32>
    %256 = vector.shape_cast %178 : vector<16x1xi1> to vector<16x1xi1>
    %257 = vector.broadcast %256 : vector<16x1xi1> to vector<16x128xi1>
    %258 = vector.shape_cast %228 : vector<1x128xf32> to vector<1x128xf32>
    %259 = vector.broadcast %258 : vector<1x128xf32> to vector<16x128xf32>
    %260 = arith.select %257, %259, %255 : vector<16x128xi1>, vector<16x128xf32>
    %c2_i32_52 = arith.constant 2 : i32
    %261 = vector.broadcast %c2_i32_52 : i32 to vector<16x1xi32>
    %262 = arith.cmpi eq, %4, %261 : vector<16x1xi32>
    %c2_i32_53 = arith.constant 2 : i32
    %263 = vector.broadcast %c2_i32_53 : i32 to vector<1x128xi32>
    %264 = arith.cmpi eq, %21, %263 : vector<1x128xi32>
    %cst_54 = arith.constant 0.000000e+00 : f32
    %265 = vector.shape_cast %264 : vector<1x128xi1> to vector<1x128xi1>
    %266 = vector.broadcast %265 : vector<1x128xi1> to vector<16x128xi1>
    %267 = vector.broadcast %cst_54 : f32 to vector<16x128xf32>
    %268 = arith.select %266, %236, %267 : vector<16x128xi1>, vector<16x128xf32>
    %c126_i32 = arith.constant 126 : i32
    %269 = tpu.dynamic_rotate %268 by %c126_i32 dim 1 : vector<16x128xf32>, i32 -> vector<16x128xf32>
    %c1_i32_55 = arith.constant 1 : i32
    %270 = tpu.dynamic_rotate %269 by %c1_i32_55 dim 1 : vector<16x128xf32>, i32 -> vector<16x128xf32>
    %271 = arith.addf %269, %270 : vector<16x128xf32>
    %c2_i32_56 = arith.constant 2 : i32
    %272 = tpu.dynamic_rotate %271 by %c2_i32_56 dim 1 : vector<16x128xf32>, i32 -> vector<16x128xf32>
    %273 = arith.addf %271, %272 : vector<16x128xf32>
    %c4_i32_57 = arith.constant 4 : i32
    %274 = tpu.dynamic_rotate %273 by %c4_i32_57 dim 1 : vector<16x128xf32>, i32 -> vector<16x128xf32>
    %275 = arith.addf %273, %274 : vector<16x128xf32>
    %c8_i32_58 = arith.constant 8 : i32
    %276 = tpu.dynamic_rotate %275 by %c8_i32_58 dim 1 : vector<16x128xf32>, i32 -> vector<16x128xf32>
    %277 = arith.addf %275, %276 : vector<16x128xf32>
    %278 = vector.extract_strided_slice %277 {offsets = [2, 0], sizes = [1, 128], strides = [1, 1]} : vector<16x128xf32> to vector<1x128xf32>
    %279 = tpu.reciprocal %278 {approx = true} : vector<1x128xf32> -> vector<1x128xf32>
    %280 = arith.mulf %278, %279 : vector<1x128xf32>
    %cst_59 = arith.constant 2.000000e+00 : f32
    %281 = vector.broadcast %cst_59 : f32 to vector<1x128xf32>
    %282 = arith.subf %281, %280 : vector<1x128xf32>
    %283 = arith.mulf %279, %282 : vector<1x128xf32>
    %284 = vector.extract_strided_slice %236 {offsets = [2, 0], sizes = [1, 128], strides = [1, 1]} : vector<16x128xf32> to vector<1x128xf32>
    %285 = arith.mulf %284, %283 : vector<1x128xf32>
    %286 = vector.extract_strided_slice %244 {offsets = [2, 0], sizes = [1, 128], strides = [1, 1]} : vector<16x128xf32> to vector<1x128xf32>
    %287 = arith.mulf %286, %283 : vector<1x128xf32>
    %c2_i32_60 = arith.constant 2 : i32
    %288 = vector.broadcast %c2_i32_60 : i32 to vector<1x128xi32>
    %289 = arith.cmpi eq, %21, %288 : vector<1x128xi32>
    %cst_61 = arith.constant 0.000000e+00 : f32
    %290 = vector.shape_cast %289 : vector<1x128xi1> to vector<1x128xi1>
    %291 = vector.broadcast %290 : vector<1x128xi1> to vector<16x128xi1>
    %292 = vector.broadcast %cst_61 : f32 to vector<16x128xf32>
    %293 = arith.select %291, %252, %292 : vector<16x128xi1>, vector<16x128xf32>
    %c126_i32_62 = arith.constant 126 : i32
    %294 = tpu.dynamic_rotate %293 by %c126_i32_62 dim 1 : vector<16x128xf32>, i32 -> vector<16x128xf32>
    %c1_i32_63 = arith.constant 1 : i32
    %295 = tpu.dynamic_rotate %294 by %c1_i32_63 dim 1 : vector<16x128xf32>, i32 -> vector<16x128xf32>
    %296 = arith.addf %294, %295 : vector<16x128xf32>
    %c2_i32_64 = arith.constant 2 : i32
    %297 = tpu.dynamic_rotate %296 by %c2_i32_64 dim 1 : vector<16x128xf32>, i32 -> vector<16x128xf32>
    %298 = arith.addf %296, %297 : vector<16x128xf32>
    %c4_i32_65 = arith.constant 4 : i32
    %299 = tpu.dynamic_rotate %298 by %c4_i32_65 dim 1 : vector<16x128xf32>, i32 -> vector<16x128xf32>
    %300 = arith.addf %298, %299 : vector<16x128xf32>
    %c8_i32_66 = arith.constant 8 : i32
    %301 = tpu.dynamic_rotate %300 by %c8_i32_66 dim 1 : vector<16x128xf32>, i32 -> vector<16x128xf32>
    %302 = arith.addf %300, %301 : vector<16x128xf32>
    %303 = vector.extract_strided_slice %302 {offsets = [2, 0], sizes = [1, 128], strides = [1, 1]} : vector<16x128xf32> to vector<1x128xf32>
    %304 = tpu.reciprocal %303 {approx = true} : vector<1x128xf32> -> vector<1x128xf32>
    %305 = arith.mulf %303, %304 : vector<1x128xf32>
    %cst_67 = arith.constant 2.000000e+00 : f32
    %306 = vector.broadcast %cst_67 : f32 to vector<1x128xf32>
    %307 = arith.subf %306, %305 : vector<1x128xf32>
    %308 = arith.mulf %304, %307 : vector<1x128xf32>
    %309 = vector.extract_strided_slice %252 {offsets = [2, 0], sizes = [1, 128], strides = [1, 1]} : vector<16x128xf32> to vector<1x128xf32>
    %310 = arith.mulf %309, %308 : vector<1x128xf32>
    %311 = vector.extract_strided_slice %260 {offsets = [2, 0], sizes = [1, 128], strides = [1, 1]} : vector<16x128xf32> to vector<1x128xf32>
    %312 = arith.mulf %311, %308 : vector<1x128xf32>
    %313 = vector.broadcast %285 : vector<1x128xf32> to vector<16x128xf32>
    %314 = arith.mulf %277, %313 : vector<16x128xf32>
    %315 = arith.subf %236, %314 : vector<16x128xf32>
    %316 = vector.shape_cast %262 : vector<16x1xi1> to vector<16x1xi1>
    %317 = vector.broadcast %316 : vector<16x1xi1> to vector<16x128xi1>
    %318 = vector.shape_cast %285 : vector<1x128xf32> to vector<1x128xf32>
    %319 = vector.broadcast %318 : vector<1x128xf32> to vector<16x128xf32>
    %320 = arith.select %317, %319, %315 : vector<16x128xi1>, vector<16x128xf32>
    %321 = vector.broadcast %287 : vector<1x128xf32> to vector<16x128xf32>
    %322 = arith.mulf %277, %321 : vector<16x128xf32>
    %323 = arith.subf %244, %322 : vector<16x128xf32>
    %324 = vector.shape_cast %262 : vector<16x1xi1> to vector<16x1xi1>
    %325 = vector.broadcast %324 : vector<16x1xi1> to vector<16x128xi1>
    %326 = vector.shape_cast %287 : vector<1x128xf32> to vector<1x128xf32>
    %327 = vector.broadcast %326 : vector<1x128xf32> to vector<16x128xf32>
    %328 = arith.select %325, %327, %323 : vector<16x128xi1>, vector<16x128xf32>
    %329 = vector.broadcast %310 : vector<1x128xf32> to vector<16x128xf32>
    %330 = arith.mulf %302, %329 : vector<16x128xf32>
    %331 = arith.subf %252, %330 : vector<16x128xf32>
    %332 = vector.shape_cast %262 : vector<16x1xi1> to vector<16x1xi1>
    %333 = vector.broadcast %332 : vector<16x1xi1> to vector<16x128xi1>
    %334 = vector.shape_cast %310 : vector<1x128xf32> to vector<1x128xf32>
    %335 = vector.broadcast %334 : vector<1x128xf32> to vector<16x128xf32>
    %336 = arith.select %333, %335, %331 : vector<16x128xi1>, vector<16x128xf32>
    %337 = vector.broadcast %312 : vector<1x128xf32> to vector<16x128xf32>
    %338 = arith.mulf %302, %337 : vector<16x128xf32>
    %339 = arith.subf %260, %338 : vector<16x128xf32>
    %340 = vector.shape_cast %262 : vector<16x1xi1> to vector<16x1xi1>
    %341 = vector.broadcast %340 : vector<16x1xi1> to vector<16x128xi1>
    %342 = vector.shape_cast %312 : vector<1x128xf32> to vector<1x128xf32>
    %343 = vector.broadcast %342 : vector<1x128xf32> to vector<16x128xf32>
    %344 = arith.select %341, %343, %339 : vector<16x128xi1>, vector<16x128xf32>
    %c3_i32 = arith.constant 3 : i32
    %345 = vector.broadcast %c3_i32 : i32 to vector<16x1xi32>
    %346 = arith.cmpi eq, %4, %345 : vector<16x1xi32>
    %c3_i32_68 = arith.constant 3 : i32
    %347 = vector.broadcast %c3_i32_68 : i32 to vector<1x128xi32>
    %348 = arith.cmpi eq, %21, %347 : vector<1x128xi32>
    %cst_69 = arith.constant 0.000000e+00 : f32
    %349 = vector.shape_cast %348 : vector<1x128xi1> to vector<1x128xi1>
    %350 = vector.broadcast %349 : vector<1x128xi1> to vector<16x128xi1>
    %351 = vector.broadcast %cst_69 : f32 to vector<16x128xf32>
    %352 = arith.select %350, %320, %351 : vector<16x128xi1>, vector<16x128xf32>
    %c125_i32 = arith.constant 125 : i32
    %353 = tpu.dynamic_rotate %352 by %c125_i32 dim 1 : vector<16x128xf32>, i32 -> vector<16x128xf32>
    %c1_i32_70 = arith.constant 1 : i32
    %354 = tpu.dynamic_rotate %353 by %c1_i32_70 dim 1 : vector<16x128xf32>, i32 -> vector<16x128xf32>
    %355 = arith.addf %353, %354 : vector<16x128xf32>
    %c2_i32_71 = arith.constant 2 : i32
    %356 = tpu.dynamic_rotate %355 by %c2_i32_71 dim 1 : vector<16x128xf32>, i32 -> vector<16x128xf32>
    %357 = arith.addf %355, %356 : vector<16x128xf32>
    %c4_i32_72 = arith.constant 4 : i32
    %358 = tpu.dynamic_rotate %357 by %c4_i32_72 dim 1 : vector<16x128xf32>, i32 -> vector<16x128xf32>
    %359 = arith.addf %357, %358 : vector<16x128xf32>
    %c8_i32_73 = arith.constant 8 : i32
    %360 = tpu.dynamic_rotate %359 by %c8_i32_73 dim 1 : vector<16x128xf32>, i32 -> vector<16x128xf32>
    %361 = arith.addf %359, %360 : vector<16x128xf32>
    %362 = vector.extract_strided_slice %361 {offsets = [3, 0], sizes = [1, 128], strides = [1, 1]} : vector<16x128xf32> to vector<1x128xf32>
    %363 = tpu.reciprocal %362 {approx = true} : vector<1x128xf32> -> vector<1x128xf32>
    %364 = arith.mulf %362, %363 : vector<1x128xf32>
    %cst_74 = arith.constant 2.000000e+00 : f32
    %365 = vector.broadcast %cst_74 : f32 to vector<1x128xf32>
    %366 = arith.subf %365, %364 : vector<1x128xf32>
    %367 = arith.mulf %363, %366 : vector<1x128xf32>
    %368 = vector.extract_strided_slice %320 {offsets = [3, 0], sizes = [1, 128], strides = [1, 1]} : vector<16x128xf32> to vector<1x128xf32>
    %369 = arith.mulf %368, %367 : vector<1x128xf32>
    %370 = vector.extract_strided_slice %328 {offsets = [3, 0], sizes = [1, 128], strides = [1, 1]} : vector<16x128xf32> to vector<1x128xf32>
    %371 = arith.mulf %370, %367 : vector<1x128xf32>
    %c3_i32_75 = arith.constant 3 : i32
    %372 = vector.broadcast %c3_i32_75 : i32 to vector<1x128xi32>
    %373 = arith.cmpi eq, %21, %372 : vector<1x128xi32>
    %cst_76 = arith.constant 0.000000e+00 : f32
    %374 = vector.shape_cast %373 : vector<1x128xi1> to vector<1x128xi1>
    %375 = vector.broadcast %374 : vector<1x128xi1> to vector<16x128xi1>
    %376 = vector.broadcast %cst_76 : f32 to vector<16x128xf32>
    %377 = arith.select %375, %336, %376 : vector<16x128xi1>, vector<16x128xf32>
    %c125_i32_77 = arith.constant 125 : i32
    %378 = tpu.dynamic_rotate %377 by %c125_i32_77 dim 1 : vector<16x128xf32>, i32 -> vector<16x128xf32>
    %c1_i32_78 = arith.constant 1 : i32
    %379 = tpu.dynamic_rotate %378 by %c1_i32_78 dim 1 : vector<16x128xf32>, i32 -> vector<16x128xf32>
    %380 = arith.addf %378, %379 : vector<16x128xf32>
    %c2_i32_79 = arith.constant 2 : i32
    %381 = tpu.dynamic_rotate %380 by %c2_i32_79 dim 1 : vector<16x128xf32>, i32 -> vector<16x128xf32>
    %382 = arith.addf %380, %381 : vector<16x128xf32>
    %c4_i32_80 = arith.constant 4 : i32
    %383 = tpu.dynamic_rotate %382 by %c4_i32_80 dim 1 : vector<16x128xf32>, i32 -> vector<16x128xf32>
    %384 = arith.addf %382, %383 : vector<16x128xf32>
    %c8_i32_81 = arith.constant 8 : i32
    %385 = tpu.dynamic_rotate %384 by %c8_i32_81 dim 1 : vector<16x128xf32>, i32 -> vector<16x128xf32>
    %386 = arith.addf %384, %385 : vector<16x128xf32>
    %387 = vector.extract_strided_slice %386 {offsets = [3, 0], sizes = [1, 128], strides = [1, 1]} : vector<16x128xf32> to vector<1x128xf32>
    %388 = tpu.reciprocal %387 {approx = true} : vector<1x128xf32> -> vector<1x128xf32>
    %389 = arith.mulf %387, %388 : vector<1x128xf32>
    %cst_82 = arith.constant 2.000000e+00 : f32
    %390 = vector.broadcast %cst_82 : f32 to vector<1x128xf32>
    %391 = arith.subf %390, %389 : vector<1x128xf32>
    %392 = arith.mulf %388, %391 : vector<1x128xf32>
    %393 = vector.extract_strided_slice %336 {offsets = [3, 0], sizes = [1, 128], strides = [1, 1]} : vector<16x128xf32> to vector<1x128xf32>
    %394 = arith.mulf %393, %392 : vector<1x128xf32>
    %395 = vector.extract_strided_slice %344 {offsets = [3, 0], sizes = [1, 128], strides = [1, 1]} : vector<16x128xf32> to vector<1x128xf32>
    %396 = arith.mulf %395, %392 : vector<1x128xf32>
    %397 = vector.broadcast %369 : vector<1x128xf32> to vector<16x128xf32>
    %398 = arith.mulf %361, %397 : vector<16x128xf32>
    %399 = arith.subf %320, %398 : vector<16x128xf32>
    %400 = vector.shape_cast %346 : vector<16x1xi1> to vector<16x1xi1>
    %401 = vector.broadcast %400 : vector<16x1xi1> to vector<16x128xi1>
    %402 = vector.shape_cast %369 : vector<1x128xf32> to vector<1x128xf32>
    %403 = vector.broadcast %402 : vector<1x128xf32> to vector<16x128xf32>
    %404 = arith.select %401, %403, %399 : vector<16x128xi1>, vector<16x128xf32>
    %405 = vector.broadcast %371 : vector<1x128xf32> to vector<16x128xf32>
    %406 = arith.mulf %361, %405 : vector<16x128xf32>
    %407 = arith.subf %328, %406 : vector<16x128xf32>
    %408 = vector.shape_cast %346 : vector<16x1xi1> to vector<16x1xi1>
    %409 = vector.broadcast %408 : vector<16x1xi1> to vector<16x128xi1>
    %410 = vector.shape_cast %371 : vector<1x128xf32> to vector<1x128xf32>
    %411 = vector.broadcast %410 : vector<1x128xf32> to vector<16x128xf32>
    %412 = arith.select %409, %411, %407 : vector<16x128xi1>, vector<16x128xf32>
    %413 = vector.broadcast %394 : vector<1x128xf32> to vector<16x128xf32>
    %414 = arith.mulf %386, %413 : vector<16x128xf32>
    %415 = arith.subf %336, %414 : vector<16x128xf32>
    %416 = vector.shape_cast %346 : vector<16x1xi1> to vector<16x1xi1>
    %417 = vector.broadcast %416 : vector<16x1xi1> to vector<16x128xi1>
    %418 = vector.shape_cast %394 : vector<1x128xf32> to vector<1x128xf32>
    %419 = vector.broadcast %418 : vector<1x128xf32> to vector<16x128xf32>
    %420 = arith.select %417, %419, %415 : vector<16x128xi1>, vector<16x128xf32>
    %421 = vector.broadcast %396 : vector<1x128xf32> to vector<16x128xf32>
    %422 = arith.mulf %386, %421 : vector<16x128xf32>
    %423 = arith.subf %344, %422 : vector<16x128xf32>
    %424 = vector.shape_cast %346 : vector<16x1xi1> to vector<16x1xi1>
    %425 = vector.broadcast %424 : vector<16x1xi1> to vector<16x128xi1>
    %426 = vector.shape_cast %396 : vector<1x128xf32> to vector<1x128xf32>
    %427 = vector.broadcast %426 : vector<1x128xf32> to vector<16x128xf32>
    %428 = arith.select %425, %427, %423 : vector<16x128xi1>, vector<16x128xf32>
    %c4_i32_83 = arith.constant 4 : i32
    %429 = vector.broadcast %c4_i32_83 : i32 to vector<16x1xi32>
    %430 = arith.cmpi eq, %4, %429 : vector<16x1xi32>
    %c4_i32_84 = arith.constant 4 : i32
    %431 = vector.broadcast %c4_i32_84 : i32 to vector<1x128xi32>
    %432 = arith.cmpi eq, %21, %431 : vector<1x128xi32>
    %cst_85 = arith.constant 0.000000e+00 : f32
    %433 = vector.shape_cast %432 : vector<1x128xi1> to vector<1x128xi1>
    %434 = vector.broadcast %433 : vector<1x128xi1> to vector<16x128xi1>
    %435 = vector.broadcast %cst_85 : f32 to vector<16x128xf32>
    %436 = arith.select %434, %404, %435 : vector<16x128xi1>, vector<16x128xf32>
    %c124_i32 = arith.constant 124 : i32
    %437 = tpu.dynamic_rotate %436 by %c124_i32 dim 1 : vector<16x128xf32>, i32 -> vector<16x128xf32>
    %c1_i32_86 = arith.constant 1 : i32
    %438 = tpu.dynamic_rotate %437 by %c1_i32_86 dim 1 : vector<16x128xf32>, i32 -> vector<16x128xf32>
    %439 = arith.addf %437, %438 : vector<16x128xf32>
    %c2_i32_87 = arith.constant 2 : i32
    %440 = tpu.dynamic_rotate %439 by %c2_i32_87 dim 1 : vector<16x128xf32>, i32 -> vector<16x128xf32>
    %441 = arith.addf %439, %440 : vector<16x128xf32>
    %c4_i32_88 = arith.constant 4 : i32
    %442 = tpu.dynamic_rotate %441 by %c4_i32_88 dim 1 : vector<16x128xf32>, i32 -> vector<16x128xf32>
    %443 = arith.addf %441, %442 : vector<16x128xf32>
    %c8_i32_89 = arith.constant 8 : i32
    %444 = tpu.dynamic_rotate %443 by %c8_i32_89 dim 1 : vector<16x128xf32>, i32 -> vector<16x128xf32>
    %445 = arith.addf %443, %444 : vector<16x128xf32>
    %446 = vector.extract_strided_slice %445 {offsets = [4, 0], sizes = [1, 128], strides = [1, 1]} : vector<16x128xf32> to vector<1x128xf32>
    %447 = tpu.reciprocal %446 {approx = true} : vector<1x128xf32> -> vector<1x128xf32>
    %448 = arith.mulf %446, %447 : vector<1x128xf32>
    %cst_90 = arith.constant 2.000000e+00 : f32
    %449 = vector.broadcast %cst_90 : f32 to vector<1x128xf32>
    %450 = arith.subf %449, %448 : vector<1x128xf32>
    %451 = arith.mulf %447, %450 : vector<1x128xf32>
    %452 = vector.extract_strided_slice %404 {offsets = [4, 0], sizes = [1, 128], strides = [1, 1]} : vector<16x128xf32> to vector<1x128xf32>
    %453 = arith.mulf %452, %451 : vector<1x128xf32>
    %454 = vector.extract_strided_slice %412 {offsets = [4, 0], sizes = [1, 128], strides = [1, 1]} : vector<16x128xf32> to vector<1x128xf32>
    %455 = arith.mulf %454, %451 : vector<1x128xf32>
    %c4_i32_91 = arith.constant 4 : i32
    %456 = vector.broadcast %c4_i32_91 : i32 to vector<1x128xi32>
    %457 = arith.cmpi eq, %21, %456 : vector<1x128xi32>
    %cst_92 = arith.constant 0.000000e+00 : f32
    %458 = vector.shape_cast %457 : vector<1x128xi1> to vector<1x128xi1>
    %459 = vector.broadcast %458 : vector<1x128xi1> to vector<16x128xi1>
    %460 = vector.broadcast %cst_92 : f32 to vector<16x128xf32>
    %461 = arith.select %459, %420, %460 : vector<16x128xi1>, vector<16x128xf32>
    %c124_i32_93 = arith.constant 124 : i32
    %462 = tpu.dynamic_rotate %461 by %c124_i32_93 dim 1 : vector<16x128xf32>, i32 -> vector<16x128xf32>
    %c1_i32_94 = arith.constant 1 : i32
    %463 = tpu.dynamic_rotate %462 by %c1_i32_94 dim 1 : vector<16x128xf32>, i32 -> vector<16x128xf32>
    %464 = arith.addf %462, %463 : vector<16x128xf32>
    %c2_i32_95 = arith.constant 2 : i32
    %465 = tpu.dynamic_rotate %464 by %c2_i32_95 dim 1 : vector<16x128xf32>, i32 -> vector<16x128xf32>
    %466 = arith.addf %464, %465 : vector<16x128xf32>
    %c4_i32_96 = arith.constant 4 : i32
    %467 = tpu.dynamic_rotate %466 by %c4_i32_96 dim 1 : vector<16x128xf32>, i32 -> vector<16x128xf32>
    %468 = arith.addf %466, %467 : vector<16x128xf32>
    %c8_i32_97 = arith.constant 8 : i32
    %469 = tpu.dynamic_rotate %468 by %c8_i32_97 dim 1 : vector<16x128xf32>, i32 -> vector<16x128xf32>
    %470 = arith.addf %468, %469 : vector<16x128xf32>
    %471 = vector.extract_strided_slice %470 {offsets = [4, 0], sizes = [1, 128], strides = [1, 1]} : vector<16x128xf32> to vector<1x128xf32>
    %472 = tpu.reciprocal %471 {approx = true} : vector<1x128xf32> -> vector<1x128xf32>
    %473 = arith.mulf %471, %472 : vector<1x128xf32>
    %cst_98 = arith.constant 2.000000e+00 : f32
    %474 = vector.broadcast %cst_98 : f32 to vector<1x128xf32>
    %475 = arith.subf %474, %473 : vector<1x128xf32>
    %476 = arith.mulf %472, %475 : vector<1x128xf32>
    %477 = vector.extract_strided_slice %420 {offsets = [4, 0], sizes = [1, 128], strides = [1, 1]} : vector<16x128xf32> to vector<1x128xf32>
    %478 = arith.mulf %477, %476 : vector<1x128xf32>
    %479 = vector.extract_strided_slice %428 {offsets = [4, 0], sizes = [1, 128], strides = [1, 1]} : vector<16x128xf32> to vector<1x128xf32>
    %480 = arith.mulf %479, %476 : vector<1x128xf32>
    %481 = vector.broadcast %453 : vector<1x128xf32> to vector<16x128xf32>
    %482 = arith.mulf %445, %481 : vector<16x128xf32>
    %483 = arith.subf %404, %482 : vector<16x128xf32>
    %484 = vector.shape_cast %430 : vector<16x1xi1> to vector<16x1xi1>
    %485 = vector.broadcast %484 : vector<16x1xi1> to vector<16x128xi1>
    %486 = vector.shape_cast %453 : vector<1x128xf32> to vector<1x128xf32>
    %487 = vector.broadcast %486 : vector<1x128xf32> to vector<16x128xf32>
    %488 = arith.select %485, %487, %483 : vector<16x128xi1>, vector<16x128xf32>
    %489 = vector.broadcast %455 : vector<1x128xf32> to vector<16x128xf32>
    %490 = arith.mulf %445, %489 : vector<16x128xf32>
    %491 = arith.subf %412, %490 : vector<16x128xf32>
    %492 = vector.shape_cast %430 : vector<16x1xi1> to vector<16x1xi1>
    %493 = vector.broadcast %492 : vector<16x1xi1> to vector<16x128xi1>
    %494 = vector.shape_cast %455 : vector<1x128xf32> to vector<1x128xf32>
    %495 = vector.broadcast %494 : vector<1x128xf32> to vector<16x128xf32>
    %496 = arith.select %493, %495, %491 : vector<16x128xi1>, vector<16x128xf32>
    %497 = vector.broadcast %478 : vector<1x128xf32> to vector<16x128xf32>
    %498 = arith.mulf %470, %497 : vector<16x128xf32>
    %499 = arith.subf %420, %498 : vector<16x128xf32>
    %500 = vector.shape_cast %430 : vector<16x1xi1> to vector<16x1xi1>
    %501 = vector.broadcast %500 : vector<16x1xi1> to vector<16x128xi1>
    %502 = vector.shape_cast %478 : vector<1x128xf32> to vector<1x128xf32>
    %503 = vector.broadcast %502 : vector<1x128xf32> to vector<16x128xf32>
    %504 = arith.select %501, %503, %499 : vector<16x128xi1>, vector<16x128xf32>
    %505 = vector.broadcast %480 : vector<1x128xf32> to vector<16x128xf32>
    %506 = arith.mulf %470, %505 : vector<16x128xf32>
    %507 = arith.subf %428, %506 : vector<16x128xf32>
    %508 = vector.shape_cast %430 : vector<16x1xi1> to vector<16x1xi1>
    %509 = vector.broadcast %508 : vector<16x1xi1> to vector<16x128xi1>
    %510 = vector.shape_cast %480 : vector<1x128xf32> to vector<1x128xf32>
    %511 = vector.broadcast %510 : vector<1x128xf32> to vector<16x128xf32>
    %512 = arith.select %509, %511, %507 : vector<16x128xi1>, vector<16x128xf32>
    %c5_i32 = arith.constant 5 : i32
    %513 = vector.broadcast %c5_i32 : i32 to vector<16x1xi32>
    %514 = arith.cmpi eq, %4, %513 : vector<16x1xi32>
    %c5_i32_99 = arith.constant 5 : i32
    %515 = vector.broadcast %c5_i32_99 : i32 to vector<1x128xi32>
    %516 = arith.cmpi eq, %21, %515 : vector<1x128xi32>
    %cst_100 = arith.constant 0.000000e+00 : f32
    %517 = vector.shape_cast %516 : vector<1x128xi1> to vector<1x128xi1>
    %518 = vector.broadcast %517 : vector<1x128xi1> to vector<16x128xi1>
    %519 = vector.broadcast %cst_100 : f32 to vector<16x128xf32>
    %520 = arith.select %518, %488, %519 : vector<16x128xi1>, vector<16x128xf32>
    %c123_i32 = arith.constant 123 : i32
    %521 = tpu.dynamic_rotate %520 by %c123_i32 dim 1 : vector<16x128xf32>, i32 -> vector<16x128xf32>
    %c1_i32_101 = arith.constant 1 : i32
    %522 = tpu.dynamic_rotate %521 by %c1_i32_101 dim 1 : vector<16x128xf32>, i32 -> vector<16x128xf32>
    %523 = arith.addf %521, %522 : vector<16x128xf32>
    %c2_i32_102 = arith.constant 2 : i32
    %524 = tpu.dynamic_rotate %523 by %c2_i32_102 dim 1 : vector<16x128xf32>, i32 -> vector<16x128xf32>
    %525 = arith.addf %523, %524 : vector<16x128xf32>
    %c4_i32_103 = arith.constant 4 : i32
    %526 = tpu.dynamic_rotate %525 by %c4_i32_103 dim 1 : vector<16x128xf32>, i32 -> vector<16x128xf32>
    %527 = arith.addf %525, %526 : vector<16x128xf32>
    %c8_i32_104 = arith.constant 8 : i32
    %528 = tpu.dynamic_rotate %527 by %c8_i32_104 dim 1 : vector<16x128xf32>, i32 -> vector<16x128xf32>
    %529 = arith.addf %527, %528 : vector<16x128xf32>
    %530 = vector.extract_strided_slice %529 {offsets = [5, 0], sizes = [1, 128], strides = [1, 1]} : vector<16x128xf32> to vector<1x128xf32>
    %531 = tpu.reciprocal %530 {approx = true} : vector<1x128xf32> -> vector<1x128xf32>
    %532 = arith.mulf %530, %531 : vector<1x128xf32>
    %cst_105 = arith.constant 2.000000e+00 : f32
    %533 = vector.broadcast %cst_105 : f32 to vector<1x128xf32>
    %534 = arith.subf %533, %532 : vector<1x128xf32>
    %535 = arith.mulf %531, %534 : vector<1x128xf32>
    %536 = vector.extract_strided_slice %488 {offsets = [5, 0], sizes = [1, 128], strides = [1, 1]} : vector<16x128xf32> to vector<1x128xf32>
    %537 = arith.mulf %536, %535 : vector<1x128xf32>
    %538 = vector.extract_strided_slice %496 {offsets = [5, 0], sizes = [1, 128], strides = [1, 1]} : vector<16x128xf32> to vector<1x128xf32>
    %539 = arith.mulf %538, %535 : vector<1x128xf32>
    %c5_i32_106 = arith.constant 5 : i32
    %540 = vector.broadcast %c5_i32_106 : i32 to vector<1x128xi32>
    %541 = arith.cmpi eq, %21, %540 : vector<1x128xi32>
    %cst_107 = arith.constant 0.000000e+00 : f32
    %542 = vector.shape_cast %541 : vector<1x128xi1> to vector<1x128xi1>
    %543 = vector.broadcast %542 : vector<1x128xi1> to vector<16x128xi1>
    %544 = vector.broadcast %cst_107 : f32 to vector<16x128xf32>
    %545 = arith.select %543, %504, %544 : vector<16x128xi1>, vector<16x128xf32>
    %c123_i32_108 = arith.constant 123 : i32
    %546 = tpu.dynamic_rotate %545 by %c123_i32_108 dim 1 : vector<16x128xf32>, i32 -> vector<16x128xf32>
    %c1_i32_109 = arith.constant 1 : i32
    %547 = tpu.dynamic_rotate %546 by %c1_i32_109 dim 1 : vector<16x128xf32>, i32 -> vector<16x128xf32>
    %548 = arith.addf %546, %547 : vector<16x128xf32>
    %c2_i32_110 = arith.constant 2 : i32
    %549 = tpu.dynamic_rotate %548 by %c2_i32_110 dim 1 : vector<16x128xf32>, i32 -> vector<16x128xf32>
    %550 = arith.addf %548, %549 : vector<16x128xf32>
    %c4_i32_111 = arith.constant 4 : i32
    %551 = tpu.dynamic_rotate %550 by %c4_i32_111 dim 1 : vector<16x128xf32>, i32 -> vector<16x128xf32>
    %552 = arith.addf %550, %551 : vector<16x128xf32>
    %c8_i32_112 = arith.constant 8 : i32
    %553 = tpu.dynamic_rotate %552 by %c8_i32_112 dim 1 : vector<16x128xf32>, i32 -> vector<16x128xf32>
    %554 = arith.addf %552, %553 : vector<16x128xf32>
    %555 = vector.extract_strided_slice %554 {offsets = [5, 0], sizes = [1, 128], strides = [1, 1]} : vector<16x128xf32> to vector<1x128xf32>
    %556 = tpu.reciprocal %555 {approx = true} : vector<1x128xf32> -> vector<1x128xf32>
    %557 = arith.mulf %555, %556 : vector<1x128xf32>
    %cst_113 = arith.constant 2.000000e+00 : f32
    %558 = vector.broadcast %cst_113 : f32 to vector<1x128xf32>
    %559 = arith.subf %558, %557 : vector<1x128xf32>
    %560 = arith.mulf %556, %559 : vector<1x128xf32>
    %561 = vector.extract_strided_slice %504 {offsets = [5, 0], sizes = [1, 128], strides = [1, 1]} : vector<16x128xf32> to vector<1x128xf32>
    %562 = arith.mulf %561, %560 : vector<1x128xf32>
    %563 = vector.extract_strided_slice %512 {offsets = [5, 0], sizes = [1, 128], strides = [1, 1]} : vector<16x128xf32> to vector<1x128xf32>
    %564 = arith.mulf %563, %560 : vector<1x128xf32>
    %565 = vector.broadcast %537 : vector<1x128xf32> to vector<16x128xf32>
    %566 = arith.mulf %529, %565 : vector<16x128xf32>
    %567 = arith.subf %488, %566 : vector<16x128xf32>
    %568 = vector.shape_cast %514 : vector<16x1xi1> to vector<16x1xi1>
    %569 = vector.broadcast %568 : vector<16x1xi1> to vector<16x128xi1>
    %570 = vector.shape_cast %537 : vector<1x128xf32> to vector<1x128xf32>
    %571 = vector.broadcast %570 : vector<1x128xf32> to vector<16x128xf32>
    %572 = arith.select %569, %571, %567 : vector<16x128xi1>, vector<16x128xf32>
    %573 = vector.broadcast %539 : vector<1x128xf32> to vector<16x128xf32>
    %574 = arith.mulf %529, %573 : vector<16x128xf32>
    %575 = arith.subf %496, %574 : vector<16x128xf32>
    %576 = vector.shape_cast %514 : vector<16x1xi1> to vector<16x1xi1>
    %577 = vector.broadcast %576 : vector<16x1xi1> to vector<16x128xi1>
    %578 = vector.shape_cast %539 : vector<1x128xf32> to vector<1x128xf32>
    %579 = vector.broadcast %578 : vector<1x128xf32> to vector<16x128xf32>
    %580 = arith.select %577, %579, %575 : vector<16x128xi1>, vector<16x128xf32>
    %581 = vector.broadcast %562 : vector<1x128xf32> to vector<16x128xf32>
    %582 = arith.mulf %554, %581 : vector<16x128xf32>
    %583 = arith.subf %504, %582 : vector<16x128xf32>
    %584 = vector.shape_cast %514 : vector<16x1xi1> to vector<16x1xi1>
    %585 = vector.broadcast %584 : vector<16x1xi1> to vector<16x128xi1>
    %586 = vector.shape_cast %562 : vector<1x128xf32> to vector<1x128xf32>
    %587 = vector.broadcast %586 : vector<1x128xf32> to vector<16x128xf32>
    %588 = arith.select %585, %587, %583 : vector<16x128xi1>, vector<16x128xf32>
    %589 = vector.broadcast %564 : vector<1x128xf32> to vector<16x128xf32>
    %590 = arith.mulf %554, %589 : vector<16x128xf32>
    %591 = arith.subf %512, %590 : vector<16x128xf32>
    %592 = vector.shape_cast %514 : vector<16x1xi1> to vector<16x1xi1>
    %593 = vector.broadcast %592 : vector<16x1xi1> to vector<16x128xi1>
    %594 = vector.shape_cast %564 : vector<1x128xf32> to vector<1x128xf32>
    %595 = vector.broadcast %594 : vector<1x128xf32> to vector<16x128xf32>
    %596 = arith.select %593, %595, %591 : vector<16x128xi1>, vector<16x128xf32>
    %c6_i32 = arith.constant 6 : i32
    %597 = vector.broadcast %c6_i32 : i32 to vector<16x1xi32>
    %598 = arith.cmpi eq, %4, %597 : vector<16x1xi32>
    %c6_i32_114 = arith.constant 6 : i32
    %599 = vector.broadcast %c6_i32_114 : i32 to vector<1x128xi32>
    %600 = arith.cmpi eq, %21, %599 : vector<1x128xi32>
    %cst_115 = arith.constant 0.000000e+00 : f32
    %601 = vector.shape_cast %600 : vector<1x128xi1> to vector<1x128xi1>
    %602 = vector.broadcast %601 : vector<1x128xi1> to vector<16x128xi1>
    %603 = vector.broadcast %cst_115 : f32 to vector<16x128xf32>
    %604 = arith.select %602, %572, %603 : vector<16x128xi1>, vector<16x128xf32>
    %c122_i32 = arith.constant 122 : i32
    %605 = tpu.dynamic_rotate %604 by %c122_i32 dim 1 : vector<16x128xf32>, i32 -> vector<16x128xf32>
    %c1_i32_116 = arith.constant 1 : i32
    %606 = tpu.dynamic_rotate %605 by %c1_i32_116 dim 1 : vector<16x128xf32>, i32 -> vector<16x128xf32>
    %607 = arith.addf %605, %606 : vector<16x128xf32>
    %c2_i32_117 = arith.constant 2 : i32
    %608 = tpu.dynamic_rotate %607 by %c2_i32_117 dim 1 : vector<16x128xf32>, i32 -> vector<16x128xf32>
    %609 = arith.addf %607, %608 : vector<16x128xf32>
    %c4_i32_118 = arith.constant 4 : i32
    %610 = tpu.dynamic_rotate %609 by %c4_i32_118 dim 1 : vector<16x128xf32>, i32 -> vector<16x128xf32>
    %611 = arith.addf %609, %610 : vector<16x128xf32>
    %c8_i32_119 = arith.constant 8 : i32
    %612 = tpu.dynamic_rotate %611 by %c8_i32_119 dim 1 : vector<16x128xf32>, i32 -> vector<16x128xf32>
    %613 = arith.addf %611, %612 : vector<16x128xf32>
    %614 = vector.extract_strided_slice %613 {offsets = [6, 0], sizes = [1, 128], strides = [1, 1]} : vector<16x128xf32> to vector<1x128xf32>
    %615 = tpu.reciprocal %614 {approx = true} : vector<1x128xf32> -> vector<1x128xf32>
    %616 = arith.mulf %614, %615 : vector<1x128xf32>
    %cst_120 = arith.constant 2.000000e+00 : f32
    %617 = vector.broadcast %cst_120 : f32 to vector<1x128xf32>
    %618 = arith.subf %617, %616 : vector<1x128xf32>
    %619 = arith.mulf %615, %618 : vector<1x128xf32>
    %620 = vector.extract_strided_slice %572 {offsets = [6, 0], sizes = [1, 128], strides = [1, 1]} : vector<16x128xf32> to vector<1x128xf32>
    %621 = arith.mulf %620, %619 : vector<1x128xf32>
    %622 = vector.extract_strided_slice %580 {offsets = [6, 0], sizes = [1, 128], strides = [1, 1]} : vector<16x128xf32> to vector<1x128xf32>
    %623 = arith.mulf %622, %619 : vector<1x128xf32>
    %c6_i32_121 = arith.constant 6 : i32
    %624 = vector.broadcast %c6_i32_121 : i32 to vector<1x128xi32>
    %625 = arith.cmpi eq, %21, %624 : vector<1x128xi32>
    %cst_122 = arith.constant 0.000000e+00 : f32
    %626 = vector.shape_cast %625 : vector<1x128xi1> to vector<1x128xi1>
    %627 = vector.broadcast %626 : vector<1x128xi1> to vector<16x128xi1>
    %628 = vector.broadcast %cst_122 : f32 to vector<16x128xf32>
    %629 = arith.select %627, %588, %628 : vector<16x128xi1>, vector<16x128xf32>
    %c122_i32_123 = arith.constant 122 : i32
    %630 = tpu.dynamic_rotate %629 by %c122_i32_123 dim 1 : vector<16x128xf32>, i32 -> vector<16x128xf32>
    %c1_i32_124 = arith.constant 1 : i32
    %631 = tpu.dynamic_rotate %630 by %c1_i32_124 dim 1 : vector<16x128xf32>, i32 -> vector<16x128xf32>
    %632 = arith.addf %630, %631 : vector<16x128xf32>
    %c2_i32_125 = arith.constant 2 : i32
    %633 = tpu.dynamic_rotate %632 by %c2_i32_125 dim 1 : vector<16x128xf32>, i32 -> vector<16x128xf32>
    %634 = arith.addf %632, %633 : vector<16x128xf32>
    %c4_i32_126 = arith.constant 4 : i32
    %635 = tpu.dynamic_rotate %634 by %c4_i32_126 dim 1 : vector<16x128xf32>, i32 -> vector<16x128xf32>
    %636 = arith.addf %634, %635 : vector<16x128xf32>
    %c8_i32_127 = arith.constant 8 : i32
    %637 = tpu.dynamic_rotate %636 by %c8_i32_127 dim 1 : vector<16x128xf32>, i32 -> vector<16x128xf32>
    %638 = arith.addf %636, %637 : vector<16x128xf32>
    %639 = vector.extract_strided_slice %638 {offsets = [6, 0], sizes = [1, 128], strides = [1, 1]} : vector<16x128xf32> to vector<1x128xf32>
    %640 = tpu.reciprocal %639 {approx = true} : vector<1x128xf32> -> vector<1x128xf32>
    %641 = arith.mulf %639, %640 : vector<1x128xf32>
    %cst_128 = arith.constant 2.000000e+00 : f32
    %642 = vector.broadcast %cst_128 : f32 to vector<1x128xf32>
    %643 = arith.subf %642, %641 : vector<1x128xf32>
    %644 = arith.mulf %640, %643 : vector<1x128xf32>
    %645 = vector.extract_strided_slice %588 {offsets = [6, 0], sizes = [1, 128], strides = [1, 1]} : vector<16x128xf32> to vector<1x128xf32>
    %646 = arith.mulf %645, %644 : vector<1x128xf32>
    %647 = vector.extract_strided_slice %596 {offsets = [6, 0], sizes = [1, 128], strides = [1, 1]} : vector<16x128xf32> to vector<1x128xf32>
    %648 = arith.mulf %647, %644 : vector<1x128xf32>
    %649 = vector.broadcast %621 : vector<1x128xf32> to vector<16x128xf32>
    %650 = arith.mulf %613, %649 : vector<16x128xf32>
    %651 = arith.subf %572, %650 : vector<16x128xf32>
    %652 = vector.shape_cast %598 : vector<16x1xi1> to vector<16x1xi1>
    %653 = vector.broadcast %652 : vector<16x1xi1> to vector<16x128xi1>
    %654 = vector.shape_cast %621 : vector<1x128xf32> to vector<1x128xf32>
    %655 = vector.broadcast %654 : vector<1x128xf32> to vector<16x128xf32>
    %656 = arith.select %653, %655, %651 : vector<16x128xi1>, vector<16x128xf32>
    %657 = vector.broadcast %623 : vector<1x128xf32> to vector<16x128xf32>
    %658 = arith.mulf %613, %657 : vector<16x128xf32>
    %659 = arith.subf %580, %658 : vector<16x128xf32>
    %660 = vector.shape_cast %598 : vector<16x1xi1> to vector<16x1xi1>
    %661 = vector.broadcast %660 : vector<16x1xi1> to vector<16x128xi1>
    %662 = vector.shape_cast %623 : vector<1x128xf32> to vector<1x128xf32>
    %663 = vector.broadcast %662 : vector<1x128xf32> to vector<16x128xf32>
    %664 = arith.select %661, %663, %659 : vector<16x128xi1>, vector<16x128xf32>
    %665 = vector.broadcast %646 : vector<1x128xf32> to vector<16x128xf32>
    %666 = arith.mulf %638, %665 : vector<16x128xf32>
    %667 = arith.subf %588, %666 : vector<16x128xf32>
    %668 = vector.shape_cast %598 : vector<16x1xi1> to vector<16x1xi1>
    %669 = vector.broadcast %668 : vector<16x1xi1> to vector<16x128xi1>
    %670 = vector.shape_cast %646 : vector<1x128xf32> to vector<1x128xf32>
    %671 = vector.broadcast %670 : vector<1x128xf32> to vector<16x128xf32>
    %672 = arith.select %669, %671, %667 : vector<16x128xi1>, vector<16x128xf32>
    %673 = vector.broadcast %648 : vector<1x128xf32> to vector<16x128xf32>
    %674 = arith.mulf %638, %673 : vector<16x128xf32>
    %675 = arith.subf %596, %674 : vector<16x128xf32>
    %676 = vector.shape_cast %598 : vector<16x1xi1> to vector<16x1xi1>
    %677 = vector.broadcast %676 : vector<16x1xi1> to vector<16x128xi1>
    %678 = vector.shape_cast %648 : vector<1x128xf32> to vector<1x128xf32>
    %679 = vector.broadcast %678 : vector<1x128xf32> to vector<16x128xf32>
    %680 = arith.select %677, %679, %675 : vector<16x128xi1>, vector<16x128xf32>
    %c7_i32 = arith.constant 7 : i32
    %681 = vector.broadcast %c7_i32 : i32 to vector<16x1xi32>
    %682 = arith.cmpi eq, %4, %681 : vector<16x1xi32>
    %c7_i32_129 = arith.constant 7 : i32
    %683 = vector.broadcast %c7_i32_129 : i32 to vector<1x128xi32>
    %684 = arith.cmpi eq, %21, %683 : vector<1x128xi32>
    %cst_130 = arith.constant 0.000000e+00 : f32
    %685 = vector.shape_cast %684 : vector<1x128xi1> to vector<1x128xi1>
    %686 = vector.broadcast %685 : vector<1x128xi1> to vector<16x128xi1>
    %687 = vector.broadcast %cst_130 : f32 to vector<16x128xf32>
    %688 = arith.select %686, %656, %687 : vector<16x128xi1>, vector<16x128xf32>
    %c121_i32 = arith.constant 121 : i32
    %689 = tpu.dynamic_rotate %688 by %c121_i32 dim 1 : vector<16x128xf32>, i32 -> vector<16x128xf32>
    %c1_i32_131 = arith.constant 1 : i32
    %690 = tpu.dynamic_rotate %689 by %c1_i32_131 dim 1 : vector<16x128xf32>, i32 -> vector<16x128xf32>
    %691 = arith.addf %689, %690 : vector<16x128xf32>
    %c2_i32_132 = arith.constant 2 : i32
    %692 = tpu.dynamic_rotate %691 by %c2_i32_132 dim 1 : vector<16x128xf32>, i32 -> vector<16x128xf32>
    %693 = arith.addf %691, %692 : vector<16x128xf32>
    %c4_i32_133 = arith.constant 4 : i32
    %694 = tpu.dynamic_rotate %693 by %c4_i32_133 dim 1 : vector<16x128xf32>, i32 -> vector<16x128xf32>
    %695 = arith.addf %693, %694 : vector<16x128xf32>
    %c8_i32_134 = arith.constant 8 : i32
    %696 = tpu.dynamic_rotate %695 by %c8_i32_134 dim 1 : vector<16x128xf32>, i32 -> vector<16x128xf32>
    %697 = arith.addf %695, %696 : vector<16x128xf32>
    %698 = vector.extract_strided_slice %697 {offsets = [7, 0], sizes = [1, 128], strides = [1, 1]} : vector<16x128xf32> to vector<1x128xf32>
    %699 = tpu.reciprocal %698 {approx = true} : vector<1x128xf32> -> vector<1x128xf32>
    %700 = arith.mulf %698, %699 : vector<1x128xf32>
    %cst_135 = arith.constant 2.000000e+00 : f32
    %701 = vector.broadcast %cst_135 : f32 to vector<1x128xf32>
    %702 = arith.subf %701, %700 : vector<1x128xf32>
    %703 = arith.mulf %699, %702 : vector<1x128xf32>
    %704 = vector.extract_strided_slice %656 {offsets = [7, 0], sizes = [1, 128], strides = [1, 1]} : vector<16x128xf32> to vector<1x128xf32>
    %705 = arith.mulf %704, %703 : vector<1x128xf32>
    %706 = vector.extract_strided_slice %664 {offsets = [7, 0], sizes = [1, 128], strides = [1, 1]} : vector<16x128xf32> to vector<1x128xf32>
    %707 = arith.mulf %706, %703 : vector<1x128xf32>
    %c7_i32_136 = arith.constant 7 : i32
    %708 = vector.broadcast %c7_i32_136 : i32 to vector<1x128xi32>
    %709 = arith.cmpi eq, %21, %708 : vector<1x128xi32>
    %cst_137 = arith.constant 0.000000e+00 : f32
    %710 = vector.shape_cast %709 : vector<1x128xi1> to vector<1x128xi1>
    %711 = vector.broadcast %710 : vector<1x128xi1> to vector<16x128xi1>
    %712 = vector.broadcast %cst_137 : f32 to vector<16x128xf32>
    %713 = arith.select %711, %672, %712 : vector<16x128xi1>, vector<16x128xf32>
    %c121_i32_138 = arith.constant 121 : i32
    %714 = tpu.dynamic_rotate %713 by %c121_i32_138 dim 1 : vector<16x128xf32>, i32 -> vector<16x128xf32>
    %c1_i32_139 = arith.constant 1 : i32
    %715 = tpu.dynamic_rotate %714 by %c1_i32_139 dim 1 : vector<16x128xf32>, i32 -> vector<16x128xf32>
    %716 = arith.addf %714, %715 : vector<16x128xf32>
    %c2_i32_140 = arith.constant 2 : i32
    %717 = tpu.dynamic_rotate %716 by %c2_i32_140 dim 1 : vector<16x128xf32>, i32 -> vector<16x128xf32>
    %718 = arith.addf %716, %717 : vector<16x128xf32>
    %c4_i32_141 = arith.constant 4 : i32
    %719 = tpu.dynamic_rotate %718 by %c4_i32_141 dim 1 : vector<16x128xf32>, i32 -> vector<16x128xf32>
    %720 = arith.addf %718, %719 : vector<16x128xf32>
    %c8_i32_142 = arith.constant 8 : i32
    %721 = tpu.dynamic_rotate %720 by %c8_i32_142 dim 1 : vector<16x128xf32>, i32 -> vector<16x128xf32>
    %722 = arith.addf %720, %721 : vector<16x128xf32>
    %723 = vector.extract_strided_slice %722 {offsets = [7, 0], sizes = [1, 128], strides = [1, 1]} : vector<16x128xf32> to vector<1x128xf32>
    %724 = tpu.reciprocal %723 {approx = true} : vector<1x128xf32> -> vector<1x128xf32>
    %725 = arith.mulf %723, %724 : vector<1x128xf32>
    %cst_143 = arith.constant 2.000000e+00 : f32
    %726 = vector.broadcast %cst_143 : f32 to vector<1x128xf32>
    %727 = arith.subf %726, %725 : vector<1x128xf32>
    %728 = arith.mulf %724, %727 : vector<1x128xf32>
    %729 = vector.extract_strided_slice %672 {offsets = [7, 0], sizes = [1, 128], strides = [1, 1]} : vector<16x128xf32> to vector<1x128xf32>
    %730 = arith.mulf %729, %728 : vector<1x128xf32>
    %731 = vector.extract_strided_slice %680 {offsets = [7, 0], sizes = [1, 128], strides = [1, 1]} : vector<16x128xf32> to vector<1x128xf32>
    %732 = arith.mulf %731, %728 : vector<1x128xf32>
    %733 = vector.broadcast %705 : vector<1x128xf32> to vector<16x128xf32>
    %734 = arith.mulf %697, %733 : vector<16x128xf32>
    %735 = arith.subf %656, %734 : vector<16x128xf32>
    %736 = vector.shape_cast %682 : vector<16x1xi1> to vector<16x1xi1>
    %737 = vector.broadcast %736 : vector<16x1xi1> to vector<16x128xi1>
    %738 = vector.shape_cast %705 : vector<1x128xf32> to vector<1x128xf32>
    %739 = vector.broadcast %738 : vector<1x128xf32> to vector<16x128xf32>
    %740 = arith.select %737, %739, %735 : vector<16x128xi1>, vector<16x128xf32>
    %741 = vector.broadcast %707 : vector<1x128xf32> to vector<16x128xf32>
    %742 = arith.mulf %697, %741 : vector<16x128xf32>
    %743 = arith.subf %664, %742 : vector<16x128xf32>
    %744 = vector.shape_cast %682 : vector<16x1xi1> to vector<16x1xi1>
    %745 = vector.broadcast %744 : vector<16x1xi1> to vector<16x128xi1>
    %746 = vector.shape_cast %707 : vector<1x128xf32> to vector<1x128xf32>
    %747 = vector.broadcast %746 : vector<1x128xf32> to vector<16x128xf32>
    %748 = arith.select %745, %747, %743 : vector<16x128xi1>, vector<16x128xf32>
    %749 = vector.broadcast %730 : vector<1x128xf32> to vector<16x128xf32>
    %750 = arith.mulf %722, %749 : vector<16x128xf32>
    %751 = arith.subf %672, %750 : vector<16x128xf32>
    %752 = vector.shape_cast %682 : vector<16x1xi1> to vector<16x1xi1>
    %753 = vector.broadcast %752 : vector<16x1xi1> to vector<16x128xi1>
    %754 = vector.shape_cast %730 : vector<1x128xf32> to vector<1x128xf32>
    %755 = vector.broadcast %754 : vector<1x128xf32> to vector<16x128xf32>
    %756 = arith.select %753, %755, %751 : vector<16x128xi1>, vector<16x128xf32>
    %757 = vector.broadcast %732 : vector<1x128xf32> to vector<16x128xf32>
    %758 = arith.mulf %722, %757 : vector<16x128xf32>
    %759 = arith.subf %680, %758 : vector<16x128xf32>
    %760 = vector.shape_cast %682 : vector<16x1xi1> to vector<16x1xi1>
    %761 = vector.broadcast %760 : vector<16x1xi1> to vector<16x128xi1>
    %762 = vector.shape_cast %732 : vector<1x128xf32> to vector<1x128xf32>
    %763 = vector.broadcast %762 : vector<1x128xf32> to vector<16x128xf32>
    %764 = arith.select %761, %763, %759 : vector<16x128xi1>, vector<16x128xf32>
    %c8_i32_144 = arith.constant 8 : i32
    %765 = vector.broadcast %c8_i32_144 : i32 to vector<16x1xi32>
    %766 = arith.cmpi eq, %4, %765 : vector<16x1xi32>
    %c8_i32_145 = arith.constant 8 : i32
    %767 = vector.broadcast %c8_i32_145 : i32 to vector<1x128xi32>
    %768 = arith.cmpi eq, %21, %767 : vector<1x128xi32>
    %cst_146 = arith.constant 0.000000e+00 : f32
    %769 = vector.shape_cast %768 : vector<1x128xi1> to vector<1x128xi1>
    %770 = vector.broadcast %769 : vector<1x128xi1> to vector<16x128xi1>
    %771 = vector.broadcast %cst_146 : f32 to vector<16x128xf32>
    %772 = arith.select %770, %740, %771 : vector<16x128xi1>, vector<16x128xf32>
    %c120_i32 = arith.constant 120 : i32
    %773 = tpu.dynamic_rotate %772 by %c120_i32 dim 1 : vector<16x128xf32>, i32 -> vector<16x128xf32>
    %c1_i32_147 = arith.constant 1 : i32
    %774 = tpu.dynamic_rotate %773 by %c1_i32_147 dim 1 : vector<16x128xf32>, i32 -> vector<16x128xf32>
    %775 = arith.addf %773, %774 : vector<16x128xf32>
    %c2_i32_148 = arith.constant 2 : i32
    %776 = tpu.dynamic_rotate %775 by %c2_i32_148 dim 1 : vector<16x128xf32>, i32 -> vector<16x128xf32>
    %777 = arith.addf %775, %776 : vector<16x128xf32>
    %c4_i32_149 = arith.constant 4 : i32
    %778 = tpu.dynamic_rotate %777 by %c4_i32_149 dim 1 : vector<16x128xf32>, i32 -> vector<16x128xf32>
    %779 = arith.addf %777, %778 : vector<16x128xf32>
    %c8_i32_150 = arith.constant 8 : i32
    %780 = tpu.dynamic_rotate %779 by %c8_i32_150 dim 1 : vector<16x128xf32>, i32 -> vector<16x128xf32>
    %781 = arith.addf %779, %780 : vector<16x128xf32>
    %782 = vector.extract_strided_slice %781 {offsets = [8, 0], sizes = [1, 128], strides = [1, 1]} : vector<16x128xf32> to vector<1x128xf32>
    %783 = tpu.reciprocal %782 {approx = true} : vector<1x128xf32> -> vector<1x128xf32>
    %784 = arith.mulf %782, %783 : vector<1x128xf32>
    %cst_151 = arith.constant 2.000000e+00 : f32
    %785 = vector.broadcast %cst_151 : f32 to vector<1x128xf32>
    %786 = arith.subf %785, %784 : vector<1x128xf32>
    %787 = arith.mulf %783, %786 : vector<1x128xf32>
    %788 = vector.extract_strided_slice %740 {offsets = [8, 0], sizes = [1, 128], strides = [1, 1]} : vector<16x128xf32> to vector<1x128xf32>
    %789 = arith.mulf %788, %787 : vector<1x128xf32>
    %790 = vector.extract_strided_slice %748 {offsets = [8, 0], sizes = [1, 128], strides = [1, 1]} : vector<16x128xf32> to vector<1x128xf32>
    %791 = arith.mulf %790, %787 : vector<1x128xf32>
    %c8_i32_152 = arith.constant 8 : i32
    %792 = vector.broadcast %c8_i32_152 : i32 to vector<1x128xi32>
    %793 = arith.cmpi eq, %21, %792 : vector<1x128xi32>
    %cst_153 = arith.constant 0.000000e+00 : f32
    %794 = vector.shape_cast %793 : vector<1x128xi1> to vector<1x128xi1>
    %795 = vector.broadcast %794 : vector<1x128xi1> to vector<16x128xi1>
    %796 = vector.broadcast %cst_153 : f32 to vector<16x128xf32>
    %797 = arith.select %795, %756, %796 : vector<16x128xi1>, vector<16x128xf32>
    %c120_i32_154 = arith.constant 120 : i32
    %798 = tpu.dynamic_rotate %797 by %c120_i32_154 dim 1 : vector<16x128xf32>, i32 -> vector<16x128xf32>
    %c1_i32_155 = arith.constant 1 : i32
    %799 = tpu.dynamic_rotate %798 by %c1_i32_155 dim 1 : vector<16x128xf32>, i32 -> vector<16x128xf32>
    %800 = arith.addf %798, %799 : vector<16x128xf32>
    %c2_i32_156 = arith.constant 2 : i32
    %801 = tpu.dynamic_rotate %800 by %c2_i32_156 dim 1 : vector<16x128xf32>, i32 -> vector<16x128xf32>
    %802 = arith.addf %800, %801 : vector<16x128xf32>
    %c4_i32_157 = arith.constant 4 : i32
    %803 = tpu.dynamic_rotate %802 by %c4_i32_157 dim 1 : vector<16x128xf32>, i32 -> vector<16x128xf32>
    %804 = arith.addf %802, %803 : vector<16x128xf32>
    %c8_i32_158 = arith.constant 8 : i32
    %805 = tpu.dynamic_rotate %804 by %c8_i32_158 dim 1 : vector<16x128xf32>, i32 -> vector<16x128xf32>
    %806 = arith.addf %804, %805 : vector<16x128xf32>
    %807 = vector.extract_strided_slice %806 {offsets = [8, 0], sizes = [1, 128], strides = [1, 1]} : vector<16x128xf32> to vector<1x128xf32>
    %808 = tpu.reciprocal %807 {approx = true} : vector<1x128xf32> -> vector<1x128xf32>
    %809 = arith.mulf %807, %808 : vector<1x128xf32>
    %cst_159 = arith.constant 2.000000e+00 : f32
    %810 = vector.broadcast %cst_159 : f32 to vector<1x128xf32>
    %811 = arith.subf %810, %809 : vector<1x128xf32>
    %812 = arith.mulf %808, %811 : vector<1x128xf32>
    %813 = vector.extract_strided_slice %756 {offsets = [8, 0], sizes = [1, 128], strides = [1, 1]} : vector<16x128xf32> to vector<1x128xf32>
    %814 = arith.mulf %813, %812 : vector<1x128xf32>
    %815 = vector.extract_strided_slice %764 {offsets = [8, 0], sizes = [1, 128], strides = [1, 1]} : vector<16x128xf32> to vector<1x128xf32>
    %816 = arith.mulf %815, %812 : vector<1x128xf32>
    %817 = vector.broadcast %789 : vector<1x128xf32> to vector<16x128xf32>
    %818 = arith.mulf %781, %817 : vector<16x128xf32>
    %819 = arith.subf %740, %818 : vector<16x128xf32>
    %820 = vector.shape_cast %766 : vector<16x1xi1> to vector<16x1xi1>
    %821 = vector.broadcast %820 : vector<16x1xi1> to vector<16x128xi1>
    %822 = vector.shape_cast %789 : vector<1x128xf32> to vector<1x128xf32>
    %823 = vector.broadcast %822 : vector<1x128xf32> to vector<16x128xf32>
    %824 = arith.select %821, %823, %819 : vector<16x128xi1>, vector<16x128xf32>
    %825 = vector.broadcast %791 : vector<1x128xf32> to vector<16x128xf32>
    %826 = arith.mulf %781, %825 : vector<16x128xf32>
    %827 = arith.subf %748, %826 : vector<16x128xf32>
    %828 = vector.shape_cast %766 : vector<16x1xi1> to vector<16x1xi1>
    %829 = vector.broadcast %828 : vector<16x1xi1> to vector<16x128xi1>
    %830 = vector.shape_cast %791 : vector<1x128xf32> to vector<1x128xf32>
    %831 = vector.broadcast %830 : vector<1x128xf32> to vector<16x128xf32>
    %832 = arith.select %829, %831, %827 : vector<16x128xi1>, vector<16x128xf32>
    %833 = vector.broadcast %814 : vector<1x128xf32> to vector<16x128xf32>
    %834 = arith.mulf %806, %833 : vector<16x128xf32>
    %835 = arith.subf %756, %834 : vector<16x128xf32>
    %836 = vector.shape_cast %766 : vector<16x1xi1> to vector<16x1xi1>
    %837 = vector.broadcast %836 : vector<16x1xi1> to vector<16x128xi1>
    %838 = vector.shape_cast %814 : vector<1x128xf32> to vector<1x128xf32>
    %839 = vector.broadcast %838 : vector<1x128xf32> to vector<16x128xf32>
    %840 = arith.select %837, %839, %835 : vector<16x128xi1>, vector<16x128xf32>
    %841 = vector.broadcast %816 : vector<1x128xf32> to vector<16x128xf32>
    %842 = arith.mulf %806, %841 : vector<16x128xf32>
    %843 = arith.subf %764, %842 : vector<16x128xf32>
    %844 = vector.shape_cast %766 : vector<16x1xi1> to vector<16x1xi1>
    %845 = vector.broadcast %844 : vector<16x1xi1> to vector<16x128xi1>
    %846 = vector.shape_cast %816 : vector<1x128xf32> to vector<1x128xf32>
    %847 = vector.broadcast %846 : vector<1x128xf32> to vector<16x128xf32>
    %848 = arith.select %845, %847, %843 : vector<16x128xi1>, vector<16x128xf32>
    %c9_i32 = arith.constant 9 : i32
    %849 = vector.broadcast %c9_i32 : i32 to vector<16x1xi32>
    %850 = arith.cmpi eq, %4, %849 : vector<16x1xi32>
    %c9_i32_160 = arith.constant 9 : i32
    %851 = vector.broadcast %c9_i32_160 : i32 to vector<1x128xi32>
    %852 = arith.cmpi eq, %21, %851 : vector<1x128xi32>
    %cst_161 = arith.constant 0.000000e+00 : f32
    %853 = vector.shape_cast %852 : vector<1x128xi1> to vector<1x128xi1>
    %854 = vector.broadcast %853 : vector<1x128xi1> to vector<16x128xi1>
    %855 = vector.broadcast %cst_161 : f32 to vector<16x128xf32>
    %856 = arith.select %854, %824, %855 : vector<16x128xi1>, vector<16x128xf32>
    %c119_i32 = arith.constant 119 : i32
    %857 = tpu.dynamic_rotate %856 by %c119_i32 dim 1 : vector<16x128xf32>, i32 -> vector<16x128xf32>
    %c1_i32_162 = arith.constant 1 : i32
    %858 = tpu.dynamic_rotate %857 by %c1_i32_162 dim 1 : vector<16x128xf32>, i32 -> vector<16x128xf32>
    %859 = arith.addf %857, %858 : vector<16x128xf32>
    %c2_i32_163 = arith.constant 2 : i32
    %860 = tpu.dynamic_rotate %859 by %c2_i32_163 dim 1 : vector<16x128xf32>, i32 -> vector<16x128xf32>
    %861 = arith.addf %859, %860 : vector<16x128xf32>
    %c4_i32_164 = arith.constant 4 : i32
    %862 = tpu.dynamic_rotate %861 by %c4_i32_164 dim 1 : vector<16x128xf32>, i32 -> vector<16x128xf32>
    %863 = arith.addf %861, %862 : vector<16x128xf32>
    %c8_i32_165 = arith.constant 8 : i32
    %864 = tpu.dynamic_rotate %863 by %c8_i32_165 dim 1 : vector<16x128xf32>, i32 -> vector<16x128xf32>
    %865 = arith.addf %863, %864 : vector<16x128xf32>
    %866 = vector.extract_strided_slice %865 {offsets = [9, 0], sizes = [1, 128], strides = [1, 1]} : vector<16x128xf32> to vector<1x128xf32>
    %867 = tpu.reciprocal %866 {approx = true} : vector<1x128xf32> -> vector<1x128xf32>
    %868 = arith.mulf %866, %867 : vector<1x128xf32>
    %cst_166 = arith.constant 2.000000e+00 : f32
    %869 = vector.broadcast %cst_166 : f32 to vector<1x128xf32>
    %870 = arith.subf %869, %868 : vector<1x128xf32>
    %871 = arith.mulf %867, %870 : vector<1x128xf32>
    %872 = vector.extract_strided_slice %824 {offsets = [9, 0], sizes = [1, 128], strides = [1, 1]} : vector<16x128xf32> to vector<1x128xf32>
    %873 = arith.mulf %872, %871 : vector<1x128xf32>
    %874 = vector.extract_strided_slice %832 {offsets = [9, 0], sizes = [1, 128], strides = [1, 1]} : vector<16x128xf32> to vector<1x128xf32>
    %875 = arith.mulf %874, %871 : vector<1x128xf32>
    %c9_i32_167 = arith.constant 9 : i32
    %876 = vector.broadcast %c9_i32_167 : i32 to vector<1x128xi32>
    %877 = arith.cmpi eq, %21, %876 : vector<1x128xi32>
    %cst_168 = arith.constant 0.000000e+00 : f32
    %878 = vector.shape_cast %877 : vector<1x128xi1> to vector<1x128xi1>
    %879 = vector.broadcast %878 : vector<1x128xi1> to vector<16x128xi1>
    %880 = vector.broadcast %cst_168 : f32 to vector<16x128xf32>
    %881 = arith.select %879, %840, %880 : vector<16x128xi1>, vector<16x128xf32>
    %c119_i32_169 = arith.constant 119 : i32
    %882 = tpu.dynamic_rotate %881 by %c119_i32_169 dim 1 : vector<16x128xf32>, i32 -> vector<16x128xf32>
    %c1_i32_170 = arith.constant 1 : i32
    %883 = tpu.dynamic_rotate %882 by %c1_i32_170 dim 1 : vector<16x128xf32>, i32 -> vector<16x128xf32>
    %884 = arith.addf %882, %883 : vector<16x128xf32>
    %c2_i32_171 = arith.constant 2 : i32
    %885 = tpu.dynamic_rotate %884 by %c2_i32_171 dim 1 : vector<16x128xf32>, i32 -> vector<16x128xf32>
    %886 = arith.addf %884, %885 : vector<16x128xf32>
    %c4_i32_172 = arith.constant 4 : i32
    %887 = tpu.dynamic_rotate %886 by %c4_i32_172 dim 1 : vector<16x128xf32>, i32 -> vector<16x128xf32>
    %888 = arith.addf %886, %887 : vector<16x128xf32>
    %c8_i32_173 = arith.constant 8 : i32
    %889 = tpu.dynamic_rotate %888 by %c8_i32_173 dim 1 : vector<16x128xf32>, i32 -> vector<16x128xf32>
    %890 = arith.addf %888, %889 : vector<16x128xf32>
    %891 = vector.extract_strided_slice %890 {offsets = [9, 0], sizes = [1, 128], strides = [1, 1]} : vector<16x128xf32> to vector<1x128xf32>
    %892 = tpu.reciprocal %891 {approx = true} : vector<1x128xf32> -> vector<1x128xf32>
    %893 = arith.mulf %891, %892 : vector<1x128xf32>
    %cst_174 = arith.constant 2.000000e+00 : f32
    %894 = vector.broadcast %cst_174 : f32 to vector<1x128xf32>
    %895 = arith.subf %894, %893 : vector<1x128xf32>
    %896 = arith.mulf %892, %895 : vector<1x128xf32>
    %897 = vector.extract_strided_slice %840 {offsets = [9, 0], sizes = [1, 128], strides = [1, 1]} : vector<16x128xf32> to vector<1x128xf32>
    %898 = arith.mulf %897, %896 : vector<1x128xf32>
    %899 = vector.extract_strided_slice %848 {offsets = [9, 0], sizes = [1, 128], strides = [1, 1]} : vector<16x128xf32> to vector<1x128xf32>
    %900 = arith.mulf %899, %896 : vector<1x128xf32>
    %901 = vector.broadcast %873 : vector<1x128xf32> to vector<16x128xf32>
    %902 = arith.mulf %865, %901 : vector<16x128xf32>
    %903 = arith.subf %824, %902 : vector<16x128xf32>
    %904 = vector.shape_cast %850 : vector<16x1xi1> to vector<16x1xi1>
    %905 = vector.broadcast %904 : vector<16x1xi1> to vector<16x128xi1>
    %906 = vector.shape_cast %873 : vector<1x128xf32> to vector<1x128xf32>
    %907 = vector.broadcast %906 : vector<1x128xf32> to vector<16x128xf32>
    %908 = arith.select %905, %907, %903 : vector<16x128xi1>, vector<16x128xf32>
    %909 = vector.broadcast %875 : vector<1x128xf32> to vector<16x128xf32>
    %910 = arith.mulf %865, %909 : vector<16x128xf32>
    %911 = arith.subf %832, %910 : vector<16x128xf32>
    %912 = vector.shape_cast %850 : vector<16x1xi1> to vector<16x1xi1>
    %913 = vector.broadcast %912 : vector<16x1xi1> to vector<16x128xi1>
    %914 = vector.shape_cast %875 : vector<1x128xf32> to vector<1x128xf32>
    %915 = vector.broadcast %914 : vector<1x128xf32> to vector<16x128xf32>
    %916 = arith.select %913, %915, %911 : vector<16x128xi1>, vector<16x128xf32>
    %917 = vector.broadcast %898 : vector<1x128xf32> to vector<16x128xf32>
    %918 = arith.mulf %890, %917 : vector<16x128xf32>
    %919 = arith.subf %840, %918 : vector<16x128xf32>
    %920 = vector.shape_cast %850 : vector<16x1xi1> to vector<16x1xi1>
    %921 = vector.broadcast %920 : vector<16x1xi1> to vector<16x128xi1>
    %922 = vector.shape_cast %898 : vector<1x128xf32> to vector<1x128xf32>
    %923 = vector.broadcast %922 : vector<1x128xf32> to vector<16x128xf32>
    %924 = arith.select %921, %923, %919 : vector<16x128xi1>, vector<16x128xf32>
    %925 = vector.broadcast %900 : vector<1x128xf32> to vector<16x128xf32>
    %926 = arith.mulf %890, %925 : vector<16x128xf32>
    %927 = arith.subf %848, %926 : vector<16x128xf32>
    %928 = vector.shape_cast %850 : vector<16x1xi1> to vector<16x1xi1>
    %929 = vector.broadcast %928 : vector<16x1xi1> to vector<16x128xi1>
    %930 = vector.shape_cast %900 : vector<1x128xf32> to vector<1x128xf32>
    %931 = vector.broadcast %930 : vector<1x128xf32> to vector<16x128xf32>
    %932 = arith.select %929, %931, %927 : vector<16x128xi1>, vector<16x128xf32>
    %c10_i32 = arith.constant 10 : i32
    %933 = vector.broadcast %c10_i32 : i32 to vector<16x1xi32>
    %934 = arith.cmpi eq, %4, %933 : vector<16x1xi32>
    %c10_i32_175 = arith.constant 10 : i32
    %935 = vector.broadcast %c10_i32_175 : i32 to vector<1x128xi32>
    %936 = arith.cmpi eq, %21, %935 : vector<1x128xi32>
    %cst_176 = arith.constant 0.000000e+00 : f32
    %937 = vector.shape_cast %936 : vector<1x128xi1> to vector<1x128xi1>
    %938 = vector.broadcast %937 : vector<1x128xi1> to vector<16x128xi1>
    %939 = vector.broadcast %cst_176 : f32 to vector<16x128xf32>
    %940 = arith.select %938, %908, %939 : vector<16x128xi1>, vector<16x128xf32>
    %c118_i32 = arith.constant 118 : i32
    %941 = tpu.dynamic_rotate %940 by %c118_i32 dim 1 : vector<16x128xf32>, i32 -> vector<16x128xf32>
    %c1_i32_177 = arith.constant 1 : i32
    %942 = tpu.dynamic_rotate %941 by %c1_i32_177 dim 1 : vector<16x128xf32>, i32 -> vector<16x128xf32>
    %943 = arith.addf %941, %942 : vector<16x128xf32>
    %c2_i32_178 = arith.constant 2 : i32
    %944 = tpu.dynamic_rotate %943 by %c2_i32_178 dim 1 : vector<16x128xf32>, i32 -> vector<16x128xf32>
    %945 = arith.addf %943, %944 : vector<16x128xf32>
    %c4_i32_179 = arith.constant 4 : i32
    %946 = tpu.dynamic_rotate %945 by %c4_i32_179 dim 1 : vector<16x128xf32>, i32 -> vector<16x128xf32>
    %947 = arith.addf %945, %946 : vector<16x128xf32>
    %c8_i32_180 = arith.constant 8 : i32
    %948 = tpu.dynamic_rotate %947 by %c8_i32_180 dim 1 : vector<16x128xf32>, i32 -> vector<16x128xf32>
    %949 = arith.addf %947, %948 : vector<16x128xf32>
    %950 = vector.extract_strided_slice %949 {offsets = [10, 0], sizes = [1, 128], strides = [1, 1]} : vector<16x128xf32> to vector<1x128xf32>
    %951 = tpu.reciprocal %950 {approx = true} : vector<1x128xf32> -> vector<1x128xf32>
    %952 = arith.mulf %950, %951 : vector<1x128xf32>
    %cst_181 = arith.constant 2.000000e+00 : f32
    %953 = vector.broadcast %cst_181 : f32 to vector<1x128xf32>
    %954 = arith.subf %953, %952 : vector<1x128xf32>
    %955 = arith.mulf %951, %954 : vector<1x128xf32>
    %956 = vector.extract_strided_slice %908 {offsets = [10, 0], sizes = [1, 128], strides = [1, 1]} : vector<16x128xf32> to vector<1x128xf32>
    %957 = arith.mulf %956, %955 : vector<1x128xf32>
    %958 = vector.extract_strided_slice %916 {offsets = [10, 0], sizes = [1, 128], strides = [1, 1]} : vector<16x128xf32> to vector<1x128xf32>
    %959 = arith.mulf %958, %955 : vector<1x128xf32>
    %c10_i32_182 = arith.constant 10 : i32
    %960 = vector.broadcast %c10_i32_182 : i32 to vector<1x128xi32>
    %961 = arith.cmpi eq, %21, %960 : vector<1x128xi32>
    %cst_183 = arith.constant 0.000000e+00 : f32
    %962 = vector.shape_cast %961 : vector<1x128xi1> to vector<1x128xi1>
    %963 = vector.broadcast %962 : vector<1x128xi1> to vector<16x128xi1>
    %964 = vector.broadcast %cst_183 : f32 to vector<16x128xf32>
    %965 = arith.select %963, %924, %964 : vector<16x128xi1>, vector<16x128xf32>
    %c118_i32_184 = arith.constant 118 : i32
    %966 = tpu.dynamic_rotate %965 by %c118_i32_184 dim 1 : vector<16x128xf32>, i32 -> vector<16x128xf32>
    %c1_i32_185 = arith.constant 1 : i32
    %967 = tpu.dynamic_rotate %966 by %c1_i32_185 dim 1 : vector<16x128xf32>, i32 -> vector<16x128xf32>
    %968 = arith.addf %966, %967 : vector<16x128xf32>
    %c2_i32_186 = arith.constant 2 : i32
    %969 = tpu.dynamic_rotate %968 by %c2_i32_186 dim 1 : vector<16x128xf32>, i32 -> vector<16x128xf32>
    %970 = arith.addf %968, %969 : vector<16x128xf32>
    %c4_i32_187 = arith.constant 4 : i32
    %971 = tpu.dynamic_rotate %970 by %c4_i32_187 dim 1 : vector<16x128xf32>, i32 -> vector<16x128xf32>
    %972 = arith.addf %970, %971 : vector<16x128xf32>
    %c8_i32_188 = arith.constant 8 : i32
    %973 = tpu.dynamic_rotate %972 by %c8_i32_188 dim 1 : vector<16x128xf32>, i32 -> vector<16x128xf32>
    %974 = arith.addf %972, %973 : vector<16x128xf32>
    %975 = vector.extract_strided_slice %974 {offsets = [10, 0], sizes = [1, 128], strides = [1, 1]} : vector<16x128xf32> to vector<1x128xf32>
    %976 = tpu.reciprocal %975 {approx = true} : vector<1x128xf32> -> vector<1x128xf32>
    %977 = arith.mulf %975, %976 : vector<1x128xf32>
    %cst_189 = arith.constant 2.000000e+00 : f32
    %978 = vector.broadcast %cst_189 : f32 to vector<1x128xf32>
    %979 = arith.subf %978, %977 : vector<1x128xf32>
    %980 = arith.mulf %976, %979 : vector<1x128xf32>
    %981 = vector.extract_strided_slice %924 {offsets = [10, 0], sizes = [1, 128], strides = [1, 1]} : vector<16x128xf32> to vector<1x128xf32>
    %982 = arith.mulf %981, %980 : vector<1x128xf32>
    %983 = vector.extract_strided_slice %932 {offsets = [10, 0], sizes = [1, 128], strides = [1, 1]} : vector<16x128xf32> to vector<1x128xf32>
    %984 = arith.mulf %983, %980 : vector<1x128xf32>
    %985 = vector.broadcast %957 : vector<1x128xf32> to vector<16x128xf32>
    %986 = arith.mulf %949, %985 : vector<16x128xf32>
    %987 = arith.subf %908, %986 : vector<16x128xf32>
    %988 = vector.shape_cast %934 : vector<16x1xi1> to vector<16x1xi1>
    %989 = vector.broadcast %988 : vector<16x1xi1> to vector<16x128xi1>
    %990 = vector.shape_cast %957 : vector<1x128xf32> to vector<1x128xf32>
    %991 = vector.broadcast %990 : vector<1x128xf32> to vector<16x128xf32>
    %992 = arith.select %989, %991, %987 : vector<16x128xi1>, vector<16x128xf32>
    %993 = vector.broadcast %959 : vector<1x128xf32> to vector<16x128xf32>
    %994 = arith.mulf %949, %993 : vector<16x128xf32>
    %995 = arith.subf %916, %994 : vector<16x128xf32>
    %996 = vector.shape_cast %934 : vector<16x1xi1> to vector<16x1xi1>
    %997 = vector.broadcast %996 : vector<16x1xi1> to vector<16x128xi1>
    %998 = vector.shape_cast %959 : vector<1x128xf32> to vector<1x128xf32>
    %999 = vector.broadcast %998 : vector<1x128xf32> to vector<16x128xf32>
    %1000 = arith.select %997, %999, %995 : vector<16x128xi1>, vector<16x128xf32>
    %1001 = vector.broadcast %982 : vector<1x128xf32> to vector<16x128xf32>
    %1002 = arith.mulf %974, %1001 : vector<16x128xf32>
    %1003 = arith.subf %924, %1002 : vector<16x128xf32>
    %1004 = vector.shape_cast %934 : vector<16x1xi1> to vector<16x1xi1>
    %1005 = vector.broadcast %1004 : vector<16x1xi1> to vector<16x128xi1>
    %1006 = vector.shape_cast %982 : vector<1x128xf32> to vector<1x128xf32>
    %1007 = vector.broadcast %1006 : vector<1x128xf32> to vector<16x128xf32>
    %1008 = arith.select %1005, %1007, %1003 : vector<16x128xi1>, vector<16x128xf32>
    %1009 = vector.broadcast %984 : vector<1x128xf32> to vector<16x128xf32>
    %1010 = arith.mulf %974, %1009 : vector<16x128xf32>
    %1011 = arith.subf %932, %1010 : vector<16x128xf32>
    %1012 = vector.shape_cast %934 : vector<16x1xi1> to vector<16x1xi1>
    %1013 = vector.broadcast %1012 : vector<16x1xi1> to vector<16x128xi1>
    %1014 = vector.shape_cast %984 : vector<1x128xf32> to vector<1x128xf32>
    %1015 = vector.broadcast %1014 : vector<1x128xf32> to vector<16x128xf32>
    %1016 = arith.select %1013, %1015, %1011 : vector<16x128xi1>, vector<16x128xf32>
    %c11_i32 = arith.constant 11 : i32
    %1017 = vector.broadcast %c11_i32 : i32 to vector<16x1xi32>
    %1018 = arith.cmpi eq, %4, %1017 : vector<16x1xi32>
    %c11_i32_190 = arith.constant 11 : i32
    %1019 = vector.broadcast %c11_i32_190 : i32 to vector<1x128xi32>
    %1020 = arith.cmpi eq, %21, %1019 : vector<1x128xi32>
    %cst_191 = arith.constant 0.000000e+00 : f32
    %1021 = vector.shape_cast %1020 : vector<1x128xi1> to vector<1x128xi1>
    %1022 = vector.broadcast %1021 : vector<1x128xi1> to vector<16x128xi1>
    %1023 = vector.broadcast %cst_191 : f32 to vector<16x128xf32>
    %1024 = arith.select %1022, %992, %1023 : vector<16x128xi1>, vector<16x128xf32>
    %c117_i32 = arith.constant 117 : i32
    %1025 = tpu.dynamic_rotate %1024 by %c117_i32 dim 1 : vector<16x128xf32>, i32 -> vector<16x128xf32>
    %c1_i32_192 = arith.constant 1 : i32
    %1026 = tpu.dynamic_rotate %1025 by %c1_i32_192 dim 1 : vector<16x128xf32>, i32 -> vector<16x128xf32>
    %1027 = arith.addf %1025, %1026 : vector<16x128xf32>
    %c2_i32_193 = arith.constant 2 : i32
    %1028 = tpu.dynamic_rotate %1027 by %c2_i32_193 dim 1 : vector<16x128xf32>, i32 -> vector<16x128xf32>
    %1029 = arith.addf %1027, %1028 : vector<16x128xf32>
    %c4_i32_194 = arith.constant 4 : i32
    %1030 = tpu.dynamic_rotate %1029 by %c4_i32_194 dim 1 : vector<16x128xf32>, i32 -> vector<16x128xf32>
    %1031 = arith.addf %1029, %1030 : vector<16x128xf32>
    %c8_i32_195 = arith.constant 8 : i32
    %1032 = tpu.dynamic_rotate %1031 by %c8_i32_195 dim 1 : vector<16x128xf32>, i32 -> vector<16x128xf32>
    %1033 = arith.addf %1031, %1032 : vector<16x128xf32>
    %1034 = vector.extract_strided_slice %1033 {offsets = [11, 0], sizes = [1, 128], strides = [1, 1]} : vector<16x128xf32> to vector<1x128xf32>
    %1035 = tpu.reciprocal %1034 {approx = true} : vector<1x128xf32> -> vector<1x128xf32>
    %1036 = arith.mulf %1034, %1035 : vector<1x128xf32>
    %cst_196 = arith.constant 2.000000e+00 : f32
    %1037 = vector.broadcast %cst_196 : f32 to vector<1x128xf32>
    %1038 = arith.subf %1037, %1036 : vector<1x128xf32>
    %1039 = arith.mulf %1035, %1038 : vector<1x128xf32>
    %1040 = vector.extract_strided_slice %992 {offsets = [11, 0], sizes = [1, 128], strides = [1, 1]} : vector<16x128xf32> to vector<1x128xf32>
    %1041 = arith.mulf %1040, %1039 : vector<1x128xf32>
    %1042 = vector.extract_strided_slice %1000 {offsets = [11, 0], sizes = [1, 128], strides = [1, 1]} : vector<16x128xf32> to vector<1x128xf32>
    %1043 = arith.mulf %1042, %1039 : vector<1x128xf32>
    %c11_i32_197 = arith.constant 11 : i32
    %1044 = vector.broadcast %c11_i32_197 : i32 to vector<1x128xi32>
    %1045 = arith.cmpi eq, %21, %1044 : vector<1x128xi32>
    %cst_198 = arith.constant 0.000000e+00 : f32
    %1046 = vector.shape_cast %1045 : vector<1x128xi1> to vector<1x128xi1>
    %1047 = vector.broadcast %1046 : vector<1x128xi1> to vector<16x128xi1>
    %1048 = vector.broadcast %cst_198 : f32 to vector<16x128xf32>
    %1049 = arith.select %1047, %1008, %1048 : vector<16x128xi1>, vector<16x128xf32>
    %c117_i32_199 = arith.constant 117 : i32
    %1050 = tpu.dynamic_rotate %1049 by %c117_i32_199 dim 1 : vector<16x128xf32>, i32 -> vector<16x128xf32>
    %c1_i32_200 = arith.constant 1 : i32
    %1051 = tpu.dynamic_rotate %1050 by %c1_i32_200 dim 1 : vector<16x128xf32>, i32 -> vector<16x128xf32>
    %1052 = arith.addf %1050, %1051 : vector<16x128xf32>
    %c2_i32_201 = arith.constant 2 : i32
    %1053 = tpu.dynamic_rotate %1052 by %c2_i32_201 dim 1 : vector<16x128xf32>, i32 -> vector<16x128xf32>
    %1054 = arith.addf %1052, %1053 : vector<16x128xf32>
    %c4_i32_202 = arith.constant 4 : i32
    %1055 = tpu.dynamic_rotate %1054 by %c4_i32_202 dim 1 : vector<16x128xf32>, i32 -> vector<16x128xf32>
    %1056 = arith.addf %1054, %1055 : vector<16x128xf32>
    %c8_i32_203 = arith.constant 8 : i32
    %1057 = tpu.dynamic_rotate %1056 by %c8_i32_203 dim 1 : vector<16x128xf32>, i32 -> vector<16x128xf32>
    %1058 = arith.addf %1056, %1057 : vector<16x128xf32>
    %1059 = vector.extract_strided_slice %1058 {offsets = [11, 0], sizes = [1, 128], strides = [1, 1]} : vector<16x128xf32> to vector<1x128xf32>
    %1060 = tpu.reciprocal %1059 {approx = true} : vector<1x128xf32> -> vector<1x128xf32>
    %1061 = arith.mulf %1059, %1060 : vector<1x128xf32>
    %cst_204 = arith.constant 2.000000e+00 : f32
    %1062 = vector.broadcast %cst_204 : f32 to vector<1x128xf32>
    %1063 = arith.subf %1062, %1061 : vector<1x128xf32>
    %1064 = arith.mulf %1060, %1063 : vector<1x128xf32>
    %1065 = vector.extract_strided_slice %1008 {offsets = [11, 0], sizes = [1, 128], strides = [1, 1]} : vector<16x128xf32> to vector<1x128xf32>
    %1066 = arith.mulf %1065, %1064 : vector<1x128xf32>
    %1067 = vector.extract_strided_slice %1016 {offsets = [11, 0], sizes = [1, 128], strides = [1, 1]} : vector<16x128xf32> to vector<1x128xf32>
    %1068 = arith.mulf %1067, %1064 : vector<1x128xf32>
    %1069 = vector.broadcast %1041 : vector<1x128xf32> to vector<16x128xf32>
    %1070 = arith.mulf %1033, %1069 : vector<16x128xf32>
    %1071 = arith.subf %992, %1070 : vector<16x128xf32>
    %1072 = vector.shape_cast %1018 : vector<16x1xi1> to vector<16x1xi1>
    %1073 = vector.broadcast %1072 : vector<16x1xi1> to vector<16x128xi1>
    %1074 = vector.shape_cast %1041 : vector<1x128xf32> to vector<1x128xf32>
    %1075 = vector.broadcast %1074 : vector<1x128xf32> to vector<16x128xf32>
    %1076 = arith.select %1073, %1075, %1071 : vector<16x128xi1>, vector<16x128xf32>
    %1077 = vector.broadcast %1043 : vector<1x128xf32> to vector<16x128xf32>
    %1078 = arith.mulf %1033, %1077 : vector<16x128xf32>
    %1079 = arith.subf %1000, %1078 : vector<16x128xf32>
    %1080 = vector.shape_cast %1018 : vector<16x1xi1> to vector<16x1xi1>
    %1081 = vector.broadcast %1080 : vector<16x1xi1> to vector<16x128xi1>
    %1082 = vector.shape_cast %1043 : vector<1x128xf32> to vector<1x128xf32>
    %1083 = vector.broadcast %1082 : vector<1x128xf32> to vector<16x128xf32>
    %1084 = arith.select %1081, %1083, %1079 : vector<16x128xi1>, vector<16x128xf32>
    %1085 = vector.broadcast %1066 : vector<1x128xf32> to vector<16x128xf32>
    %1086 = arith.mulf %1058, %1085 : vector<16x128xf32>
    %1087 = arith.subf %1008, %1086 : vector<16x128xf32>
    %1088 = vector.shape_cast %1018 : vector<16x1xi1> to vector<16x1xi1>
    %1089 = vector.broadcast %1088 : vector<16x1xi1> to vector<16x128xi1>
    %1090 = vector.shape_cast %1066 : vector<1x128xf32> to vector<1x128xf32>
    %1091 = vector.broadcast %1090 : vector<1x128xf32> to vector<16x128xf32>
    %1092 = arith.select %1089, %1091, %1087 : vector<16x128xi1>, vector<16x128xf32>
    %1093 = vector.broadcast %1068 : vector<1x128xf32> to vector<16x128xf32>
    %1094 = arith.mulf %1058, %1093 : vector<16x128xf32>
    %1095 = arith.subf %1016, %1094 : vector<16x128xf32>
    %1096 = vector.shape_cast %1018 : vector<16x1xi1> to vector<16x1xi1>
    %1097 = vector.broadcast %1096 : vector<16x1xi1> to vector<16x128xi1>
    %1098 = vector.shape_cast %1068 : vector<1x128xf32> to vector<1x128xf32>
    %1099 = vector.broadcast %1098 : vector<1x128xf32> to vector<16x128xf32>
    %1100 = arith.select %1097, %1099, %1095 : vector<16x128xi1>, vector<16x128xf32>
    %c12_i32 = arith.constant 12 : i32
    %1101 = vector.broadcast %c12_i32 : i32 to vector<16x1xi32>
    %1102 = arith.cmpi eq, %4, %1101 : vector<16x1xi32>
    %c12_i32_205 = arith.constant 12 : i32
    %1103 = vector.broadcast %c12_i32_205 : i32 to vector<1x128xi32>
    %1104 = arith.cmpi eq, %21, %1103 : vector<1x128xi32>
    %cst_206 = arith.constant 0.000000e+00 : f32
    %1105 = vector.shape_cast %1104 : vector<1x128xi1> to vector<1x128xi1>
    %1106 = vector.broadcast %1105 : vector<1x128xi1> to vector<16x128xi1>
    %1107 = vector.broadcast %cst_206 : f32 to vector<16x128xf32>
    %1108 = arith.select %1106, %1076, %1107 : vector<16x128xi1>, vector<16x128xf32>
    %c116_i32 = arith.constant 116 : i32
    %1109 = tpu.dynamic_rotate %1108 by %c116_i32 dim 1 : vector<16x128xf32>, i32 -> vector<16x128xf32>
    %c1_i32_207 = arith.constant 1 : i32
    %1110 = tpu.dynamic_rotate %1109 by %c1_i32_207 dim 1 : vector<16x128xf32>, i32 -> vector<16x128xf32>
    %1111 = arith.addf %1109, %1110 : vector<16x128xf32>
    %c2_i32_208 = arith.constant 2 : i32
    %1112 = tpu.dynamic_rotate %1111 by %c2_i32_208 dim 1 : vector<16x128xf32>, i32 -> vector<16x128xf32>
    %1113 = arith.addf %1111, %1112 : vector<16x128xf32>
    %c4_i32_209 = arith.constant 4 : i32
    %1114 = tpu.dynamic_rotate %1113 by %c4_i32_209 dim 1 : vector<16x128xf32>, i32 -> vector<16x128xf32>
    %1115 = arith.addf %1113, %1114 : vector<16x128xf32>
    %c8_i32_210 = arith.constant 8 : i32
    %1116 = tpu.dynamic_rotate %1115 by %c8_i32_210 dim 1 : vector<16x128xf32>, i32 -> vector<16x128xf32>
    %1117 = arith.addf %1115, %1116 : vector<16x128xf32>
    %1118 = vector.extract_strided_slice %1117 {offsets = [12, 0], sizes = [1, 128], strides = [1, 1]} : vector<16x128xf32> to vector<1x128xf32>
    %1119 = tpu.reciprocal %1118 {approx = true} : vector<1x128xf32> -> vector<1x128xf32>
    %1120 = arith.mulf %1118, %1119 : vector<1x128xf32>
    %cst_211 = arith.constant 2.000000e+00 : f32
    %1121 = vector.broadcast %cst_211 : f32 to vector<1x128xf32>
    %1122 = arith.subf %1121, %1120 : vector<1x128xf32>
    %1123 = arith.mulf %1119, %1122 : vector<1x128xf32>
    %1124 = vector.extract_strided_slice %1076 {offsets = [12, 0], sizes = [1, 128], strides = [1, 1]} : vector<16x128xf32> to vector<1x128xf32>
    %1125 = arith.mulf %1124, %1123 : vector<1x128xf32>
    %1126 = vector.extract_strided_slice %1084 {offsets = [12, 0], sizes = [1, 128], strides = [1, 1]} : vector<16x128xf32> to vector<1x128xf32>
    %1127 = arith.mulf %1126, %1123 : vector<1x128xf32>
    %c12_i32_212 = arith.constant 12 : i32
    %1128 = vector.broadcast %c12_i32_212 : i32 to vector<1x128xi32>
    %1129 = arith.cmpi eq, %21, %1128 : vector<1x128xi32>
    %cst_213 = arith.constant 0.000000e+00 : f32
    %1130 = vector.shape_cast %1129 : vector<1x128xi1> to vector<1x128xi1>
    %1131 = vector.broadcast %1130 : vector<1x128xi1> to vector<16x128xi1>
    %1132 = vector.broadcast %cst_213 : f32 to vector<16x128xf32>
    %1133 = arith.select %1131, %1092, %1132 : vector<16x128xi1>, vector<16x128xf32>
    %c116_i32_214 = arith.constant 116 : i32
    %1134 = tpu.dynamic_rotate %1133 by %c116_i32_214 dim 1 : vector<16x128xf32>, i32 -> vector<16x128xf32>
    %c1_i32_215 = arith.constant 1 : i32
    %1135 = tpu.dynamic_rotate %1134 by %c1_i32_215 dim 1 : vector<16x128xf32>, i32 -> vector<16x128xf32>
    %1136 = arith.addf %1134, %1135 : vector<16x128xf32>
    %c2_i32_216 = arith.constant 2 : i32
    %1137 = tpu.dynamic_rotate %1136 by %c2_i32_216 dim 1 : vector<16x128xf32>, i32 -> vector<16x128xf32>
    %1138 = arith.addf %1136, %1137 : vector<16x128xf32>
    %c4_i32_217 = arith.constant 4 : i32
    %1139 = tpu.dynamic_rotate %1138 by %c4_i32_217 dim 1 : vector<16x128xf32>, i32 -> vector<16x128xf32>
    %1140 = arith.addf %1138, %1139 : vector<16x128xf32>
    %c8_i32_218 = arith.constant 8 : i32
    %1141 = tpu.dynamic_rotate %1140 by %c8_i32_218 dim 1 : vector<16x128xf32>, i32 -> vector<16x128xf32>
    %1142 = arith.addf %1140, %1141 : vector<16x128xf32>
    %1143 = vector.extract_strided_slice %1142 {offsets = [12, 0], sizes = [1, 128], strides = [1, 1]} : vector<16x128xf32> to vector<1x128xf32>
    %1144 = tpu.reciprocal %1143 {approx = true} : vector<1x128xf32> -> vector<1x128xf32>
    %1145 = arith.mulf %1143, %1144 : vector<1x128xf32>
    %cst_219 = arith.constant 2.000000e+00 : f32
    %1146 = vector.broadcast %cst_219 : f32 to vector<1x128xf32>
    %1147 = arith.subf %1146, %1145 : vector<1x128xf32>
    %1148 = arith.mulf %1144, %1147 : vector<1x128xf32>
    %1149 = vector.extract_strided_slice %1092 {offsets = [12, 0], sizes = [1, 128], strides = [1, 1]} : vector<16x128xf32> to vector<1x128xf32>
    %1150 = arith.mulf %1149, %1148 : vector<1x128xf32>
    %1151 = vector.extract_strided_slice %1100 {offsets = [12, 0], sizes = [1, 128], strides = [1, 1]} : vector<16x128xf32> to vector<1x128xf32>
    %1152 = arith.mulf %1151, %1148 : vector<1x128xf32>
    %1153 = vector.broadcast %1125 : vector<1x128xf32> to vector<16x128xf32>
    %1154 = arith.mulf %1117, %1153 : vector<16x128xf32>
    %1155 = arith.subf %1076, %1154 : vector<16x128xf32>
    %1156 = vector.shape_cast %1102 : vector<16x1xi1> to vector<16x1xi1>
    %1157 = vector.broadcast %1156 : vector<16x1xi1> to vector<16x128xi1>
    %1158 = vector.shape_cast %1125 : vector<1x128xf32> to vector<1x128xf32>
    %1159 = vector.broadcast %1158 : vector<1x128xf32> to vector<16x128xf32>
    %1160 = arith.select %1157, %1159, %1155 : vector<16x128xi1>, vector<16x128xf32>
    %1161 = vector.broadcast %1127 : vector<1x128xf32> to vector<16x128xf32>
    %1162 = arith.mulf %1117, %1161 : vector<16x128xf32>
    %1163 = arith.subf %1084, %1162 : vector<16x128xf32>
    %1164 = vector.shape_cast %1102 : vector<16x1xi1> to vector<16x1xi1>
    %1165 = vector.broadcast %1164 : vector<16x1xi1> to vector<16x128xi1>
    %1166 = vector.shape_cast %1127 : vector<1x128xf32> to vector<1x128xf32>
    %1167 = vector.broadcast %1166 : vector<1x128xf32> to vector<16x128xf32>
    %1168 = arith.select %1165, %1167, %1163 : vector<16x128xi1>, vector<16x128xf32>
    %1169 = vector.broadcast %1150 : vector<1x128xf32> to vector<16x128xf32>
    %1170 = arith.mulf %1142, %1169 : vector<16x128xf32>
    %1171 = arith.subf %1092, %1170 : vector<16x128xf32>
    %1172 = vector.shape_cast %1102 : vector<16x1xi1> to vector<16x1xi1>
    %1173 = vector.broadcast %1172 : vector<16x1xi1> to vector<16x128xi1>
    %1174 = vector.shape_cast %1150 : vector<1x128xf32> to vector<1x128xf32>
    %1175 = vector.broadcast %1174 : vector<1x128xf32> to vector<16x128xf32>
    %1176 = arith.select %1173, %1175, %1171 : vector<16x128xi1>, vector<16x128xf32>
    %1177 = vector.broadcast %1152 : vector<1x128xf32> to vector<16x128xf32>
    %1178 = arith.mulf %1142, %1177 : vector<16x128xf32>
    %1179 = arith.subf %1100, %1178 : vector<16x128xf32>
    %1180 = vector.shape_cast %1102 : vector<16x1xi1> to vector<16x1xi1>
    %1181 = vector.broadcast %1180 : vector<16x1xi1> to vector<16x128xi1>
    %1182 = vector.shape_cast %1152 : vector<1x128xf32> to vector<1x128xf32>
    %1183 = vector.broadcast %1182 : vector<1x128xf32> to vector<16x128xf32>
    %1184 = arith.select %1181, %1183, %1179 : vector<16x128xi1>, vector<16x128xf32>
    %c13_i32 = arith.constant 13 : i32
    %1185 = vector.broadcast %c13_i32 : i32 to vector<16x1xi32>
    %1186 = arith.cmpi eq, %4, %1185 : vector<16x1xi32>
    %c13_i32_220 = arith.constant 13 : i32
    %1187 = vector.broadcast %c13_i32_220 : i32 to vector<1x128xi32>
    %1188 = arith.cmpi eq, %21, %1187 : vector<1x128xi32>
    %cst_221 = arith.constant 0.000000e+00 : f32
    %1189 = vector.shape_cast %1188 : vector<1x128xi1> to vector<1x128xi1>
    %1190 = vector.broadcast %1189 : vector<1x128xi1> to vector<16x128xi1>
    %1191 = vector.broadcast %cst_221 : f32 to vector<16x128xf32>
    %1192 = arith.select %1190, %1160, %1191 : vector<16x128xi1>, vector<16x128xf32>
    %c115_i32 = arith.constant 115 : i32
    %1193 = tpu.dynamic_rotate %1192 by %c115_i32 dim 1 : vector<16x128xf32>, i32 -> vector<16x128xf32>
    %c1_i32_222 = arith.constant 1 : i32
    %1194 = tpu.dynamic_rotate %1193 by %c1_i32_222 dim 1 : vector<16x128xf32>, i32 -> vector<16x128xf32>
    %1195 = arith.addf %1193, %1194 : vector<16x128xf32>
    %c2_i32_223 = arith.constant 2 : i32
    %1196 = tpu.dynamic_rotate %1195 by %c2_i32_223 dim 1 : vector<16x128xf32>, i32 -> vector<16x128xf32>
    %1197 = arith.addf %1195, %1196 : vector<16x128xf32>
    %c4_i32_224 = arith.constant 4 : i32
    %1198 = tpu.dynamic_rotate %1197 by %c4_i32_224 dim 1 : vector<16x128xf32>, i32 -> vector<16x128xf32>
    %1199 = arith.addf %1197, %1198 : vector<16x128xf32>
    %c8_i32_225 = arith.constant 8 : i32
    %1200 = tpu.dynamic_rotate %1199 by %c8_i32_225 dim 1 : vector<16x128xf32>, i32 -> vector<16x128xf32>
    %1201 = arith.addf %1199, %1200 : vector<16x128xf32>
    %1202 = vector.extract_strided_slice %1201 {offsets = [13, 0], sizes = [1, 128], strides = [1, 1]} : vector<16x128xf32> to vector<1x128xf32>
    %1203 = tpu.reciprocal %1202 {approx = true} : vector<1x128xf32> -> vector<1x128xf32>
    %1204 = arith.mulf %1202, %1203 : vector<1x128xf32>
    %cst_226 = arith.constant 2.000000e+00 : f32
    %1205 = vector.broadcast %cst_226 : f32 to vector<1x128xf32>
    %1206 = arith.subf %1205, %1204 : vector<1x128xf32>
    %1207 = arith.mulf %1203, %1206 : vector<1x128xf32>
    %1208 = vector.extract_strided_slice %1160 {offsets = [13, 0], sizes = [1, 128], strides = [1, 1]} : vector<16x128xf32> to vector<1x128xf32>
    %1209 = arith.mulf %1208, %1207 : vector<1x128xf32>
    %1210 = vector.extract_strided_slice %1168 {offsets = [13, 0], sizes = [1, 128], strides = [1, 1]} : vector<16x128xf32> to vector<1x128xf32>
    %1211 = arith.mulf %1210, %1207 : vector<1x128xf32>
    %c13_i32_227 = arith.constant 13 : i32
    %1212 = vector.broadcast %c13_i32_227 : i32 to vector<1x128xi32>
    %1213 = arith.cmpi eq, %21, %1212 : vector<1x128xi32>
    %cst_228 = arith.constant 0.000000e+00 : f32
    %1214 = vector.shape_cast %1213 : vector<1x128xi1> to vector<1x128xi1>
    %1215 = vector.broadcast %1214 : vector<1x128xi1> to vector<16x128xi1>
    %1216 = vector.broadcast %cst_228 : f32 to vector<16x128xf32>
    %1217 = arith.select %1215, %1176, %1216 : vector<16x128xi1>, vector<16x128xf32>
    %c115_i32_229 = arith.constant 115 : i32
    %1218 = tpu.dynamic_rotate %1217 by %c115_i32_229 dim 1 : vector<16x128xf32>, i32 -> vector<16x128xf32>
    %c1_i32_230 = arith.constant 1 : i32
    %1219 = tpu.dynamic_rotate %1218 by %c1_i32_230 dim 1 : vector<16x128xf32>, i32 -> vector<16x128xf32>
    %1220 = arith.addf %1218, %1219 : vector<16x128xf32>
    %c2_i32_231 = arith.constant 2 : i32
    %1221 = tpu.dynamic_rotate %1220 by %c2_i32_231 dim 1 : vector<16x128xf32>, i32 -> vector<16x128xf32>
    %1222 = arith.addf %1220, %1221 : vector<16x128xf32>
    %c4_i32_232 = arith.constant 4 : i32
    %1223 = tpu.dynamic_rotate %1222 by %c4_i32_232 dim 1 : vector<16x128xf32>, i32 -> vector<16x128xf32>
    %1224 = arith.addf %1222, %1223 : vector<16x128xf32>
    %c8_i32_233 = arith.constant 8 : i32
    %1225 = tpu.dynamic_rotate %1224 by %c8_i32_233 dim 1 : vector<16x128xf32>, i32 -> vector<16x128xf32>
    %1226 = arith.addf %1224, %1225 : vector<16x128xf32>
    %1227 = vector.extract_strided_slice %1226 {offsets = [13, 0], sizes = [1, 128], strides = [1, 1]} : vector<16x128xf32> to vector<1x128xf32>
    %1228 = tpu.reciprocal %1227 {approx = true} : vector<1x128xf32> -> vector<1x128xf32>
    %1229 = arith.mulf %1227, %1228 : vector<1x128xf32>
    %cst_234 = arith.constant 2.000000e+00 : f32
    %1230 = vector.broadcast %cst_234 : f32 to vector<1x128xf32>
    %1231 = arith.subf %1230, %1229 : vector<1x128xf32>
    %1232 = arith.mulf %1228, %1231 : vector<1x128xf32>
    %1233 = vector.extract_strided_slice %1176 {offsets = [13, 0], sizes = [1, 128], strides = [1, 1]} : vector<16x128xf32> to vector<1x128xf32>
    %1234 = arith.mulf %1233, %1232 : vector<1x128xf32>
    %1235 = vector.extract_strided_slice %1184 {offsets = [13, 0], sizes = [1, 128], strides = [1, 1]} : vector<16x128xf32> to vector<1x128xf32>
    %1236 = arith.mulf %1235, %1232 : vector<1x128xf32>
    %1237 = vector.broadcast %1209 : vector<1x128xf32> to vector<16x128xf32>
    %1238 = arith.mulf %1201, %1237 : vector<16x128xf32>
    %1239 = arith.subf %1160, %1238 : vector<16x128xf32>
    %1240 = vector.shape_cast %1186 : vector<16x1xi1> to vector<16x1xi1>
    %1241 = vector.broadcast %1240 : vector<16x1xi1> to vector<16x128xi1>
    %1242 = vector.shape_cast %1209 : vector<1x128xf32> to vector<1x128xf32>
    %1243 = vector.broadcast %1242 : vector<1x128xf32> to vector<16x128xf32>
    %1244 = arith.select %1241, %1243, %1239 : vector<16x128xi1>, vector<16x128xf32>
    %1245 = vector.broadcast %1211 : vector<1x128xf32> to vector<16x128xf32>
    %1246 = arith.mulf %1201, %1245 : vector<16x128xf32>
    %1247 = arith.subf %1168, %1246 : vector<16x128xf32>
    %1248 = vector.shape_cast %1186 : vector<16x1xi1> to vector<16x1xi1>
    %1249 = vector.broadcast %1248 : vector<16x1xi1> to vector<16x128xi1>
    %1250 = vector.shape_cast %1211 : vector<1x128xf32> to vector<1x128xf32>
    %1251 = vector.broadcast %1250 : vector<1x128xf32> to vector<16x128xf32>
    %1252 = arith.select %1249, %1251, %1247 : vector<16x128xi1>, vector<16x128xf32>
    %1253 = vector.broadcast %1234 : vector<1x128xf32> to vector<16x128xf32>
    %1254 = arith.mulf %1226, %1253 : vector<16x128xf32>
    %1255 = arith.subf %1176, %1254 : vector<16x128xf32>
    %1256 = vector.shape_cast %1186 : vector<16x1xi1> to vector<16x1xi1>
    %1257 = vector.broadcast %1256 : vector<16x1xi1> to vector<16x128xi1>
    %1258 = vector.shape_cast %1234 : vector<1x128xf32> to vector<1x128xf32>
    %1259 = vector.broadcast %1258 : vector<1x128xf32> to vector<16x128xf32>
    %1260 = arith.select %1257, %1259, %1255 : vector<16x128xi1>, vector<16x128xf32>
    %1261 = vector.broadcast %1236 : vector<1x128xf32> to vector<16x128xf32>
    %1262 = arith.mulf %1226, %1261 : vector<16x128xf32>
    %1263 = arith.subf %1184, %1262 : vector<16x128xf32>
    %1264 = vector.shape_cast %1186 : vector<16x1xi1> to vector<16x1xi1>
    %1265 = vector.broadcast %1264 : vector<16x1xi1> to vector<16x128xi1>
    %1266 = vector.shape_cast %1236 : vector<1x128xf32> to vector<1x128xf32>
    %1267 = vector.broadcast %1266 : vector<1x128xf32> to vector<16x128xf32>
    %1268 = arith.select %1265, %1267, %1263 : vector<16x128xi1>, vector<16x128xf32>
    %c14_i32 = arith.constant 14 : i32
    %1269 = vector.broadcast %c14_i32 : i32 to vector<16x1xi32>
    %1270 = arith.cmpi eq, %4, %1269 : vector<16x1xi32>
    %c14_i32_235 = arith.constant 14 : i32
    %1271 = vector.broadcast %c14_i32_235 : i32 to vector<1x128xi32>
    %1272 = arith.cmpi eq, %21, %1271 : vector<1x128xi32>
    %cst_236 = arith.constant 0.000000e+00 : f32
    %1273 = vector.shape_cast %1272 : vector<1x128xi1> to vector<1x128xi1>
    %1274 = vector.broadcast %1273 : vector<1x128xi1> to vector<16x128xi1>
    %1275 = vector.broadcast %cst_236 : f32 to vector<16x128xf32>
    %1276 = arith.select %1274, %1244, %1275 : vector<16x128xi1>, vector<16x128xf32>
    %c114_i32 = arith.constant 114 : i32
    %1277 = tpu.dynamic_rotate %1276 by %c114_i32 dim 1 : vector<16x128xf32>, i32 -> vector<16x128xf32>
    %c1_i32_237 = arith.constant 1 : i32
    %1278 = tpu.dynamic_rotate %1277 by %c1_i32_237 dim 1 : vector<16x128xf32>, i32 -> vector<16x128xf32>
    %1279 = arith.addf %1277, %1278 : vector<16x128xf32>
    %c2_i32_238 = arith.constant 2 : i32
    %1280 = tpu.dynamic_rotate %1279 by %c2_i32_238 dim 1 : vector<16x128xf32>, i32 -> vector<16x128xf32>
    %1281 = arith.addf %1279, %1280 : vector<16x128xf32>
    %c4_i32_239 = arith.constant 4 : i32
    %1282 = tpu.dynamic_rotate %1281 by %c4_i32_239 dim 1 : vector<16x128xf32>, i32 -> vector<16x128xf32>
    %1283 = arith.addf %1281, %1282 : vector<16x128xf32>
    %c8_i32_240 = arith.constant 8 : i32
    %1284 = tpu.dynamic_rotate %1283 by %c8_i32_240 dim 1 : vector<16x128xf32>, i32 -> vector<16x128xf32>
    %1285 = arith.addf %1283, %1284 : vector<16x128xf32>
    %1286 = vector.extract_strided_slice %1285 {offsets = [14, 0], sizes = [1, 128], strides = [1, 1]} : vector<16x128xf32> to vector<1x128xf32>
    %1287 = tpu.reciprocal %1286 {approx = true} : vector<1x128xf32> -> vector<1x128xf32>
    %1288 = arith.mulf %1286, %1287 : vector<1x128xf32>
    %cst_241 = arith.constant 2.000000e+00 : f32
    %1289 = vector.broadcast %cst_241 : f32 to vector<1x128xf32>
    %1290 = arith.subf %1289, %1288 : vector<1x128xf32>
    %1291 = arith.mulf %1287, %1290 : vector<1x128xf32>
    %1292 = vector.extract_strided_slice %1244 {offsets = [14, 0], sizes = [1, 128], strides = [1, 1]} : vector<16x128xf32> to vector<1x128xf32>
    %1293 = arith.mulf %1292, %1291 : vector<1x128xf32>
    %1294 = vector.extract_strided_slice %1252 {offsets = [14, 0], sizes = [1, 128], strides = [1, 1]} : vector<16x128xf32> to vector<1x128xf32>
    %1295 = arith.mulf %1294, %1291 : vector<1x128xf32>
    %c14_i32_242 = arith.constant 14 : i32
    %1296 = vector.broadcast %c14_i32_242 : i32 to vector<1x128xi32>
    %1297 = arith.cmpi eq, %21, %1296 : vector<1x128xi32>
    %cst_243 = arith.constant 0.000000e+00 : f32
    %1298 = vector.shape_cast %1297 : vector<1x128xi1> to vector<1x128xi1>
    %1299 = vector.broadcast %1298 : vector<1x128xi1> to vector<16x128xi1>
    %1300 = vector.broadcast %cst_243 : f32 to vector<16x128xf32>
    %1301 = arith.select %1299, %1260, %1300 : vector<16x128xi1>, vector<16x128xf32>
    %c114_i32_244 = arith.constant 114 : i32
    %1302 = tpu.dynamic_rotate %1301 by %c114_i32_244 dim 1 : vector<16x128xf32>, i32 -> vector<16x128xf32>
    %c1_i32_245 = arith.constant 1 : i32
    %1303 = tpu.dynamic_rotate %1302 by %c1_i32_245 dim 1 : vector<16x128xf32>, i32 -> vector<16x128xf32>
    %1304 = arith.addf %1302, %1303 : vector<16x128xf32>
    %c2_i32_246 = arith.constant 2 : i32
    %1305 = tpu.dynamic_rotate %1304 by %c2_i32_246 dim 1 : vector<16x128xf32>, i32 -> vector<16x128xf32>
    %1306 = arith.addf %1304, %1305 : vector<16x128xf32>
    %c4_i32_247 = arith.constant 4 : i32
    %1307 = tpu.dynamic_rotate %1306 by %c4_i32_247 dim 1 : vector<16x128xf32>, i32 -> vector<16x128xf32>
    %1308 = arith.addf %1306, %1307 : vector<16x128xf32>
    %c8_i32_248 = arith.constant 8 : i32
    %1309 = tpu.dynamic_rotate %1308 by %c8_i32_248 dim 1 : vector<16x128xf32>, i32 -> vector<16x128xf32>
    %1310 = arith.addf %1308, %1309 : vector<16x128xf32>
    %1311 = vector.extract_strided_slice %1310 {offsets = [14, 0], sizes = [1, 128], strides = [1, 1]} : vector<16x128xf32> to vector<1x128xf32>
    %1312 = tpu.reciprocal %1311 {approx = true} : vector<1x128xf32> -> vector<1x128xf32>
    %1313 = arith.mulf %1311, %1312 : vector<1x128xf32>
    %cst_249 = arith.constant 2.000000e+00 : f32
    %1314 = vector.broadcast %cst_249 : f32 to vector<1x128xf32>
    %1315 = arith.subf %1314, %1313 : vector<1x128xf32>
    %1316 = arith.mulf %1312, %1315 : vector<1x128xf32>
    %1317 = vector.extract_strided_slice %1260 {offsets = [14, 0], sizes = [1, 128], strides = [1, 1]} : vector<16x128xf32> to vector<1x128xf32>
    %1318 = arith.mulf %1317, %1316 : vector<1x128xf32>
    %1319 = vector.extract_strided_slice %1268 {offsets = [14, 0], sizes = [1, 128], strides = [1, 1]} : vector<16x128xf32> to vector<1x128xf32>
    %1320 = arith.mulf %1319, %1316 : vector<1x128xf32>
    %1321 = vector.broadcast %1293 : vector<1x128xf32> to vector<16x128xf32>
    %1322 = arith.mulf %1285, %1321 : vector<16x128xf32>
    %1323 = arith.subf %1244, %1322 : vector<16x128xf32>
    %1324 = vector.shape_cast %1270 : vector<16x1xi1> to vector<16x1xi1>
    %1325 = vector.broadcast %1324 : vector<16x1xi1> to vector<16x128xi1>
    %1326 = vector.shape_cast %1293 : vector<1x128xf32> to vector<1x128xf32>
    %1327 = vector.broadcast %1326 : vector<1x128xf32> to vector<16x128xf32>
    %1328 = arith.select %1325, %1327, %1323 : vector<16x128xi1>, vector<16x128xf32>
    %1329 = vector.broadcast %1295 : vector<1x128xf32> to vector<16x128xf32>
    %1330 = arith.mulf %1285, %1329 : vector<16x128xf32>
    %1331 = arith.subf %1252, %1330 : vector<16x128xf32>
    %1332 = vector.shape_cast %1270 : vector<16x1xi1> to vector<16x1xi1>
    %1333 = vector.broadcast %1332 : vector<16x1xi1> to vector<16x128xi1>
    %1334 = vector.shape_cast %1295 : vector<1x128xf32> to vector<1x128xf32>
    %1335 = vector.broadcast %1334 : vector<1x128xf32> to vector<16x128xf32>
    %1336 = arith.select %1333, %1335, %1331 : vector<16x128xi1>, vector<16x128xf32>
    %1337 = vector.broadcast %1318 : vector<1x128xf32> to vector<16x128xf32>
    %1338 = arith.mulf %1310, %1337 : vector<16x128xf32>
    %1339 = arith.subf %1260, %1338 : vector<16x128xf32>
    %1340 = vector.shape_cast %1270 : vector<16x1xi1> to vector<16x1xi1>
    %1341 = vector.broadcast %1340 : vector<16x1xi1> to vector<16x128xi1>
    %1342 = vector.shape_cast %1318 : vector<1x128xf32> to vector<1x128xf32>
    %1343 = vector.broadcast %1342 : vector<1x128xf32> to vector<16x128xf32>
    %1344 = arith.select %1341, %1343, %1339 : vector<16x128xi1>, vector<16x128xf32>
    %1345 = vector.broadcast %1320 : vector<1x128xf32> to vector<16x128xf32>
    %1346 = arith.mulf %1310, %1345 : vector<16x128xf32>
    %1347 = arith.subf %1268, %1346 : vector<16x128xf32>
    %1348 = vector.shape_cast %1270 : vector<16x1xi1> to vector<16x1xi1>
    %1349 = vector.broadcast %1348 : vector<16x1xi1> to vector<16x128xi1>
    %1350 = vector.shape_cast %1320 : vector<1x128xf32> to vector<1x128xf32>
    %1351 = vector.broadcast %1350 : vector<1x128xf32> to vector<16x128xf32>
    %1352 = arith.select %1349, %1351, %1347 : vector<16x128xi1>, vector<16x128xf32>
    %c15_i32 = arith.constant 15 : i32
    %1353 = vector.broadcast %c15_i32 : i32 to vector<16x1xi32>
    %1354 = arith.cmpi eq, %4, %1353 : vector<16x1xi32>
    %c15_i32_250 = arith.constant 15 : i32
    %1355 = vector.broadcast %c15_i32_250 : i32 to vector<1x128xi32>
    %1356 = arith.cmpi eq, %21, %1355 : vector<1x128xi32>
    %cst_251 = arith.constant 0.000000e+00 : f32
    %1357 = vector.shape_cast %1356 : vector<1x128xi1> to vector<1x128xi1>
    %1358 = vector.broadcast %1357 : vector<1x128xi1> to vector<16x128xi1>
    %1359 = vector.broadcast %cst_251 : f32 to vector<16x128xf32>
    %1360 = arith.select %1358, %1328, %1359 : vector<16x128xi1>, vector<16x128xf32>
    %c113_i32 = arith.constant 113 : i32
    %1361 = tpu.dynamic_rotate %1360 by %c113_i32 dim 1 : vector<16x128xf32>, i32 -> vector<16x128xf32>
    %c1_i32_252 = arith.constant 1 : i32
    %1362 = tpu.dynamic_rotate %1361 by %c1_i32_252 dim 1 : vector<16x128xf32>, i32 -> vector<16x128xf32>
    %1363 = arith.addf %1361, %1362 : vector<16x128xf32>
    %c2_i32_253 = arith.constant 2 : i32
    %1364 = tpu.dynamic_rotate %1363 by %c2_i32_253 dim 1 : vector<16x128xf32>, i32 -> vector<16x128xf32>
    %1365 = arith.addf %1363, %1364 : vector<16x128xf32>
    %c4_i32_254 = arith.constant 4 : i32
    %1366 = tpu.dynamic_rotate %1365 by %c4_i32_254 dim 1 : vector<16x128xf32>, i32 -> vector<16x128xf32>
    %1367 = arith.addf %1365, %1366 : vector<16x128xf32>
    %c8_i32_255 = arith.constant 8 : i32
    %1368 = tpu.dynamic_rotate %1367 by %c8_i32_255 dim 1 : vector<16x128xf32>, i32 -> vector<16x128xf32>
    %1369 = arith.addf %1367, %1368 : vector<16x128xf32>
    %1370 = vector.extract_strided_slice %1369 {offsets = [15, 0], sizes = [1, 128], strides = [1, 1]} : vector<16x128xf32> to vector<1x128xf32>
    %1371 = tpu.reciprocal %1370 {approx = true} : vector<1x128xf32> -> vector<1x128xf32>
    %1372 = arith.mulf %1370, %1371 : vector<1x128xf32>
    %cst_256 = arith.constant 2.000000e+00 : f32
    %1373 = vector.broadcast %cst_256 : f32 to vector<1x128xf32>
    %1374 = arith.subf %1373, %1372 : vector<1x128xf32>
    %1375 = arith.mulf %1371, %1374 : vector<1x128xf32>
    %1376 = vector.extract_strided_slice %1336 {offsets = [15, 0], sizes = [1, 128], strides = [1, 1]} : vector<16x128xf32> to vector<1x128xf32>
    %1377 = arith.mulf %1376, %1375 : vector<1x128xf32>
    %c15_i32_257 = arith.constant 15 : i32
    %1378 = vector.broadcast %c15_i32_257 : i32 to vector<1x128xi32>
    %1379 = arith.cmpi eq, %21, %1378 : vector<1x128xi32>
    %cst_258 = arith.constant 0.000000e+00 : f32
    %1380 = vector.shape_cast %1379 : vector<1x128xi1> to vector<1x128xi1>
    %1381 = vector.broadcast %1380 : vector<1x128xi1> to vector<16x128xi1>
    %1382 = vector.broadcast %cst_258 : f32 to vector<16x128xf32>
    %1383 = arith.select %1381, %1344, %1382 : vector<16x128xi1>, vector<16x128xf32>
    %c113_i32_259 = arith.constant 113 : i32
    %1384 = tpu.dynamic_rotate %1383 by %c113_i32_259 dim 1 : vector<16x128xf32>, i32 -> vector<16x128xf32>
    %c1_i32_260 = arith.constant 1 : i32
    %1385 = tpu.dynamic_rotate %1384 by %c1_i32_260 dim 1 : vector<16x128xf32>, i32 -> vector<16x128xf32>
    %1386 = arith.addf %1384, %1385 : vector<16x128xf32>
    %c2_i32_261 = arith.constant 2 : i32
    %1387 = tpu.dynamic_rotate %1386 by %c2_i32_261 dim 1 : vector<16x128xf32>, i32 -> vector<16x128xf32>
    %1388 = arith.addf %1386, %1387 : vector<16x128xf32>
    %c4_i32_262 = arith.constant 4 : i32
    %1389 = tpu.dynamic_rotate %1388 by %c4_i32_262 dim 1 : vector<16x128xf32>, i32 -> vector<16x128xf32>
    %1390 = arith.addf %1388, %1389 : vector<16x128xf32>
    %c8_i32_263 = arith.constant 8 : i32
    %1391 = tpu.dynamic_rotate %1390 by %c8_i32_263 dim 1 : vector<16x128xf32>, i32 -> vector<16x128xf32>
    %1392 = arith.addf %1390, %1391 : vector<16x128xf32>
    %1393 = vector.extract_strided_slice %1392 {offsets = [15, 0], sizes = [1, 128], strides = [1, 1]} : vector<16x128xf32> to vector<1x128xf32>
    %1394 = tpu.reciprocal %1393 {approx = true} : vector<1x128xf32> -> vector<1x128xf32>
    %1395 = arith.mulf %1393, %1394 : vector<1x128xf32>
    %cst_264 = arith.constant 2.000000e+00 : f32
    %1396 = vector.broadcast %cst_264 : f32 to vector<1x128xf32>
    %1397 = arith.subf %1396, %1395 : vector<1x128xf32>
    %1398 = arith.mulf %1394, %1397 : vector<1x128xf32>
    %1399 = vector.extract_strided_slice %1352 {offsets = [15, 0], sizes = [1, 128], strides = [1, 1]} : vector<16x128xf32> to vector<1x128xf32>
    %1400 = arith.mulf %1399, %1398 : vector<1x128xf32>
    %1401 = vector.broadcast %1377 : vector<1x128xf32> to vector<16x128xf32>
    %1402 = arith.mulf %1369, %1401 : vector<16x128xf32>
    %1403 = arith.subf %1336, %1402 : vector<16x128xf32>
    %1404 = vector.shape_cast %1354 : vector<16x1xi1> to vector<16x1xi1>
    %1405 = vector.broadcast %1404 : vector<16x1xi1> to vector<16x128xi1>
    %1406 = vector.shape_cast %1377 : vector<1x128xf32> to vector<1x128xf32>
    %1407 = vector.broadcast %1406 : vector<1x128xf32> to vector<16x128xf32>
    %1408 = arith.select %1405, %1407, %1403 : vector<16x128xi1>, vector<16x128xf32>
    %1409 = vector.broadcast %1400 : vector<1x128xf32> to vector<16x128xf32>
    %1410 = arith.mulf %1392, %1409 : vector<16x128xf32>
    %1411 = arith.subf %1352, %1410 : vector<16x128xf32>
    %1412 = vector.shape_cast %1354 : vector<16x1xi1> to vector<16x1xi1>
    %1413 = vector.broadcast %1412 : vector<16x1xi1> to vector<16x128xi1>
    %1414 = vector.shape_cast %1400 : vector<1x128xf32> to vector<1x128xf32>
    %1415 = vector.broadcast %1414 : vector<1x128xf32> to vector<16x128xf32>
    %1416 = arith.select %1413, %1415, %1411 : vector<16x128xi1>, vector<16x128xf32>
    %c0_265 = arith.constant 0 : index
    %c0_266 = arith.constant 0 : index
    %c0_267 = arith.constant 0 : index
    %1417 = vector.load %arg4[%c0_265, %c0_266, %c0_267] : memref<2x16x128xf32, #tpu.memory_space<vmem>>, vector<1x16x128xf32>
    %1418 = vector.shape_cast %1417 : vector<1x16x128xf32> to vector<16x128xf32>
    %1419 = vector.shape_cast %1408 : vector<16x128xf32> to vector<1x16x128xf32>
    tpu.vector_store %arg4[%c0_265, %c0_266, %c0_267], %1419 {strides = array<i32>} : memref<2x16x128xf32, #tpu.memory_space<vmem>>, vector<1x16x128xf32>,
    %c1_268 = arith.constant 1 : index
    %c0_269 = arith.constant 0 : index
    %c0_270 = arith.constant 0 : index
    %1420 = vector.load %arg4[%c1_268, %c0_269, %c0_270] : memref<2x16x128xf32, #tpu.memory_space<vmem>>, vector<1x16x128xf32>
    %1421 = vector.shape_cast %1420 : vector<1x16x128xf32> to vector<16x128xf32>
    %1422 = vector.shape_cast %1416 : vector<16x128xf32> to vector<1x16x128xf32>
    tpu.vector_store %arg4[%c1_268, %c0_269, %c0_270], %1422 {strides = array<i32>} : memref<2x16x128xf32, #tpu.memory_space<vmem>>, vector<1x16x128xf32>,
    return
  }
  func.func @transform_0(%arg0: i32) -> i32 {
    %c0_i32 = arith.constant 0 : i32
    %c0_i32_0 = arith.constant 0 : i32
    return %c0_i32 : i32
  }
  func.func @transform_1(%arg0: i32) -> (i32, i32, i32) {
    %c0_i32 = arith.constant 0 : i32
    %c0_i32_0 = arith.constant 0 : i32
    %c0_i32_1 = arith.constant 0 : i32
    return %arg0, %c0_i32, %c0_i32_0 : i32, i32, i32
  }
  func.func @transform_2(%arg0: i32) -> (i32, i32) {
    %c0_i32 = arith.constant 0 : i32
    %c0_i32_0 = arith.constant 0 : i32
    %c0_i32_1 = arith.constant 0 : i32
    return %c0_i32, %c0_i32_0 : i32, i32
  }
  func.func @transform_3(%arg0: i32) -> (i32, i32, i32) {
    %c0_i32 = arith.constant 0 : i32
    %c0_i32_0 = arith.constant 0 : i32
    %c0_i32_1 = arith.constant 0 : i32
    return %arg0, %c0_i32, %c0_i32_0 : i32, i32, i32
  }
}

</mosaic_0001>

<llo_original>
// kernel: inverse_cov_from_positions.1
$region0: #{inverse_cov_from_positions.1}
  #allocation0 [shape = 'u32[]', space=smem, size = 0x4, offset = 0x4, fixed_abs, tag = 'smem constant byte address 0x4 - core index']
  #allocation1 [shape = 'u32[72,128]{1,0:T(1,128)}', space=vmem, size = 0x9000, scoped, tag = 'internal scratch']
  %s0 = inlined_call_operand.vmem [shape: f32[3], index: 0, kind: input, shape index: {}]
  %s1 = inlined_call_operand.vmem [shape: f32[4,2,128], index: 1, kind: input, shape index: {}]
  %s2 = inlined_call_operand.vmem [shape: f32[128,128], index: 2, kind: input, shape index: {}]
  %s3 = inlined_call_operand.vmem [shape: f32[4,16,128], index: 3, kind: output, shape index: {}]
  %s4 = sld [smem:[#allocation0]]
  $region49: #{inverse_cov_from_positions.1} parent=0
    _
  %s6 = ssub.s32 1, %s4
  %s7 = scalar_select 0, %s6, %s4
  $region1: #{inverse_cov_from_positions.1} parent=0
    #allocation2 [shape = 'u8[512]{0}', space=smem, size = 0x200, scoped, tag = 'input window, operand 0, single buffered']
    #allocation3 [shape = 's32[2]{0}', space=sflag, size = 0x8, scoped, tag = 'scoped memory for inverse_cov_from_positions.1']
    %8 = vsyncpa [#allocation3], 0
    loop: start=0, step=1, limit=4
    $region2: #{inverse_cov_from_positions.1} parent=1 // loop_pre_header
      _
    $region3: #{inverse_cov_from_positions.1} parent=1 // loop_header
      %s10 = sphi 0, %s14
      %p11 = scmp.ge.s32.totalorder %s10, 4
      %s18 = sphi 0, %s18
      %s20 = sphi 0, %s18
      %s21 = sphi 0, %s20
      %s35 = sphi 0, %s21
      %s41 = sphi 0, %s43
      %s44 = sphi 0, %s41
      %s45 = sphi 0, %s44
      %s61 = sphi 0, %s45
      %s65 = sphi 0, %s65
      %s67 = sphi 0, %s65
      %s68 = sphi 0, %s67
      %s82 = sphi 0, %s68
      %s88 = sphi 0, %s90
      %s91 = sphi 0, %s88
      %s92 = sphi 0, %s91
      %s108 = sphi 0, %s92
    $region4: #{inverse_cov_from_positions.1} parent=1 // loop_header_branch
      %13 = sbr.rel (%p11) target = $region8
    $region5: #{inverse_cov_from_positions.1} parent=1 // loop_body
      %s15 = ssub.s32 %s10, 1
      %s16 = ssub.s32 %s10, 2
      %s17 = sadd.s32 %s10, 1
      %s19 = sadd.s32 %s18, 1
      %p22 = scmp.eq.s32.totalorder %s10, 1
      %p23 = scmp.ne.s32.totalorder %s18, %s20
      %p24 = scmp.eq.s32.totalorder %s10, 0
      %p25 = por %p23, %p24
      %p26 = scmp.ne.s32.totalorder %s18, %s20
      %p27 = scmp.eq.s32.totalorder %s15, 1
      %p28 = por %p26, %p27
      %p29 = scmp.ne.s32.totalorder %s20, %s21
      %p30 = scmp.eq.s32.totalorder %s15, 0
      %p31 = por %p29, %p30
      %p32 = scmp.ne.s32.totalorder %s20, %s21
      %p33 = scmp.eq.s32.totalorder %s16, 1
      %p34 = por %p32, %p33
      %p36 = scmp.ne.s32.totalorder %s21, %s35
      %p37 = scmp.eq.s32.totalorder %s16, 0
      %p38 = por %p36, %p37
      %s39 = ssub.s32 %s10, %s17
      %p40 = scmp.eq.s32.totalorder %s39, 0
      %s42 = sadd.s32 %s41, 1
      %s43 = scalar_select %p40, %s41, %s42
      %p46 = pneg %p40
      %p47 = scmp.eq.s32.totalorder %s10, 1
      %p48 = por %p46, %p47
      %p49 = scmp.ne.s32.totalorder %s41, %s44
      %p50 = scmp.eq.s32.totalorder %s10, 0
      %p51 = por %p49, %p50
      %p52 = scmp.ne.s32.totalorder %s41, %s44
      %p53 = scmp.eq.s32.totalorder %s15, 1
      %p54 = por %p52, %p53
      %p55 = scmp.ne.s32.totalorder %s44, %s45
      %p56 = scmp.eq.s32.totalorder %s15, 0
      %p57 = por %p55, %p56
      %p58 = scmp.ne.s32.totalorder %s44, %s45
      %p59 = scmp.eq.s32.totalorder %s16, 1
      %p60 = por %p58, %p59
      %p62 = scmp.ne.s32.totalorder %s45, %s61
      %p63 = scmp.eq.s32.totalorder %s16, 0
      %p64 = por %p62, %p63
      %s66 = sadd.s32 %s65, 1
      %p69 = scmp.eq.s32.totalorder %s10, 1
      %p70 = scmp.ne.s32.totalorder %s65, %s67
      %p71 = scmp.eq.s32.totalorder %s10, 0
      %p72 = por %p70, %p71
      %p73 = scmp.ne.s32.totalorder %s65, %s67
      %p74 = scmp.eq.s32.totalorder %s15, 1
      %p75 = por %p73, %p74
      %p76 = scmp.ne.s32.totalorder %s67, %s68
      %p77 = scmp.eq.s32.totalorder %s15, 0
      %p78 = por %p76, %p77
      %p79 = scmp.ne.s32.totalorder %s67, %s68
      %p80 = scmp.eq.s32.totalorder %s16, 1
      %p81 = por %p79, %p80
      %p83 = scmp.ne.s32.totalorder %s68, %s82
      %p84 = scmp.eq.s32.totalorder %s16, 0
      %p85 = por %p83, %p84
      %s86 = ssub.s32 %s10, %s17
      %p87 = scmp.eq.s32.totalorder %s86, 0
      %s89 = sadd.s32 %s88, 1
      %s90 = scalar_select %p87, %s88, %s89
      %p93 = pneg %p87
      %p94 = scmp.eq.s32.totalorder %s10, 1
      %p95 = por %p93, %p94
      %p96 = scmp.ne.s32.totalorder %s88, %s91
      %p97 = scmp.eq.s32.totalorder %s10, 0
      %p98 = por %p96, %p97
      %p99 = scmp.ne.s32.totalorder %s88, %s91
      %p100 = scmp.eq.s32.totalorder %s15, 1
      %p101 = por %p99, %p100
      %p102 = scmp.ne.s32.totalorder %s91, %s92
      %p103 = scmp.eq.s32.totalorder %s15, 0
      %p104 = por %p102, %p103
      %p105 = scmp.ne.s32.totalorder %s91, %s92
      %p106 = scmp.eq.s32.totalorder %s16, 1
      %p107 = por %p105, %p106
      %p109 = scmp.ne.s32.totalorder %s92, %s108
      %p110 = scmp.eq.s32.totalorder %s16, 0
      %p111 = por %p109, %p110
      %p112 = scmp.le.s32.totalorder 1, %s10
      %p113 = scmp.lt.s32.totalorder %s10, 3
      %p114 = pnand %p112, %p113
      %p115 = pneg %p114
      // Predicated region
      $region9: #{inverse_cov_from_positions.1} parent=5 // pred_check
        _
      $region10: #{inverse_cov_from_positions.1} parent=5 // pred_check_branch
        %117 = sbr.rel (%p114) target = $region12
      $region11: #{inverse_cov_from_positions.1} parent=5 // pred_region
        %s118 = ssub.s32 %s10, 1
        // Predicated region
        $region13: #{inverse_cov_from_positions.1} parent=11 // pred_check
          %p119 = pneg %p31
        $region14: #{inverse_cov_from_positions.1} parent=11 // pred_check_branch
          %121 = sbr.rel (%p119) target = $region16
        $region15: #{inverse_cov_from_positions.1} parent=11 // pred_region
          %123 = vsyncadd [#allocation3], 0
          %s125 = sshll.u32 %s0, 4
          %s126 = int_to_ptr.vmem [resolvable:$true] %s125
          %128 = dma.vmem_to_smem %s126, 16, [#allocation2], [#allocation3]
        $region16: #{inverse_cov_from_positions.1} parent=11 // pred_fallthru
          _
        // Predicated region
        $region17: #{inverse_cov_from_positions.1} parent=11 // pred_check
          %p129 = pneg %p78
        $region18: #{inverse_cov_from_positions.1} parent=11 // pred_check_branch
          %131 = sbr.rel (%p129) target = $region20
        $region19: #{inverse_cov_from_positions.1} parent=11 // pred_region
          _
        $region20: #{inverse_cov_from_positions.1} parent=11 // pred_fallthru
          _
      $region12: #{inverse_cov_from_positions.1} parent=5 // pred_fallthru
        _
      %p132 = scmp.lt.s32.totalorder %s10, 2
      // Predicated region
      $region21: #{inverse_cov_from_positions.1} parent=5 // pred_check
        %p133 = pneg %p132
      $region22: #{inverse_cov_from_positions.1} parent=5 // pred_check_branch
        %135 = sbr.rel (%p133) target = $region24
      $region23: #{inverse_cov_from_positions.1} parent=5 // pred_region
        // Predicated region
        $region25: #{inverse_cov_from_positions.1} parent=23 // pred_check
          %p136 = pneg %p51
        $region26: #{inverse_cov_from_positions.1} parent=23 // pred_check_branch
          %138 = sbr.rel (%p136) target = $region28
        $region27: #{inverse_cov_from_positions.1} parent=23 // pred_region
          %s139 = smul.u32 2, %s10
          %p140 = scmp.lt.s32.totalorder %s139, 3
          %s141 = scalar_select %p140, %s139, 3
          %s142 = smul.addr %s141, 2
          %s143 = scalar_lea.vmem %s1, %s142
          %s144 = smul.u32 2, %s10
        $region28: #{inverse_cov_from_positions.1} parent=23 // pred_fallthru
          _
      $region24: #{inverse_cov_from_positions.1} parent=5 // pred_fallthru
        _
      %p145 = scmp.le.s32.totalorder 1, %s10
      %p146 = scmp.lt.s32.totalorder %s10, 3
      %p147 = pnand %p145, %p146
      %p148 = pneg %p147
      // Predicated region
      $region29: #{inverse_cov_from_positions.1} parent=5 // pred_check
        _
      $region30: #{inverse_cov_from_positions.1} parent=5 // pred_check_branch
        %150 = sbr.rel (%p147) target = $region32
      $region31: #{inverse_cov_from_positions.1} parent=5 // pred_region
        %s151 = ssub.s32 %s10, 1
        // Predicated region
        $region33: #{inverse_cov_from_positions.1} parent=31 // pred_check
          %p152 = pneg %p31
        $region34: #{inverse_cov_from_positions.1} parent=31 // pred_check_branch
          %154 = sbr.rel (%p152) target = $region36
        $region35: #{inverse_cov_from_positions.1} parent=31 // pred_region
          %156 = dma.done [#allocation3], 16
        $region36: #{inverse_cov_from_positions.1} parent=31 // pred_fallthru
          _
        %157 = sfence
        %p158 = pneg %p31
        %p159 = pneg %p28
        %s160 = smul.u32 2, %s15
        %p161 = scmp.lt.s32.totalorder %s160, 3
        %s162 = scalar_select %p161, %s160, 3
        %s163 = smul.addr %s162, 2
        %s164 = scalar_lea.vmem %s1, %s163
        %p165 = pneg %p57
        %p166 = pneg %p54
        %p167 = pneg %p78
        %p168 = pneg %p75
        %p169 = pneg %p104
        %p170 = pneg %p101
        %s171 = smul.u32 2, %s15
        %p172 = scmp.lt.s32.totalorder %s171, 3
        %s173 = scalar_select %p172, %s171, 3
        %s174 = smul.addr %s173, 2
        %s175 = smul.addr %s174, 8
        %s176 = scalar_lea.vmem %s3, %s175
        %s177 = smul.u32 2, %s15
        %p178 = scmp.lt.s32.totalorder %s177, 3
        %s179 = scalar_select %p178, %s177, 3
        %s180 = smul.addr %s179, 2
        %s181 = scalar_lea.vmem %s1, %s180
        %s182 = smul.u32 2, %s15
        %s183 = smul.u32 2, %s15
        %p184 = scmp.lt.s32.totalorder %s183, 3
        %s185 = scalar_select %p184, %s183, 3
        %s186 = smul.addr %s185, 2
        %s187 = smul.addr %s186, 8
        %s188 = scalar_lea.vmem %s3, %s187
        %s189 = smul.u32 2, %s15
        %s190 = sld [smem:[#allocation2]]
        %s191 = sld [smem:[#allocation2 + $0x1]]
        %s192 = sld [smem:[#allocation2 + $0x2]]
        %s193 = smul.f32 %s192, %s190
        %v194 = vlaneseq
        %v195 = vshrl.u32 %v194, 7
        %v196 = vadd.s32 %v195, 8
        %v197 = vlaneseq
        %v198 = vand.u32 %v197, 127
        %vm199 = vcmp.lt.s32.totalorder %v198, 0
        %v200 = vsub.s32 0, %v198
        %v201 = vsel %vm199, %v200, %v198
        %v202 = vshrl.u32 %v201, 4
        %v203 = vand.u32 %v201, 15
        %v204 = vsub.s32 0, %v203
        %v205 = vsel %vm199, %v204, %v203
        %vm206 = vcmp.ne.s32.totalorder %v205, 0
        %vm207 = vcmp.lt.s32.totalorder %v205, 0
        %vm208 = vmand %vm207, %vm206
        %v209 = vadd.s32 %v205, 16
        %v210 = vsel %vm208, %v209, %v205
        %vm211 = vcmp.eq.s32.totalorder %v195, %v210
        %vm212 = vcmp.eq.s32.totalorder %v196, %v210
        %v213 = vsel %vm211, 1, 0
        %v214 = vsel %vm212, 1, 0
        %v215 = vcvt.s32.f32 %v213
        %v216 = vcvt.s32.f32 %v214
        %v217 = vld [vmem:[%s181] sm:$0x3]
        %v218 = vld [vmem:[%s2] sm:$0xff]
        %v219 = vld [vmem:[%s2 + $0x8] sm:$0xff]
        %v220 = vld [vmem:[%s2 + $0x10] sm:$0xff]
        %v221 = vld [vmem:[%s2 + $0x18] sm:$0xff]
        %v222 = vld [vmem:[%s2 + $0x20] sm:$0xff]
        %v223 = vld [vmem:[%s2 + $0x28] sm:$0xff]
        %v224 = vld [vmem:[%s2 + $0x30] sm:$0xff]
        %v225 = vld [vmem:[%s2 + $0x38] sm:$0xff]
        %v226 = vld [vmem:[%s2 + $0x40] sm:$0xff]
        %v227 = vld [vmem:[%s2 + $0x48] sm:$0xff]
        %v228 = vld [vmem:[%s2 + $0x50] sm:$0xff]
        %v229 = vld [vmem:[%s2 + $0x58] sm:$0xff]
        %v230 = vld [vmem:[%s2 + $0x60] sm:$0xff]
        %v231 = vld [vmem:[%s2 + $0x68] sm:$0xff]
        %v232 = vld [vmem:[%s2 + $0x70] sm:$0xff]
        %v233 = vld [vmem:[%s2 + $0x78] sm:$0xff]
        %v234 = vperm.slane %v217, 0
        %v235 = vsel %vm211, %v234, 0.0
        %v236 = vsel %vm212, %v234, 0.0
        %v237 = vand.u32 %v233, 4294901760
        %238 = vmatpush.msra.mxu0 %v237
        %v239 = vand.u32 %v232, 4294901760
        %240 = vmatpush.msra.mxu0 %v239
        %v241 = vand.u32 %v231, 4294901760
        %242 = vmatpush.msra.mxu0 %v241
        %v243 = vand.u32 %v230, 4294901760
        %244 = vmatpush.msra.mxu0 %v243
        %v245 = vand.u32 %v229, 4294901760
        %246 = vmatpush.msra.mxu0 %v245
        %v247 = vand.u32 %v228, 4294901760
        %248 = vmatpush.msra.mxu0 %v247
        %v249 = vand.u32 %v227, 4294901760
        %250 = vmatpush.msra.mxu0 %v249
        %v251 = vand.u32 %v226, 4294901760
        %252 = vmatpush.msra.mxu0 %v251
        %v253 = vand.u32 %v225, 4294901760
        %254 = vmatpush.msra.mxu0 %v253
        %v255 = vand.u32 %v224, 4294901760
        %256 = vmatpush.msra.mxu0 %v255
        %v257 = vand.u32 %v223, 4294901760
        %258 = vmatpush.msra.mxu0 %v257
        %v259 = vand.u32 %v222, 4294901760
        %260 = vmatpush.msra.mxu0 %v259
        %v261 = vand.u32 %v221, 4294901760
        %262 = vmatpush.msra.mxu0 %v261
        %v263 = vand.u32 %v220, 4294901760
        %264 = vmatpush.msra.mxu0 %v263
        %v265 = vand.u32 %v219, 4294901760
        %266 = vmatpush.msra.mxu0 %v265
        %v267 = vand.u32 %v218, 4294901760
        %268 = vmatpush.msra.mxu0 %v267
        %v269 = vand.u32 %v235, 4294901760
        %v270 = vsub.f32 %v235, %v269
        %v271 = vand.u32 %v270, 4294901760
        %v272 = vsub.f32 %v270, %v271
        %v273 = vand.u32 %v272, 4294901760
        %274 = vmatmul.f32.gmra.mxu0 %v273
        %v275 = vpop.f32.mrf.mxu0
        %v276 = vadd.f32 0.0, %v275
        %v277 = vand.u32 %v236, 4294901760
        %v278 = vsub.f32 %v236, %v277
        %v279 = vand.u32 %v278, 4294901760
        %v280 = vsub.f32 %v278, %v279
        %v281 = vand.u32 %v280, 4294901760
        %282 = vmatmul.f32.gmra.mxu0 %v281
        %v283 = vpop.f32.mrf.mxu0
        %v284 = vadd.f32 0.0, %v283
        %285 = vdwg.mxu0
        %v286 = vand.u32 %v233, 4294901760
        %v287 = vsub.f32 %v233, %v286
        %v288 = vand.u32 %v287, 4294901760
        %v289 = vsub.f32 %v287, %v288
        %v290 = vand.u32 %v289, 4294901760
        %291 = vmatpush.msra.mxu0 %v290
        %v292 = vand.u32 %v232, 4294901760
        %v293 = vsub.f32 %v232, %v292
        %v294 = vand.u32 %v293, 4294901760
        %v295 = vsub.f32 %v293, %v294
        %v296 = vand.u32 %v295, 4294901760
        %297 = vmatpush.msra.mxu0 %v296
        %v298 = vand.u32 %v231, 4294901760
        %v299 = vsub.f32 %v231, %v298
        %v300 = vand.u32 %v299, 4294901760
        %v301 = vsub.f32 %v299, %v300
        %v302 = vand.u32 %v301, 4294901760
        %303 = vmatpush.msra.mxu0 %v302
        %v304 = vand.u32 %v230, 4294901760
        %v305 = vsub.f32 %v230, %v304
        %v306 = vand.u32 %v305, 4294901760
        %v307 = vsub.f32 %v305, %v306
        %v308 = vand.u32 %v307, 4294901760
        %309 = vmatpush.msra.mxu0 %v308
        %v310 = vand.u32 %v229, 4294901760
        %v311 = vsub.f32 %v229, %v310
        %v312 = vand.u32 %v311, 4294901760
        %v313 = vsub.f32 %v311, %v312
        %v314 = vand.u32 %v313, 4294901760
        %315 = vmatpush.msra.mxu0 %v314
        %v316 = vand.u32 %v228, 4294901760
        %v317 = vsub.f32 %v228, %v316
        %v318 = vand.u32 %v317, 4294901760
        %v319 = vsub.f32 %v317, %v318
        %v320 = vand.u32 %v319, 4294901760
        %321 = vmatpush.msra.mxu0 %v320
        %v322 = vand.u32 %v227, 4294901760
        %v323 = vsub.f32 %v227, %v322
        %v324 = vand.u32 %v323, 4294901760
        %v325 = vsub.f32 %v323, %v324
        %v326 = vand.u32 %v325, 4294901760
        %327 = vmatpush.msra.mxu0 %v326
        %v328 = vand.u32 %v226, 4294901760
        %v329 = vsub.f32 %v226, %v328
        %v330 = vand.u32 %v329, 4294901760
        %v331 = vsub.f32 %v329, %v330
        %v332 = vand.u32 %v331, 4294901760
        %333 = vmatpush.msra.mxu0 %v332
        %v334 = vand.u32 %v225, 4294901760
        %v335 = vsub.f32 %v225, %v334
        %v336 = vand.u32 %v335, 4294901760
        %v337 = vsub.f32 %v335, %v336
        %v338 = vand.u32 %v337, 4294901760
        %339 = vmatpush.msra.mxu0 %v338
        %v340 = vand.u32 %v224, 4294901760
        %v341 = vsub.f32 %v224, %v340
        %v342 = vand.u32 %v341, 4294901760
        %v343 = vsub.f32 %v341, %v342
        %v344 = vand.u32 %v343, 4294901760
        %345 = vmatpush.msra.mxu0 %v344
        %v346 = vand.u32 %v223, 4294901760
        %v347 = vsub.f32 %v223, %v346
        %v348 = vand.u32 %v347, 4294901760
        %v349 = vsub.f32 %v347, %v348
        %v350 = vand.u32 %v349, 4294901760
        %351 = vmatpush.msra.mxu0 %v350
        %v352 = vand.u32 %v222, 4294901760
        %v353 = vsub.f32 %v222, %v352
        %v354 = vand.u32 %v353, 4294901760
        %v355 = vsub.f32 %v353, %v354
        %v356 = vand.u32 %v355, 4294901760
        %357 = vmatpush.msra.mxu0 %v356
        %v358 = vand.u32 %v221, 4294901760
        %v359 = vsub.f32 %v221, %v358
        %v360 = vand.u32 %v359, 4294901760
        %v361 = vsub.f32 %v359, %v360
        %v362 = vand.u32 %v361, 4294901760
        %363 = vmatpush.msra.mxu0 %v362
        %v364 = vand.u32 %v220, 4294901760
        %v365 = vsub.f32 %v220, %v364
        %v366 = vand.u32 %v365, 4294901760
        %v367 = vsub.f32 %v365, %v366
        %v368 = vand.u32 %v367, 4294901760
        %369 = vmatpush.msra.mxu0 %v368
        %v370 = vand.u32 %v219, 4294901760
        %v371 = vsub.f32 %v219, %v370
        %v372 = vand.u32 %v371, 4294901760
        %v373 = vsub.f32 %v371, %v372
        %v374 = vand.u32 %v373, 4294901760
        %375 = vmatpush.msra.mxu0 %v374
        %v376 = vand.u32 %v218, 4294901760
        %v377 = vsub.f32 %v218, %v376
        %v378 = vand.u32 %v377, 4294901760
        %v379 = vsub.f32 %v377, %v378
        %v380 = vand.u32 %v379, 4294901760
        %381 = vmatpush.msra.mxu0 %v380
        %v382 = vand.u32 %v235, 4294901760
        %383 = vmatmul.f32.gmra.mxu0 %v382
        %v384 = vpop.f32.mrf.mxu0
        %v385 = vadd.f32 %v276, %v384
        %v386 = vand.u32 %v236, 4294901760
        %387 = vmatmul.f32.gmra.mxu0 %v386
        %v388 = vpop.f32.mrf.mxu0
        %v389 = vadd.f32 %v284, %v388
        %390 = vdwg.mxu0
        %v391 = vand.u32 %v233, 4294901760
        %v392 = vsub.f32 %v233, %v391
        %393 = vmatpush.msra.mxu0 %v392
        %v394 = vand.u32 %v232, 4294901760
        %v395 = vsub.f32 %v232, %v394
        %396 = vmatpush.msra.mxu0 %v395
        %v397 = vand.u32 %v231, 4294901760
        %v398 = vsub.f32 %v231, %v397
        %399 = vmatpush.msra.mxu0 %v398
        %v400 = vand.u32 %v230, 4294901760
        %v401 = vsub.f32 %v230, %v400
        %402 = vmatpush.msra.mxu0 %v401
        %v403 = vand.u32 %v229, 4294901760
        %v404 = vsub.f32 %v229, %v403
        %405 = vmatpush.msra.mxu0 %v404
        %v406 = vand.u32 %v228, 4294901760
        %v407 = vsub.f32 %v228, %v406
        %408 = vmatpush.msra.mxu0 %v407
        %v409 = vand.u32 %v227, 4294901760
        %v410 = vsub.f32 %v227, %v409
        %411 = vmatpush.msra.mxu0 %v410
        %v412 = vand.u32 %v226, 4294901760
        %v413 = vsub.f32 %v226, %v412
        %414 = vmatpush.msra.mxu0 %v413
        %v415 = vand.u32 %v225, 4294901760
        %v416 = vsub.f32 %v225, %v415
        %417 = vmatpush.msra.mxu0 %v416
        %v418 = vand.u32 %v224, 4294901760
        %v419 = vsub.f32 %v224, %v418
        %420 = vmatpush.msra.mxu0 %v419
        %v421 = vand.u32 %v223, 4294901760
        %v422 = vsub.f32 %v223, %v421
        %423 = vmatpush.msra.mxu0 %v422
        %v424 = vand.u32 %v222, 4294901760
        %v425 = vsub.f32 %v222, %v424
        %426 = vmatpush.msra.mxu0 %v425
        %v427 = vand.u32 %v221, 4294901760
        %v428 = vsub.f32 %v221, %v427
        %429 = vmatpush.msra.mxu0 %v428
        %v430 = vand.u32 %v220, 4294901760
        %v431 = vsub.f32 %v220, %v430
        %432 = vmatpush.msra.mxu0 %v431
        %v433 = vand.u32 %v219, 4294901760
        %v434 = vsub.f32 %v219, %v433
        %435 = vmatpush.msra.mxu0 %v434
        %v436 = vand.u32 %v218, 4294901760
        %v437 = vsub.f32 %v218, %v436
        %438 = vmatpush.msra.mxu0 %v437
        %v439 = vand.u32 %v235, 4294901760
        %v440 = vsub.f32 %v235, %v439
        %441 = vmatmul.f32.gmra.mxu0 %v440
        %v442 = vpop.f32.mrf.mxu0
        %v443 = vadd.f32 %v385, %v442
        %v444 = vand.u32 %v236, 4294901760
        %v445 = vsub.f32 %v236, %v444
        %446 = vmatmul.f32.gmra.mxu0 %v445
        %v447 = vpop.f32.mrf.mxu0
        %v448 = vadd.f32 %v389, %v447
        %449 = vdwg.mxu0
        %v450 = vand.u32 %v233, 4294901760
        %451 = vmatpush.msra.mxu0 %v450
        %v452 = vand.u32 %v232, 4294901760
        %453 = vmatpush.msra.mxu0 %v452
        %v454 = vand.u32 %v231, 4294901760
        %455 = vmatpush.msra.mxu0 %v454
        %v456 = vand.u32 %v230, 4294901760
        %457 = vmatpush.msra.mxu0 %v456
        %v458 = vand.u32 %v229, 4294901760
        %459 = vmatpush.msra.mxu0 %v458
        %v460 = vand.u32 %v228, 4294901760
        %461 = vmatpush.msra.mxu0 %v460
        %v462 = vand.u32 %v227, 4294901760
        %463 = vmatpush.msra.mxu0 %v462
        %v464 = vand.u32 %v226, 4294901760
        %465 = vmatpush.msra.mxu0 %v464
        %v466 = vand.u32 %v225, 4294901760
        %467 = vmatpush.msra.mxu0 %v466
        %v468 = vand.u32 %v224, 4294901760
        %469 = vmatpush.msra.mxu0 %v468
        %v470 = vand.u32 %v223, 4294901760
        %471 = vmatpush.msra.mxu0 %v470
        %v472 = vand.u32 %v222, 4294901760
        %473 = vmatpush.msra.mxu0 %v472
        %v474 = vand.u32 %v221, 4294901760
        %475 = vmatpush.msra.mxu0 %v474
        %v476 = vand.u32 %v220, 4294901760
        %477 = vmatpush.msra.mxu0 %v476
        %v478 = vand.u32 %v219, 4294901760
        %479 = vmatpush.msra.mxu0 %v478
        %v480 = vand.u32 %v218, 4294901760
        %481 = vmatpush.msra.mxu0 %v480
        %v482 = vand.u32 %v235, 4294901760
        %v483 = vsub.f32 %v235, %v482
        %v484 = vand.u32 %v483, 4294901760
        %485 = vmatmul.f32.gmra.mxu0 %v484
        %v486 = vpop.f32.mrf.mxu0
        %v487 = vadd.f32 %v443, %v486
        %v488 = vand.u32 %v236, 4294901760
        %v489 = vsub.f32 %v236, %v488
        %v490 = vand.u32 %v489, 4294901760
        %491 = vmatmul.f32.gmra.mxu0 %v490
        %v492 = vpop.f32.mrf.mxu0
        %v493 = vadd.f32 %v448, %v492
        %494 = vdwg.mxu0
        %v495 = vand.u32 %v233, 4294901760
        %v496 = vsub.f32 %v233, %v495
        %v497 = vand.u32 %v496, 4294901760
        %498 = vmatpush.msra.mxu0 %v497
        %v499 = vand.u32 %v232, 4294901760
        %v500 = vsub.f32 %v232, %v499
        %v501 = vand.u32 %v500, 4294901760
        %502 = vmatpush.msra.mxu0 %v501
        %v503 = vand.u32 %v231, 4294901760
        %v504 = vsub.f32 %v231, %v503
        %v505 = vand.u32 %v504, 4294901760
        %506 = vmatpush.msra.mxu0 %v505
        %v507 = vand.u32 %v230, 4294901760
        %v508 = vsub.f32 %v230, %v507
        %v509 = vand.u32 %v508, 4294901760
        %510 = vmatpush.msra.mxu0 %v509
        %v511 = vand.u32 %v229, 4294901760
        %v512 = vsub.f32 %v229, %v511
        %v513 = vand.u32 %v512, 4294901760
        %514 = vmatpush.msra.mxu0 %v513
        %v515 = vand.u32 %v228, 4294901760
        %v516 = vsub.f32 %v228, %v515
        %v517 = vand.u32 %v516, 4294901760
        %518 = vmatpush.msra.mxu0 %v517
        %v519 = vand.u32 %v227, 4294901760
        %v520 = vsub.f32 %v227, %v519
        %v521 = vand.u32 %v520, 4294901760
        %522 = vmatpush.msra.mxu0 %v521
        %v523 = vand.u32 %v226, 4294901760
        %v524 = vsub.f32 %v226, %v523
        %v525 = vand.u32 %v524, 4294901760
        %526 = vmatpush.msra.mxu0 %v525
        %v527 = vand.u32 %v225, 4294901760
        %v528 = vsub.f32 %v225, %v527
        %v529 = vand.u32 %v528, 4294901760
        %530 = vmatpush.msra.mxu0 %v529
        %v531 = vand.u32 %v224, 4294901760
        %v532 = vsub.f32 %v224, %v531
        %v533 = vand.u32 %v532, 4294901760
        %534 = vmatpush.msra.mxu0 %v533
        %v535 = vand.u32 %v223, 4294901760
        %v536 = vsub.f32 %v223, %v535
        %v537 = vand.u32 %v536, 4294901760
        %538 = vmatpush.msra.mxu0 %v537
        %v539 = vand.u32 %v222, 4294901760
        %v540 = vsub.f32 %v222, %v539
        %v541 = vand.u32 %v540, 4294901760
        %542 = vmatpush.msra.mxu0 %v541
        %v543 = vand.u32 %v221, 4294901760
        %v544 = vsub.f32 %v221, %v543
        %v545 = vand.u32 %v544, 4294901760
        %546 = vmatpush.msra.mxu0 %v545
        %v547 = vand.u32 %v220, 4294901760
        %v548 = vsub.f32 %v220, %v547
        %v549 = vand.u32 %v548, 4294901760
        %550 = vmatpush.msra.mxu0 %v549
        %v551 = vand.u32 %v219, 4294901760
        %v552 = vsub.f32 %v219, %v551
        %v553 = vand.u32 %v552, 4294901760
        %554 = vmatpush.msra.mxu0 %v553
        %v555 = vand.u32 %v218, 4294901760
        %v556 = vsub.f32 %v218, %v555
        %v557 = vand.u32 %v556, 4294901760
        %558 = vmatpush.msra.mxu0 %v557
        %v559 = vand.u32 %v235, 4294901760
        %560 = vmatmul.f32.gmra.mxu0 %v559
        %v561 = vpop.f32.mrf.mxu0
        %v562 = vadd.f32 %v487, %v561
        %v563 = vand.u32 %v236, 4294901760
        %564 = vmatmul.f32.gmra.mxu0 %v563
        %v565 = vpop.f32.mrf.mxu0
        %v566 = vadd.f32 %v493, %v565
        %567 = vdwg.mxu0
        %v568 = vand.u32 %v233, 4294901760
        %569 = vmatpush.msra.mxu0 %v568
        %v570 = vand.u32 %v232, 4294901760
        %571 = vmatpush.msra.mxu0 %v570
        %v572 = vand.u32 %v231, 4294901760
        %573 = vmatpush.msra.mxu0 %v572
        %v574 = vand.u32 %v230, 4294901760
        %575 = vmatpush.msra.mxu0 %v574
        %v576 = vand.u32 %v229, 4294901760
        %577 = vmatpush.msra.mxu0 %v576
        %v578 = vand.u32 %v228, 4294901760
        %579 = vmatpush.msra.mxu0 %v578
        %v580 = vand.u32 %v227, 4294901760
        %581 = vmatpush.msra.mxu0 %v580
        %v582 = vand.u32 %v226, 4294901760
        %583 = vmatpush.msra.mxu0 %v582
        %v584 = vand.u32 %v225, 4294901760
        %585 = vmatpush.msra.mxu0 %v584
        %v586 = vand.u32 %v224, 4294901760
        %587 = vmatpush.msra.mxu0 %v586
        %v588 = vand.u32 %v223, 4294901760
        %589 = vmatpush.msra.mxu0 %v588
        %v590 = vand.u32 %v222, 4294901760
        %591 = vmatpush.msra.mxu0 %v590
        %v592 = vand.u32 %v221, 4294901760
        %593 = vmatpush.msra.mxu0 %v592
        %v594 = vand.u32 %v220, 4294901760
        %595 = vmatpush.msra.mxu0 %v594
        %v596 = vand.u32 %v219, 4294901760
        %597 = vmatpush.msra.mxu0 %v596
        %v598 = vand.u32 %v218, 4294901760
        %599 = vmatpush.msra.mxu0 %v598
        %v600 = vand.u32 %v235, 4294901760
        %601 = vmatmul.f32.gmra.mxu0 %v600
        %v602 = vpop.f32.mrf.mxu0
        %v603 = vadd.f32 %v562, %v602
        %v604 = vand.u32 %v236, 4294901760
        %605 = vmatmul.f32.gmra.mxu0 %v604
        %v606 = vpop.f32.mrf.mxu0
        %v607 = vadd.f32 %v566, %v606
        %608 = vdwg.mxu0
        %v609 = vsub.f32 %v603, %v234
        %v610 = vsub.f32 %v607, %v234
        %v611 = vmul.f32 %v609, %v609
        %v612 = vmul.f32 %v610, %v610
        %v613 = vadd.f32 %v611, 0.0
        %v614 = vadd.f32 %v612, 0.0
        %v615 = vperm.slane %v217, 1
        %v616 = vsel %vm211, %v615, 0.0
        %v617 = vsel %vm212, %v615, 0.0
        %v618 = vand.u32 %v233, 4294901760
        %619 = vmatpush.msra.mxu0 %v618
        %v620 = vand.u32 %v232, 4294901760
        %621 = vmatpush.msra.mxu0 %v620
        %v622 = vand.u32 %v231, 4294901760
        %623 = vmatpush.msra.mxu0 %v622
        %v624 = vand.u32 %v230, 4294901760
        %625 = vmatpush.msra.mxu0 %v624
        %v626 = vand.u32 %v229, 4294901760
        %627 = vmatpush.msra.mxu0 %v626
        %v628 = vand.u32 %v228, 4294901760
        %629 = vmatpush.msra.mxu0 %v628
        %v630 = vand.u32 %v227, 4294901760
        %631 = vmatpush.msra.mxu0 %v630
        %v632 = vand.u32 %v226, 4294901760
        %633 = vmatpush.msra.mxu0 %v632
        %v634 = vand.u32 %v225, 4294901760
        %635 = vmatpush.msra.mxu0 %v634
        %v636 = vand.u32 %v224, 4294901760
        %637 = vmatpush.msra.mxu0 %v636
        %v638 = vand.u32 %v223, 4294901760
        %639 = vmatpush.msra.mxu0 %v638
        %v640 = vand.u32 %v222, 4294901760
        %641 = vmatpush.msra.mxu0 %v640
        %v642 = vand.u32 %v221, 4294901760
        %643 = vmatpush.msra.mxu0 %v642
        %v644 = vand.u32 %v220, 4294901760
        %645 = vmatpush.msra.mxu0 %v644
        %v646 = vand.u32 %v219, 4294901760
        %647 = vmatpush.msra.mxu0 %v646
        %v648 = vand.u32 %v218, 4294901760
        %649 = vmatpush.msra.mxu0 %v648
        %v650 = vand.u32 %v616, 4294901760
        %v651 = vsub.f32 %v616, %v650
        %v652 = vand.u32 %v651, 4294901760
        %v653 = vsub.f32 %v651, %v652
        %v654 = vand.u32 %v653, 4294901760
        %655 = vmatmul.f32.gmra.mxu0 %v654
        %v656 = vpop.f32.mrf.mxu0
        %v657 = vadd.f32 0.0, %v656
        %v658 = vand.u32 %v617, 4294901760
        %v659 = vsub.f32 %v617, %v658
        %v660 = vand.u32 %v659, 4294901760
        %v661 = vsub.f32 %v659, %v660
        %v662 = vand.u32 %v661, 4294901760
        %663 = vmatmul.f32.gmra.mxu0 %v662
        %v664 = vpop.f32.mrf.mxu0
        %v665 = vadd.f32 0.0, %v664
        %666 = vdwg.mxu0
        %v667 = vand.u32 %v233, 4294901760
        %v668 = vsub.f32 %v233, %v667
        %v669 = vand.u32 %v668, 4294901760
        %v670 = vsub.f32 %v668, %v669
        %v671 = vand.u32 %v670, 4294901760
        %672 = vmatpush.msra.mxu0 %v671
        %v673 = vand.u32 %v232, 4294901760
        %v674 = vsub.f32 %v232, %v673
        %v675 = vand.u32 %v674, 4294901760
        %v676 = vsub.f32 %v674, %v675
        %v677 = vand.u32 %v676, 4294901760
        %678 = vmatpush.msra.mxu0 %v677
        %v679 = vand.u32 %v231, 4294901760
        %v680 = vsub.f32 %v231, %v679
        %v681 = vand.u32 %v680, 4294901760
        %v682 = vsub.f32 %v680, %v681
        %v683 = vand.u32 %v682, 4294901760
        %684 = vmatpush.msra.mxu0 %v683
        %v685 = vand.u32 %v230, 4294901760
        %v686 = vsub.f32 %v230, %v685
        %v687 = vand.u32 %v686, 4294901760
        %v688 = vsub.f32 %v686, %v687
        %v689 = vand.u32 %v688, 4294901760
        %690 = vmatpush.msra.mxu0 %v689
        %v691 = vand.u32 %v229, 4294901760
        %v692 = vsub.f32 %v229, %v691
        %v693 = vand.u32 %v692, 4294901760
        %v694 = vsub.f32 %v692, %v693
        %v695 = vand.u32 %v694, 4294901760
        %696 = vmatpush.msra.mxu0 %v695
        %v697 = vand.u32 %v228, 4294901760
        %v698 = vsub.f32 %v228, %v697
        %v699 = vand.u32 %v698, 4294901760
        %v700 = vsub.f32 %v698, %v699
        %v701 = vand.u32 %v700, 4294901760
        %702 = vmatpush.msra.mxu0 %v701
        %v703 = vand.u32 %v227, 4294901760
        %v704 = vsub.f32 %v227, %v703
        %v705 = vand.u32 %v704, 4294901760
        %v706 = vsub.f32 %v704, %v705
        %v707 = vand.u32 %v706, 4294901760
        %708 = vmatpush.msra.mxu0 %v707
        %v709 = vand.u32 %v226, 4294901760
        %v710 = vsub.f32 %v226, %v709
        %v711 = vand.u32 %v710, 4294901760
        %v712 = vsub.f32 %v710, %v711
        %v713 = vand.u32 %v712, 4294901760
        %714 = vmatpush.msra.mxu0 %v713
        %v715 = vand.u32 %v225, 4294901760
        %v716 = vsub.f32 %v225, %v715
        %v717 = vand.u32 %v716, 4294901760
        %v718 = vsub.f32 %v716, %v717
        %v719 = vand.u32 %v718, 4294901760
        %720 = vmatpush.msra.mxu0 %v719
        %v721 = vand.u32 %v224, 4294901760
        %v722 = vsub.f32 %v224, %v721
        %v723 = vand.u32 %v722, 4294901760
        %v724 = vsub.f32 %v722, %v723
        %v725 = vand.u32 %v724, 4294901760
        %726 = vmatpush.msra.mxu0 %v725
        %v727 = vand.u32 %v223, 4294901760
        %v728 = vsub.f32 %v223, %v727
        %v729 = vand.u32 %v728, 4294901760
        %v730 = vsub.f32 %v728, %v729
        %v731 = vand.u32 %v730, 4294901760
        %732 = vmatpush.msra.mxu0 %v731
        %v733 = vand.u32 %v222, 4294901760
        %v734 = vsub.f32 %v222, %v733
        %v735 = vand.u32 %v734, 4294901760
        %v736 = vsub.f32 %v734, %v735
        %v737 = vand.u32 %v736, 4294901760
        %738 = vmatpush.msra.mxu0 %v737
        %v739 = vand.u32 %v221, 4294901760
        %v740 = vsub.f32 %v221, %v739
        %v741 = vand.u32 %v740, 4294901760
        %v742 = vsub.f32 %v740, %v741
        %v743 = vand.u32 %v742, 4294901760
        %744 = vmatpush.msra.mxu0 %v743
        %v745 = vand.u32 %v220, 4294901760
        %v746 = vsub.f32 %v220, %v745
        %v747 = vand.u32 %v746, 4294901760
        %v748 = vsub.f32 %v746, %v747
        %v749 = vand.u32 %v748, 4294901760
        %750 = vmatpush.msra.mxu0 %v749
        %v751 = vand.u32 %v219, 4294901760
        %v752 = vsub.f32 %v219, %v751
        %v753 = vand.u32 %v752, 4294901760
        %v754 = vsub.f32 %v752, %v753
        %v755 = vand.u32 %v754, 4294901760
        %756 = vmatpush.msra.mxu0 %v755
        %v757 = vand.u32 %v218, 4294901760
        %v758 = vsub.f32 %v218, %v757
        %v759 = vand.u32 %v758, 4294901760
        %v760 = vsub.f32 %v758, %v759
        %v761 = vand.u32 %v760, 4294901760
        %762 = vmatpush.msra.mxu0 %v761
        %v763 = vand.u32 %v616, 4294901760
        %764 = vmatmul.f32.gmra.mxu0 %v763
        %v765 = vpop.f32.mrf.mxu0
        %v766 = vadd.f32 %v657, %v765
        %v767 = vand.u32 %v617, 4294901760
        %768 = vmatmul.f32.gmra.mxu0 %v767
        %v769 = vpop.f32.mrf.mxu0
        %v770 = vadd.f32 %v665, %v769
        %771 = vdwg.mxu0
        %v772 = vand.u32 %v233, 4294901760
        %v773 = vsub.f32 %v233, %v772
        %774 = vmatpush.msra.mxu0 %v773
        %v775 = vand.u32 %v232, 4294901760
        %v776 = vsub.f32 %v232, %v775
        %777 = vmatpush.msra.mxu0 %v776
        %v778 = vand.u32 %v231, 4294901760
        %v779 = vsub.f32 %v231, %v778
        %780 = vmatpush.msra.mxu0 %v779
        %v781 = vand.u32 %v230, 4294901760
        %v782 = vsub.f32 %v230, %v781
        %783 = vmatpush.msra.mxu0 %v782
        %v784 = vand.u32 %v229, 4294901760
        %v785 = vsub.f32 %v229, %v784
        %786 = vmatpush.msra.mxu0 %v785
        %v787 = vand.u32 %v228, 4294901760
        %v788 = vsub.f32 %v228, %v787
        %789 = vmatpush.msra.mxu0 %v788
        %v790 = vand.u32 %v227, 4294901760
        %v791 = vsub.f32 %v227, %v790
        %792 = vmatpush.msra.mxu0 %v791
        %v793 = vand.u32 %v226, 4294901760
        %v794 = vsub.f32 %v226, %v793
        %795 = vmatpush.msra.mxu0 %v794
        %v796 = vand.u32 %v225, 4294901760
        %v797 = vsub.f32 %v225, %v796
        %798 = vmatpush.msra.mxu0 %v797
        %v799 = vand.u32 %v224, 4294901760
        %v800 = vsub.f32 %v224, %v799
        %801 = vmatpush.msra.mxu0 %v800
        %v802 = vand.u32 %v223, 4294901760
        %v803 = vsub.f32 %v223, %v802
        %804 = vmatpush.msra.mxu0 %v803
        %v805 = vand.u32 %v222, 4294901760
        %v806 = vsub.f32 %v222, %v805
        %807 = vmatpush.msra.mxu0 %v806
        %v808 = vand.u32 %v221, 4294901760
        %v809 = vsub.f32 %v221, %v808
        %810 = vmatpush.msra.mxu0 %v809
        %v811 = vand.u32 %v220, 4294901760
        %v812 = vsub.f32 %v220, %v811
        %813 = vmatpush.msra.mxu0 %v812
        %v814 = vand.u32 %v219, 4294901760
        %v815 = vsub.f32 %v219, %v814
        %816 = vmatpush.msra.mxu0 %v815
        %v817 = vand.u32 %v218, 4294901760
        %v818 = vsub.f32 %v218, %v817
        %819 = vmatpush.msra.mxu0 %v818
        %v820 = vand.u32 %v616, 4294901760
        %v821 = vsub.f32 %v616, %v820
        %822 = vmatmul.f32.gmra.mxu0 %v821
        %v823 = vpop.f32.mrf.mxu0
        %v824 = vadd.f32 %v766, %v823
        %v825 = vand.u32 %v617, 4294901760
        %v826 = vsub.f32 %v617, %v825
        %827 = vmatmul.f32.gmra.mxu0 %v826
        %v828 = vpop.f32.mrf.mxu0
        %v829 = vadd.f32 %v770, %v828
        %830 = vdwg.mxu0
        %v831 = vand.u32 %v233, 4294901760
        %832 = vmatpush.msra.mxu0 %v831
        %v833 = vand.u32 %v232, 4294901760
        %834 = vmatpush.msra.mxu0 %v833
        %v835 = vand.u32 %v231, 4294901760
        %836 = vmatpush.msra.mxu0 %v835
        %v837 = vand.u32 %v230, 4294901760
        %838 = vmatpush.msra.mxu0 %v837
        %v839 = vand.u32 %v229, 4294901760
        %840 = vmatpush.msra.mxu0 %v839
        %v841 = vand.u32 %v228, 4294901760
        %842 = vmatpush.msra.mxu0 %v841
        %v843 = vand.u32 %v227, 4294901760
        %844 = vmatpush.msra.mxu0 %v843
        %v845 = vand.u32 %v226, 4294901760
        %846 = vmatpush.msra.mxu0 %v845
        %v847 = vand.u32 %v225, 4294901760
        %848 = vmatpush.msra.mxu0 %v847
        %v849 = vand.u32 %v224, 4294901760
        %850 = vmatpush.msra.mxu0 %v849
        %v851 = vand.u32 %v223, 4294901760
        %852 = vmatpush.msra.mxu0 %v851
        %v853 = vand.u32 %v222, 4294901760
        %854 = vmatpush.msra.mxu0 %v853
        %v855 = vand.u32 %v221, 4294901760
        %856 = vmatpush.msra.mxu0 %v855
        %v857 = vand.u32 %v220, 4294901760
        %858 = vmatpush.msra.mxu0 %v857
        %v859 = vand.u32 %v219, 4294901760
        %860 = vmatpush.msra.mxu0 %v859
        %v861 = vand.u32 %v218, 4294901760
        %862 = vmatpush.msra.mxu0 %v861
        %v863 = vand.u32 %v616, 4294901760
        %v864 = vsub.f32 %v616, %v863
        %v865 = vand.u32 %v864, 4294901760
        %866 = vmatmul.f32.gmra.mxu0 %v865
        %v867 = vpop.f32.mrf.mxu0
        %v868 = vadd.f32 %v824, %v867
        %v869 = vand.u32 %v617, 4294901760
        %v870 = vsub.f32 %v617, %v869
        %v871 = vand.u32 %v870, 4294901760
        %872 = vmatmul.f32.gmra.mxu0 %v871
        %v873 = vpop.f32.mrf.mxu0
        %v874 = vadd.f32 %v829, %v873
        %875 = vdwg.mxu0
        %v876 = vand.u32 %v233, 4294901760
        %v877 = vsub.f32 %v233, %v876
        %v878 = vand.u32 %v877, 4294901760
        %879 = vmatpush.msra.mxu0 %v878
        %v880 = vand.u32 %v232, 4294901760
        %v881 = vsub.f32 %v232, %v880
        %v882 = vand.u32 %v881, 4294901760
        %883 = vmatpush.msra.mxu0 %v882
        %v884 = vand.u32 %v231, 4294901760
        %v885 = vsub.f32 %v231, %v884
        %v886 = vand.u32 %v885, 4294901760
        %887 = vmatpush.msra.mxu0 %v886
        %v888 = vand.u32 %v230, 4294901760
        %v889 = vsub.f32 %v230, %v888
        %v890 = vand.u32 %v889, 4294901760
        %891 = vmatpush.msra.mxu0 %v890
        %v892 = vand.u32 %v229, 4294901760
        %v893 = vsub.f32 %v229, %v892
        %v894 = vand.u32 %v893, 4294901760
        %895 = vmatpush.msra.mxu0 %v894
        %v896 = vand.u32 %v228, 4294901760
        %v897 = vsub.f32 %v228, %v896
        %v898 = vand.u32 %v897, 4294901760
        %899 = vmatpush.msra.mxu0 %v898
        %v900 = vand.u32 %v227, 4294901760
        %v901 = vsub.f32 %v227, %v900
        %v902 = vand.u32 %v901, 4294901760
        %903 = vmatpush.msra.mxu0 %v902
        %v904 = vand.u32 %v226, 4294901760
        %v905 = vsub.f32 %v226, %v904
        %v906 = vand.u32 %v905, 4294901760
        %907 = vmatpush.msra.mxu0 %v906
        %v908 = vand.u32 %v225, 4294901760
        %v909 = vsub.f32 %v225, %v908
        %v910 = vand.u32 %v909, 4294901760
        %911 = vmatpush.msra.mxu0 %v910
        %v912 = vand.u32 %v224, 4294901760
        %v913 = vsub.f32 %v224, %v912
        %v914 = vand.u32 %v913, 4294901760
        %915 = vmatpush.msra.mxu0 %v914
        %v916 = vand.u32 %v223, 4294901760
        %v917 = vsub.f32 %v223, %v916
        %v918 = vand.u32 %v917, 4294901760
        %919 = vmatpush.msra.mxu0 %v918
        %v920 = vand.u32 %v222, 4294901760
        %v921 = vsub.f32 %v222, %v920
        %v922 = vand.u32 %v921, 4294901760
        %923 = vmatpush.msra.mxu0 %v922
        %v924 = vand.u32 %v221, 4294901760
        %v925 = vsub.f32 %v221, %v924
        %v926 = vand.u32 %v925, 4294901760
        %927 = vmatpush.msra.mxu0 %v926
        %v928 = vand.u32 %v220, 4294901760
        %v929 = vsub.f32 %v220, %v928
        %v930 = vand.u32 %v929, 4294901760
        %931 = vmatpush.msra.mxu0 %v930
        %v932 = vand.u32 %v219, 4294901760
        %v933 = vsub.f32 %v219, %v932
        %v934 = vand.u32 %v933, 4294901760
        %935 = vmatpush.msra.mxu0 %v934
        %v936 = vand.u32 %v218, 4294901760
        %v937 = vsub.f32 %v218, %v936
        %v938 = vand.u32 %v937, 4294901760
        %939 = vmatpush.msra.mxu0 %v938
        %v940 = vand.u32 %v616, 4294901760
        %941 = vmatmul.f32.gmra.mxu0 %v940
        %v942 = vpop.f32.mrf.mxu0
        %v943 = vadd.f32 %v868, %v942
        %v944 = vand.u32 %v617, 4294901760
        %945 = vmatmul.f32.gmra.mxu0 %v944
        %v946 = vpop.f32.mrf.mxu0
        %v947 = vadd.f32 %v874, %v946
        %948 = vdwg.mxu0
        %v949 = vand.u32 %v233, 4294901760
        %950 = vmatpush.msra.mxu0 %v949
        %v951 = vand.u32 %v232, 4294901760
        %952 = vmatpush.msra.mxu0 %v951
        %v953 = vand.u32 %v231, 4294901760
        %954 = vmatpush.msra.mxu0 %v953
        %v955 = vand.u32 %v230, 4294901760
        %956 = vmatpush.msra.mxu0 %v955
        %v957 = vand.u32 %v229, 4294901760
        %958 = vmatpush.msra.mxu0 %v957
        %v959 = vand.u32 %v228, 4294901760
        %960 = vmatpush.msra.mxu0 %v959
        %v961 = vand.u32 %v227, 4294901760
        %962 = vmatpush.msra.mxu0 %v961
        %v963 = vand.u32 %v226, 4294901760
        %964 = vmatpush.msra.mxu0 %v963
        %v965 = vand.u32 %v225, 4294901760
        %966 = vmatpush.msra.mxu0 %v965
        %v967 = vand.u32 %v224, 4294901760
        %968 = vmatpush.msra.mxu0 %v967
        %v969 = vand.u32 %v223, 4294901760
        %970 = vmatpush.msra.mxu0 %v969
        %v971 = vand.u32 %v222, 4294901760
        %972 = vmatpush.msra.mxu0 %v971
        %v973 = vand.u32 %v221, 4294901760
        %974 = vmatpush.msra.mxu0 %v973
        %v975 = vand.u32 %v220, 4294901760
        %976 = vmatpush.msra.mxu0 %v975
        %v977 = vand.u32 %v219, 4294901760
        %978 = vmatpush.msra.mxu0 %v977
        %v979 = vand.u32 %v218, 4294901760
        %980 = vmatpush.msra.mxu0 %v979
        %v981 = vand.u32 %v616, 4294901760
        %982 = vmatmul.f32.gmra.mxu0 %v981
        %v983 = vpop.f32.mrf.mxu0
        %v984 = vadd.f32 %v943, %v983
        %v985 = vand.u32 %v617, 4294901760
        %986 = vmatmul.f32.gmra.mxu0 %v985
        %v987 = vpop.f32.mrf.mxu0
        %v988 = vadd.f32 %v947, %v987
        %989 = vdwg.mxu0
        %v990 = vsub.f32 %v984, %v615
        %v991 = vsub.f32 %v988, %v615
        %v992 = vmul.f32 %v990, %v990
        %v993 = vmul.f32 %v991, %v991
        %v994 = vadd.f32 %v613, %v992
        %v995 = vadd.f32 %v614, %v993
        %v996 = vrsqrt.pop %v994
        %v997 = vmul.f32 %v996, %v994
        %v998 = vmul.f32 %v997, %v996
        %v999 = vmul.f32 0.5, %v998
        %v1000 = vsub.f32 1.5, %v999
        %v1001 = vmul.f32 %v996, %v1000
        %v1002 = vmul.f32 %v994, %v1001
        %vm1003 = vcmp.eq.f32.partialorder %v994, inf
        %v1004 = vsel %vm1003, %v994, %v1002
        %vm1005 = vcmp.eq.f32.partialorder %v994, 0.0
        %v1006 = vand.u32 %v994, 2147483648
        %v1007 = vsel %vm1005, %v1006, %v1004
        %v1008 = vrsqrt.pop %v995
        %v1009 = vmul.f32 %v1008, %v995
        %v1010 = vmul.f32 %v1009, %v1008
        %v1011 = vmul.f32 0.5, %v1010
        %v1012 = vsub.f32 1.5, %v1011
        %v1013 = vmul.f32 %v1008, %v1012
        %v1014 = vmul.f32 %v995, %v1013
        %vm1015 = vcmp.eq.f32.partialorder %v995, inf
        %v1016 = vsel %vm1015, %v995, %v1014
        %vm1017 = vcmp.eq.f32.partialorder %v995, 0.0
        %v1018 = vand.u32 %v995, 2147483648
        %v1019 = vsel %vm1017, %v1018, %v1016
        %s1020 = ssub.f32 0.0, %s191
        %v1021 = vstv %s1020
        %v1022 = vmul.f32 %v1021, %v1007
        %v1023 = vmul.f32 %v1021, %v1019
        %v1024 = vmul.f32 %v1022, 1.442695
        %v1025 = vpow.pop %v1024
        %v1026 = vmul.f32 %v1023, 1.442695
        %v1027 = vpow.pop %v1026
        %v1028 = vstv %s190
        %v1029 = vmul.f32 %v1028, %v1025
        %v1030 = vmul.f32 %v1028, %v1027
        %v1031 = vstv %s193
        %v1032 = vmul.f32 %v1031, %v215
        %v1033 = vmul.f32 %v1031, %v216
        %v1034 = vadd.f32 %v1029, %v1032
        %v1035 = vadd.f32 %v1030, %v1033
        %s1036 = scalar_lea.vmem %s181, 2
        %v1037 = vld [vmem:[%s1036] sm:$0x3]
        %v1038 = vperm.slane %v1037, 0
        %v1039 = vsel %vm211, %v1038, 0.0
        %v1040 = vsel %vm212, %v1038, 0.0
        %v1041 = vand.u32 %v233, 4294901760
        %1042 = vmatpush.msra.mxu0 %v1041
        %v1043 = vand.u32 %v232, 4294901760
        %1044 = vmatpush.msra.mxu0 %v1043
        %v1045 = vand.u32 %v231, 4294901760
        %1046 = vmatpush.msra.mxu0 %v1045
        %v1047 = vand.u32 %v230, 4294901760
        %1048 = vmatpush.msra.mxu0 %v1047
        %v1049 = vand.u32 %v229, 4294901760
        %1050 = vmatpush.msra.mxu0 %v1049
        %v1051 = vand.u32 %v228, 4294901760
        %1052 = vmatpush.msra.mxu0 %v1051
        %v1053 = vand.u32 %v227, 4294901760
        %1054 = vmatpush.msra.mxu0 %v1053
        %v1055 = vand.u32 %v226, 4294901760
        %1056 = vmatpush.msra.mxu0 %v1055
        %v1057 = vand.u32 %v225, 4294901760
        %1058 = vmatpush.msra.mxu0 %v1057
        %v1059 = vand.u32 %v224, 4294901760
        %1060 = vmatpush.msra.mxu0 %v1059
        %v1061 = vand.u32 %v223, 4294901760
        %1062 = vmatpush.msra.mxu0 %v1061
        %v1063 = vand.u32 %v222, 4294901760
        %1064 = vmatpush.msra.mxu0 %v1063
        %v1065 = vand.u32 %v221, 4294901760
        %1066 = vmatpush.msra.mxu0 %v1065
        %v1067 = vand.u32 %v220, 4294901760
        %1068 = vmatpush.msra.mxu0 %v1067
        %v1069 = vand.u32 %v219, 4294901760
        %1070 = vmatpush.msra.mxu0 %v1069
        %v1071 = vand.u32 %v218, 4294901760
        %1072 = vmatpush.msra.mxu0 %v1071
        %v1073 = vand.u32 %v1039, 4294901760
        %v1074 = vsub.f32 %v1039, %v1073
        %v1075 = vand.u32 %v1074, 4294901760
        %v1076 = vsub.f32 %v1074, %v1075
        %v1077 = vand.u32 %v1076, 4294901760
        %1078 = vmatmul.f32.gmra.mxu0 %v1077
        %v1079 = vpop.f32.mrf.mxu0
        %v1080 = vadd.f32 0.0, %v1079
        %v1081 = vand.u32 %v1040, 4294901760
        %v1082 = vsub.f32 %v1040, %v1081
        %v1083 = vand.u32 %v1082, 4294901760
        %v1084 = vsub.f32 %v1082, %v1083
        %v1085 = vand.u32 %v1084, 4294901760
        %1086 = vmatmul.f32.gmra.mxu0 %v1085
        %v1087 = vpop.f32.mrf.mxu0
        %v1088 = vadd.f32 0.0, %v1087
        %1089 = vdwg.mxu0
        %v1090 = vand.u32 %v233, 4294901760
        %v1091 = vsub.f32 %v233, %v1090
        %v1092 = vand.u32 %v1091, 4294901760
        %v1093 = vsub.f32 %v1091, %v1092
        %v1094 = vand.u32 %v1093, 4294901760
        %1095 = vmatpush.msra.mxu0 %v1094
        %v1096 = vand.u32 %v232, 4294901760
        %v1097 = vsub.f32 %v232, %v1096
        %v1098 = vand.u32 %v1097, 4294901760
        %v1099 = vsub.f32 %v1097, %v1098
        %v1100 = vand.u32 %v1099, 4294901760
        %1101 = vmatpush.msra.mxu0 %v1100
        %v1102 = vand.u32 %v231, 4294901760
        %v1103 = vsub.f32 %v231, %v1102
        %v1104 = vand.u32 %v1103, 4294901760
        %v1105 = vsub.f32 %v1103, %v1104
        %v1106 = vand.u32 %v1105, 4294901760
        %1107 = vmatpush.msra.mxu0 %v1106
        %v1108 = vand.u32 %v230, 4294901760
        %v1109 = vsub.f32 %v230, %v1108
        %v1110 = vand.u32 %v1109, 4294901760
        %v1111 = vsub.f32 %v1109, %v1110
        %v1112 = vand.u32 %v1111, 4294901760
        %1113 = vmatpush.msra.mxu0 %v1112
        %v1114 = vand.u32 %v229, 4294901760
        %v1115 = vsub.f32 %v229, %v1114
        %v1116 = vand.u32 %v1115, 4294901760
        %v1117 = vsub.f32 %v1115, %v1116
        %v1118 = vand.u32 %v1117, 4294901760
        %1119 = vmatpush.msra.mxu0 %v1118
        %v1120 = vand.u32 %v228, 4294901760
        %v1121 = vsub.f32 %v228, %v1120
        %v1122 = vand.u32 %v1121, 4294901760
        %v1123 = vsub.f32 %v1121, %v1122
        %v1124 = vand.u32 %v1123, 4294901760
        %1125 = vmatpush.msra.mxu0 %v1124
        %v1126 = vand.u32 %v227, 4294901760
        %v1127 = vsub.f32 %v227, %v1126
        %v1128 = vand.u32 %v1127, 4294901760
        %v1129 = vsub.f32 %v1127, %v1128
        %v1130 = vand.u32 %v1129, 4294901760
        %1131 = vmatpush.msra.mxu0 %v1130
        %v1132 = vand.u32 %v226, 4294901760
        %v1133 = vsub.f32 %v226, %v1132
        %v1134 = vand.u32 %v1133, 4294901760
        %v1135 = vsub.f32 %v1133, %v1134
        %v1136 = vand.u32 %v1135, 4294901760
        %1137 = vmatpush.msra.mxu0 %v1136
        %v1138 = vand.u32 %v225, 4294901760
        %v1139 = vsub.f32 %v225, %v1138
        %v1140 = vand.u32 %v1139, 4294901760
        %v1141 = vsub.f32 %v1139, %v1140
        %v1142 = vand.u32 %v1141, 4294901760
        %1143 = vmatpush.msra.mxu0 %v1142
        %v1144 = vand.u32 %v224, 4294901760
        %v1145 = vsub.f32 %v224, %v1144
        %v1146 = vand.u32 %v1145, 4294901760
        %v1147 = vsub.f32 %v1145, %v1146
        %v1148 = vand.u32 %v1147, 4294901760
        %1149 = vmatpush.msra.mxu0 %v1148
        %v1150 = vand.u32 %v223, 4294901760
        %v1151 = vsub.f32 %v223, %v1150
        %v1152 = vand.u32 %v1151, 4294901760
        %v1153 = vsub.f32 %v1151, %v1152
        %v1154 = vand.u32 %v1153, 4294901760
        %1155 = vmatpush.msra.mxu0 %v1154
        %v1156 = vand.u32 %v222, 4294901760
        %v1157 = vsub.f32 %v222, %v1156
        %v1158 = vand.u32 %v1157, 4294901760
        %v1159 = vsub.f32 %v1157, %v1158
        %v1160 = vand.u32 %v1159, 4294901760
        %1161 = vmatpush.msra.mxu0 %v1160
        %v1162 = vand.u32 %v221, 4294901760
        %v1163 = vsub.f32 %v221, %v1162
        %v1164 = vand.u32 %v1163, 4294901760
        %v1165 = vsub.f32 %v1163, %v1164
        %v1166 = vand.u32 %v1165, 4294901760
        %1167 = vmatpush.msra.mxu0 %v1166
        %v1168 = vand.u32 %v220, 4294901760
        %v1169 = vsub.f32 %v220, %v1168
        %v1170 = vand.u32 %v1169, 4294901760
        %v1171 = vsub.f32 %v1169, %v1170
        %v1172 = vand.u32 %v1171, 4294901760
        %1173 = vmatpush.msra.mxu0 %v1172
        %v1174 = vand.u32 %v219, 4294901760
        %v1175 = vsub.f32 %v219, %v1174
        %v1176 = vand.u32 %v1175, 4294901760
        %v1177 = vsub.f32 %v1175, %v1176
        %v1178 = vand.u32 %v1177, 4294901760
        %1179 = vmatpush.msra.mxu0 %v1178
        %v1180 = vand.u32 %v218, 4294901760
        %v1181 = vsub.f32 %v218, %v1180
        %v1182 = vand.u32 %v1181, 4294901760
        %v1183 = vsub.f32 %v1181, %v1182
        %v1184 = vand.u32 %v1183, 4294901760
        %1185 = vmatpush.msra.mxu0 %v1184
        %v1186 = vand.u32 %v1039, 4294901760
        %1187 = vmatmul.f32.gmra.mxu0 %v1186
        %v1188 = vpop.f32.mrf.mxu0
        %v1189 = vadd.f32 %v1080, %v1188
        %v1190 = vand.u32 %v1040, 4294901760
        %1191 = vmatmul.f32.gmra.mxu0 %v1190
        %v1192 = vpop.f32.mrf.mxu0
        %v1193 = vadd.f32 %v1088, %v1192
        %1194 = vdwg.mxu0
        %v1195 = vand.u32 %v233, 4294901760
        %v1196 = vsub.f32 %v233, %v1195
        %1197 = vmatpush.msra.mxu0 %v1196
        %v1198 = vand.u32 %v232, 4294901760
        %v1199 = vsub.f32 %v232, %v1198
        %1200 = vmatpush.msra.mxu0 %v1199
        %v1201 = vand.u32 %v231, 4294901760
        %v1202 = vsub.f32 %v231, %v1201
        %1203 = vmatpush.msra.mxu0 %v1202
        %v1204 = vand.u32 %v230, 4294901760
        %v1205 = vsub.f32 %v230, %v1204
        %1206 = vmatpush.msra.mxu0 %v1205
        %v1207 = vand.u32 %v229, 4294901760
        %v1208 = vsub.f32 %v229, %v1207
        %1209 = vmatpush.msra.mxu0 %v1208
        %v1210 = vand.u32 %v228, 4294901760
        %v1211 = vsub.f32 %v228, %v1210
        %1212 = vmatpush.msra.mxu0 %v1211
        %v1213 = vand.u32 %v227, 4294901760
        %v1214 = vsub.f32 %v227, %v1213
        %1215 = vmatpush.msra.mxu0 %v1214
        %v1216 = vand.u32 %v226, 4294901760
        %v1217 = vsub.f32 %v226, %v1216
        %1218 = vmatpush.msra.mxu0 %v1217
        %v1219 = vand.u32 %v225, 4294901760
        %v1220 = vsub.f32 %v225, %v1219
        %1221 = vmatpush.msra.mxu0 %v1220
        %v1222 = vand.u32 %v224, 4294901760
        %v1223 = vsub.f32 %v224, %v1222
        %1224 = vmatpush.msra.mxu0 %v1223
        %v1225 = vand.u32 %v223, 4294901760
        %v1226 = vsub.f32 %v223, %v1225
        %1227 = vmatpush.msra.mxu0 %v1226
        %v1228 = vand.u32 %v222, 4294901760
        %v1229 = vsub.f32 %v222, %v1228
        %1230 = vmatpush.msra.mxu0 %v1229
        %v1231 = vand.u32 %v221, 4294901760
        %v1232 = vsub.f32 %v221, %v1231
        %1233 = vmatpush.msra.mxu0 %v1232
        %v1234 = vand.u32 %v220, 4294901760
        %v1235 = vsub.f32 %v220, %v1234
        %1236 = vmatpush.msra.mxu0 %v1235
        %v1237 = vand.u32 %v219, 4294901760
        %v1238 = vsub.f32 %v219, %v1237
        %1239 = vmatpush.msra.mxu0 %v1238
        %v1240 = vand.u32 %v218, 4294901760
        %v1241 = vsub.f32 %v218, %v1240
        %1242 = vmatpush.msra.mxu0 %v1241
        %v1243 = vand.u32 %v1039, 4294901760
        %v1244 = vsub.f32 %v1039, %v1243
        %1245 = vmatmul.f32.gmra.mxu0 %v1244
        %v1246 = vpop.f32.mrf.mxu0
        %v1247 = vadd.f32 %v1189, %v1246
        %v1248 = vand.u32 %v1040, 4294901760
        %v1249 = vsub.f32 %v1040, %v1248
        %1250 = vmatmul.f32.gmra.mxu0 %v1249
        %v1251 = vpop.f32.mrf.mxu0
        %v1252 = vadd.f32 %v1193, %v1251
        %1253 = vdwg.mxu0
        %v1254 = vand.u32 %v233, 4294901760
        %1255 = vmatpush.msra.mxu0 %v1254
        %v1256 = vand.u32 %v232, 4294901760
        %1257 = vmatpush.msra.mxu0 %v1256
        %v1258 = vand.u32 %v231, 4294901760
        %1259 = vmatpush.msra.mxu0 %v1258
        %v1260 = vand.u32 %v230, 4294901760
        %1261 = vmatpush.msra.mxu0 %v1260
        %v1262 = vand.u32 %v229, 4294901760
        %1263 = vmatpush.msra.mxu0 %v1262
        %v1264 = vand.u32 %v228, 4294901760
        %1265 = vmatpush.msra.mxu0 %v1264
        %v1266 = vand.u32 %v227, 4294901760
        %1267 = vmatpush.msra.mxu0 %v1266
        %v1268 = vand.u32 %v226, 4294901760
        %1269 = vmatpush.msra.mxu0 %v1268
        %v1270 = vand.u32 %v225, 4294901760
        %1271 = vmatpush.msra.mxu0 %v1270
        %v1272 = vand.u32 %v224, 4294901760
        %1273 = vmatpush.msra.mxu0 %v1272
        %v1274 = vand.u32 %v223, 4294901760
        %1275 = vmatpush.msra.mxu0 %v1274
        %v1276 = vand.u32 %v222, 4294901760
        %1277 = vmatpush.msra.mxu0 %v1276
        %v1278 = vand.u32 %v221, 4294901760
        %1279 = vmatpush.msra.mxu0 %v1278
        %v1280 = vand.u32 %v220, 4294901760
        %1281 = vmatpush.msra.mxu0 %v1280
        %v1282 = vand.u32 %v219, 4294901760
        %1283 = vmatpush.msra.mxu0 %v1282
        %v1284 = vand.u32 %v218, 4294901760
        %1285 = vmatpush.msra.mxu0 %v1284
        %v1286 = vand.u32 %v1039, 4294901760
        %v1287 = vsub.f32 %v1039, %v1286
        %v1288 = vand.u32 %v1287, 4294901760
        %1289 = vmatmul.f32.gmra.mxu0 %v1288
        %v1290 = vpop.f32.mrf.mxu0
        %v1291 = vadd.f32 %v1247, %v1290
        %v1292 = vand.u32 %v1040, 4294901760
        %v1293 = vsub.f32 %v1040, %v1292
        %v1294 = vand.u32 %v1293, 4294901760
        %1295 = vmatmul.f32.gmra.mxu0 %v1294
        %v1296 = vpop.f32.mrf.mxu0
        %v1297 = vadd.f32 %v1252, %v1296
        %1298 = vdwg.mxu0
        %v1299 = vand.u32 %v233, 4294901760
        %v1300 = vsub.f32 %v233, %v1299
        %v1301 = vand.u32 %v1300, 4294901760
        %1302 = vmatpush.msra.mxu0 %v1301
        %v1303 = vand.u32 %v232, 4294901760
        %v1304 = vsub.f32 %v232, %v1303
        %v1305 = vand.u32 %v1304, 4294901760
        %1306 = vmatpush.msra.mxu0 %v1305
        %v1307 = vand.u32 %v231, 4294901760
        %v1308 = vsub.f32 %v231, %v1307
        %v1309 = vand.u32 %v1308, 4294901760
        %1310 = vmatpush.msra.mxu0 %v1309
        %v1311 = vand.u32 %v230, 4294901760
        %v1312 = vsub.f32 %v230, %v1311
        %v1313 = vand.u32 %v1312, 4294901760
        %1314 = vmatpush.msra.mxu0 %v1313
        %v1315 = vand.u32 %v229, 4294901760
        %v1316 = vsub.f32 %v229, %v1315
        %v1317 = vand.u32 %v1316, 4294901760
        %1318 = vmatpush.msra.mxu0 %v1317
        %v1319 = vand.u32 %v228, 4294901760
        %v1320 = vsub.f32 %v228, %v1319
        %v1321 = vand.u32 %v1320, 4294901760
        %1322 = vmatpush.msra.mxu0 %v1321
        %v1323 = vand.u32 %v227, 4294901760
        %v1324 = vsub.f32 %v227, %v1323
        %v1325 = vand.u32 %v1324, 4294901760
        %1326 = vmatpush.msra.mxu0 %v1325
        %v1327 = vand.u32 %v226, 4294901760
        %v1328 = vsub.f32 %v226, %v1327
        %v1329 = vand.u32 %v1328, 4294901760
        %1330 = vmatpush.msra.mxu0 %v1329
        %v1331 = vand.u32 %v225, 4294901760
        %v1332 = vsub.f32 %v225, %v1331
        %v1333 = vand.u32 %v1332, 4294901760
        %1334 = vmatpush.msra.mxu0 %v1333
        %v1335 = vand.u32 %v224, 4294901760
        %v1336 = vsub.f32 %v224, %v1335
        %v1337 = vand.u32 %v1336, 4294901760
        %1338 = vmatpush.msra.mxu0 %v1337
        %v1339 = vand.u32 %v223, 4294901760
        %v1340 = vsub.f32 %v223, %v1339
        %v1341 = vand.u32 %v1340, 4294901760
        %1342 = vmatpush.msra.mxu0 %v1341
        %v1343 = vand.u32 %v222, 4294901760
        %v1344 = vsub.f32 %v222, %v1343
        %v1345 = vand.u32 %v1344, 4294901760
        %1346 = vmatpush.msra.mxu0 %v1345
        %v1347 = vand.u32 %v221, 4294901760
        %v1348 = vsub.f32 %v221, %v1347
        %v1349 = vand.u32 %v1348, 4294901760
        %1350 = vmatpush.msra.mxu0 %v1349
        %v1351 = vand.u32 %v220, 4294901760
        %v1352 = vsub.f32 %v220, %v1351
        %v1353 = vand.u32 %v1352, 4294901760
        %1354 = vmatpush.msra.mxu0 %v1353
        %v1355 = vand.u32 %v219, 4294901760
        %v1356 = vsub.f32 %v219, %v1355
        %v1357 = vand.u32 %v1356, 4294901760
        %1358 = vmatpush.msra.mxu0 %v1357
        %v1359 = vand.u32 %v218, 4294901760
        %v1360 = vsub.f32 %v218, %v1359
        %v1361 = vand.u32 %v1360, 4294901760
        %1362 = vmatpush.msra.mxu0 %v1361
        %v1363 = vand.u32 %v1039, 4294901760
        %1364 = vmatmul.f32.gmra.mxu0 %v1363
        %v1365 = vpop.f32.mrf.mxu0
        %v1366 = vadd.f32 %v1291, %v1365
        %v1367 = vand.u32 %v1040, 4294901760
        %1368 = vmatmul.f32.gmra.mxu0 %v1367
        %v1369 = vpop.f32.mrf.mxu0
        %v1370 = vadd.f32 %v1297, %v1369
        %1371 = vdwg.mxu0
        %v1372 = vand.u32 %v233, 4294901760
        %1373 = vmatpush.msra.mxu0 %v1372
        %v1374 = vand.u32 %v232, 4294901760
        %1375 = vmatpush.msra.mxu0 %v1374
        %v1376 = vand.u32 %v231, 4294901760
        %1377 = vmatpush.msra.mxu0 %v1376
        %v1378 = vand.u32 %v230, 4294901760
        %1379 = vmatpush.msra.mxu0 %v1378
        %v1380 = vand.u32 %v229, 4294901760
        %1381 = vmatpush.msra.mxu0 %v1380
        %v1382 = vand.u32 %v228, 4294901760
        %1383 = vmatpush.msra.mxu0 %v1382
        %v1384 = vand.u32 %v227, 4294901760
        %1385 = vmatpush.msra.mxu0 %v1384
        %v1386 = vand.u32 %v226, 4294901760
        %1387 = vmatpush.msra.mxu0 %v1386
        %v1388 = vand.u32 %v225, 4294901760
        %1389 = vmatpush.msra.mxu0 %v1388
        %v1390 = vand.u32 %v224, 4294901760
        %1391 = vmatpush.msra.mxu0 %v1390
        %v1392 = vand.u32 %v223, 4294901760
        %1393 = vmatpush.msra.mxu0 %v1392
        %v1394 = vand.u32 %v222, 4294901760
        %1395 = vmatpush.msra.mxu0 %v1394
        %v1396 = vand.u32 %v221, 4294901760
        %1397 = vmatpush.msra.mxu0 %v1396
        %v1398 = vand.u32 %v220, 4294901760
        %1399 = vmatpush.msra.mxu0 %v1398
        %v1400 = vand.u32 %v219, 4294901760
        %1401 = vmatpush.msra.mxu0 %v1400
        %v1402 = vand.u32 %v218, 4294901760
        %1403 = vmatpush.msra.mxu0 %v1402
        %v1404 = vand.u32 %v1039, 4294901760
        %1405 = vmatmul.f32.gmra.mxu0 %v1404
        %v1406 = vpop.f32.mrf.mxu0
        %v1407 = vadd.f32 %v1366, %v1406
        %v1408 = vand.u32 %v1040, 4294901760
        %1409 = vmatmul.f32.gmra.mxu0 %v1408
        %v1410 = vpop.f32.mrf.mxu0
        %v1411 = vadd.f32 %v1370, %v1410
        %1412 = vdwg.mxu0
        %v1413 = vsub.f32 %v1407, %v1038
        %v1414 = vsub.f32 %v1411, %v1038
        %v1415 = vmul.f32 %v1413, %v1413
        %v1416 = vmul.f32 %v1414, %v1414
        %v1417 = vadd.f32 %v1415, 0.0
        %v1418 = vadd.f32 %v1416, 0.0
        %v1419 = vperm.slane %v1037, 1
        %v1420 = vsel %vm211, %v1419, 0.0
        %v1421 = vsel %vm212, %v1419, 0.0
        %v1422 = vand.u32 %v233, 4294901760
        %1423 = vmatpush.msra.mxu0 %v1422
        %v1424 = vand.u32 %v232, 4294901760
        %1425 = vmatpush.msra.mxu0 %v1424
        %v1426 = vand.u32 %v231, 4294901760
        %1427 = vmatpush.msra.mxu0 %v1426
        %v1428 = vand.u32 %v230, 4294901760
        %1429 = vmatpush.msra.mxu0 %v1428
        %v1430 = vand.u32 %v229, 4294901760
        %1431 = vmatpush.msra.mxu0 %v1430
        %v1432 = vand.u32 %v228, 4294901760
        %1433 = vmatpush.msra.mxu0 %v1432
        %v1434 = vand.u32 %v227, 4294901760
        %1435 = vmatpush.msra.mxu0 %v1434
        %v1436 = vand.u32 %v226, 4294901760
        %1437 = vmatpush.msra.mxu0 %v1436
        %v1438 = vand.u32 %v225, 4294901760
        %1439 = vmatpush.msra.mxu0 %v1438
        %v1440 = vand.u32 %v224, 4294901760
        %1441 = vmatpush.msra.mxu0 %v1440
        %v1442 = vand.u32 %v223, 4294901760
        %1443 = vmatpush.msra.mxu0 %v1442
        %v1444 = vand.u32 %v222, 4294901760
        %1445 = vmatpush.msra.mxu0 %v1444
        %v1446 = vand.u32 %v221, 4294901760
        %1447 = vmatpush.msra.mxu0 %v1446
        %v1448 = vand.u32 %v220, 4294901760
        %1449 = vmatpush.msra.mxu0 %v1448
        %v1450 = vand.u32 %v219, 4294901760
        %1451 = vmatpush.msra.mxu0 %v1450
        %v1452 = vand.u32 %v218, 4294901760
        %1453 = vmatpush.msra.mxu0 %v1452
        %v1454 = vand.u32 %v1420, 4294901760
        %v1455 = vsub.f32 %v1420, %v1454
        %v1456 = vand.u32 %v1455, 4294901760
        %v1457 = vsub.f32 %v1455, %v1456
        %v1458 = vand.u32 %v1457, 4294901760
        %1459 = vmatmul.f32.gmra.mxu0 %v1458
        %v1460 = vpop.f32.mrf.mxu0
        %v1461 = vadd.f32 0.0, %v1460
        %v1462 = vand.u32 %v1421, 4294901760
        %v1463 = vsub.f32 %v1421, %v1462
        %v1464 = vand.u32 %v1463, 4294901760
        %v1465 = vsub.f32 %v1463, %v1464
        %v1466 = vand.u32 %v1465, 4294901760
        %1467 = vmatmul.f32.gmra.mxu0 %v1466
        %v1468 = vpop.f32.mrf.mxu0
        %v1469 = vadd.f32 0.0, %v1468
        %1470 = vdwg.mxu0
        %v1471 = vand.u32 %v233, 4294901760
        %v1472 = vsub.f32 %v233, %v1471
        %v1473 = vand.u32 %v1472, 4294901760
        %v1474 = vsub.f32 %v1472, %v1473
        %v1475 = vand.u32 %v1474, 4294901760
        %1476 = vmatpush.msra.mxu0 %v1475
        %v1477 = vand.u32 %v232, 4294901760
        %v1478 = vsub.f32 %v232, %v1477
        %v1479 = vand.u32 %v1478, 4294901760
        %v1480 = vsub.f32 %v1478, %v1479
        %v1481 = vand.u32 %v1480, 4294901760
        %1482 = vmatpush.msra.mxu0 %v1481
        %v1483 = vand.u32 %v231, 4294901760
        %v1484 = vsub.f32 %v231, %v1483
        %v1485 = vand.u32 %v1484, 4294901760
        %v1486 = vsub.f32 %v1484, %v1485
        %v1487 = vand.u32 %v1486, 4294901760
        %1488 = vmatpush.msra.mxu0 %v1487
        %v1489 = vand.u32 %v230, 4294901760
        %v1490 = vsub.f32 %v230, %v1489
        %v1491 = vand.u32 %v1490, 4294901760
        %v1492 = vsub.f32 %v1490, %v1491
        %v1493 = vand.u32 %v1492, 4294901760
        %1494 = vmatpush.msra.mxu0 %v1493
        %v1495 = vand.u32 %v229, 4294901760
        %v1496 = vsub.f32 %v229, %v1495
        %v1497 = vand.u32 %v1496, 4294901760
        %v1498 = vsub.f32 %v1496, %v1497
        %v1499 = vand.u32 %v1498, 4294901760
        %1500 = vmatpush.msra.mxu0 %v1499
        %v1501 = vand.u32 %v228, 4294901760
        %v1502 = vsub.f32 %v228, %v1501
        %v1503 = vand.u32 %v1502, 4294901760
        %v1504 = vsub.f32 %v1502, %v1503
        %v1505 = vand.u32 %v1504, 4294901760
        %1506 = vmatpush.msra.mxu0 %v1505
        %v1507 = vand.u32 %v227, 4294901760
        %v1508 = vsub.f32 %v227, %v1507
        %v1509 = vand.u32 %v1508, 4294901760
        %v1510 = vsub.f32 %v1508, %v1509
        %v1511 = vand.u32 %v1510, 4294901760
        %1512 = vmatpush.msra.mxu0 %v1511
        %v1513 = vand.u32 %v226, 4294901760
        %v1514 = vsub.f32 %v226, %v1513
        %v1515 = vand.u32 %v1514, 4294901760
        %v1516 = vsub.f32 %v1514, %v1515
        %v1517 = vand.u32 %v1516, 4294901760
        %1518 = vmatpush.msra.mxu0 %v1517
        %v1519 = vand.u32 %v225, 4294901760
        %v1520 = vsub.f32 %v225, %v1519
        %v1521 = vand.u32 %v1520, 4294901760
        %v1522 = vsub.f32 %v1520, %v1521
        %v1523 = vand.u32 %v1522, 4294901760
        %1524 = vmatpush.msra.mxu0 %v1523
        %v1525 = vand.u32 %v224, 4294901760
        %v1526 = vsub.f32 %v224, %v1525
        %v1527 = vand.u32 %v1526, 4294901760
        %v1528 = vsub.f32 %v1526, %v1527
        %v1529 = vand.u32 %v1528, 4294901760
        %1530 = vmatpush.msra.mxu0 %v1529
        %v1531 = vand.u32 %v223, 4294901760
        %v1532 = vsub.f32 %v223, %v1531
        %v1533 = vand.u32 %v1532, 4294901760
        %v1534 = vsub.f32 %v1532, %v1533
        %v1535 = vand.u32 %v1534, 4294901760
        %1536 = vmatpush.msra.mxu0 %v1535
        %v1537 = vand.u32 %v222, 4294901760
        %v1538 = vsub.f32 %v222, %v1537
        %v1539 = vand.u32 %v1538, 4294901760
        %v1540 = vsub.f32 %v1538, %v1539
        %v1541 = vand.u32 %v1540, 4294901760
        %1542 = vmatpush.msra.mxu0 %v1541
        %v1543 = vand.u32 %v221, 4294901760
        %v1544 = vsub.f32 %v221, %v1543
        %v1545 = vand.u32 %v1544, 4294901760
        %v1546 = vsub.f32 %v1544, %v1545
        %v1547 = vand.u32 %v1546, 4294901760
        %1548 = vmatpush.msra.mxu0 %v1547
        %v1549 = vand.u32 %v220, 4294901760
        %v1550 = vsub.f32 %v220, %v1549
        %v1551 = vand.u32 %v1550, 4294901760
        %v1552 = vsub.f32 %v1550, %v1551
        %v1553 = vand.u32 %v1552, 4294901760
        %1554 = vmatpush.msra.mxu0 %v1553
        %v1555 = vand.u32 %v219, 4294901760
        %v1556 = vsub.f32 %v219, %v1555
        %v1557 = vand.u32 %v1556, 4294901760
        %v1558 = vsub.f32 %v1556, %v1557
        %v1559 = vand.u32 %v1558, 4294901760
        %1560 = vmatpush.msra.mxu0 %v1559
        %v1561 = vand.u32 %v218, 4294901760
        %v1562 = vsub.f32 %v218, %v1561
        %v1563 = vand.u32 %v1562, 4294901760
        %v1564 = vsub.f32 %v1562, %v1563
        %v1565 = vand.u32 %v1564, 4294901760
        %1566 = vmatpush.msra.mxu0 %v1565
        %v1567 = vand.u32 %v1420, 4294901760
        %1568 = vmatmul.f32.gmra.mxu0 %v1567
        %v1569 = vpop.f32.mrf.mxu0
        %v1570 = vadd.f32 %v1461, %v1569
        %v1571 = vand.u32 %v1421, 4294901760
        %1572 = vmatmul.f32.gmra.mxu0 %v1571
        %v1573 = vpop.f32.mrf.mxu0
        %v1574 = vadd.f32 %v1469, %v1573
        %1575 = vdwg.mxu0
        %v1576 = vand.u32 %v233, 4294901760
        %v1577 = vsub.f32 %v233, %v1576
        %1578 = vmatpush.msra.mxu0 %v1577
        %v1579 = vand.u32 %v232, 4294901760
        %v1580 = vsub.f32 %v232, %v1579
        %1581 = vmatpush.msra.mxu0 %v1580
        %v1582 = vand.u32 %v231, 4294901760
        %v1583 = vsub.f32 %v231, %v1582
        %1584 = vmatpush.msra.mxu0 %v1583
        %v1585 = vand.u32 %v230, 4294901760
        %v1586 = vsub.f32 %v230, %v1585
        %1587 = vmatpush.msra.mxu0 %v1586
        %v1588 = vand.u32 %v229, 4294901760
        %v1589 = vsub.f32 %v229, %v1588
        %1590 = vmatpush.msra.mxu0 %v1589
        %v1591 = vand.u32 %v228, 4294901760
        %v1592 = vsub.f32 %v228, %v1591
        %1593 = vmatpush.msra.mxu0 %v1592
        %v1594 = vand.u32 %v227, 4294901760
        %v1595 = vsub.f32 %v227, %v1594
        %1596 = vmatpush.msra.mxu0 %v1595
        %v1597 = vand.u32 %v226, 4294901760
        %v1598 = vsub.f32 %v226, %v1597
        %1599 = vmatpush.msra.mxu0 %v1598
        %v1600 = vand.u32 %v225, 4294901760
        %v1601 = vsub.f32 %v225, %v1600
        %1602 = vmatpush.msra.mxu0 %v1601
        %v1603 = vand.u32 %v224, 4294901760
        %v1604 = vsub.f32 %v224, %v1603
        %1605 = vmatpush.msra.mxu0 %v1604
        %v1606 = vand.u32 %v223, 4294901760
        %v1607 = vsub.f32 %v223, %v1606
        %1608 = vmatpush.msra.mxu0 %v1607
        %v1609 = vand.u32 %v222, 4294901760
        %v1610 = vsub.f32 %v222, %v1609
        %1611 = vmatpush.msra.mxu0 %v1610
        %v1612 = vand.u32 %v221, 4294901760
        %v1613 = vsub.f32 %v221, %v1612
        %1614 = vmatpush.msra.mxu0 %v1613
        %v1615 = vand.u32 %v220, 4294901760
        %v1616 = vsub.f32 %v220, %v1615
        %1617 = vmatpush.msra.mxu0 %v1616
        %v1618 = vand.u32 %v219, 4294901760
        %v1619 = vsub.f32 %v219, %v1618
        %1620 = vmatpush.msra.mxu0 %v1619
        %v1621 = vand.u32 %v218, 4294901760
        %v1622 = vsub.f32 %v218, %v1621
        %1623 = vmatpush.msra.mxu0 %v1622
        %v1624 = vand.u32 %v1420, 4294901760
        %v1625 = vsub.f32 %v1420, %v1624
        %1626 = vmatmul.f32.gmra.mxu0 %v1625
        %v1627 = vpop.f32.mrf.mxu0
        %v1628 = vadd.f32 %v1570, %v1627
        %v1629 = vand.u32 %v1421, 4294901760
        %v1630 = vsub.f32 %v1421, %v1629
        %1631 = vmatmul.f32.gmra.mxu0 %v1630
        %v1632 = vpop.f32.mrf.mxu0
        %v1633 = vadd.f32 %v1574, %v1632
        %1634 = vdwg.mxu0
        %v1635 = vand.u32 %v233, 4294901760
        %1636 = vmatpush.msra.mxu0 %v1635
        %v1637 = vand.u32 %v232, 4294901760
        %1638 = vmatpush.msra.mxu0 %v1637
        %v1639 = vand.u32 %v231, 4294901760
        %1640 = vmatpush.msra.mxu0 %v1639
        %v1641 = vand.u32 %v230, 4294901760
        %1642 = vmatpush.msra.mxu0 %v1641
        %v1643 = vand.u32 %v229, 4294901760
        %1644 = vmatpush.msra.mxu0 %v1643
        %v1645 = vand.u32 %v228, 4294901760
        %1646 = vmatpush.msra.mxu0 %v1645
        %v1647 = vand.u32 %v227, 4294901760
        %1648 = vmatpush.msra.mxu0 %v1647
        %v1649 = vand.u32 %v226, 4294901760
        %1650 = vmatpush.msra.mxu0 %v1649
        %v1651 = vand.u32 %v225, 4294901760
        %1652 = vmatpush.msra.mxu0 %v1651
        %v1653 = vand.u32 %v224, 4294901760
        %1654 = vmatpush.msra.mxu0 %v1653
        %v1655 = vand.u32 %v223, 4294901760
        %1656 = vmatpush.msra.mxu0 %v1655
        %v1657 = vand.u32 %v222, 4294901760
        %1658 = vmatpush.msra.mxu0 %v1657
        %v1659 = vand.u32 %v221, 4294901760
        %1660 = vmatpush.msra.mxu0 %v1659
        %v1661 = vand.u32 %v220, 4294901760
        %1662 = vmatpush.msra.mxu0 %v1661
        %v1663 = vand.u32 %v219, 4294901760
        %1664 = vmatpush.msra.mxu0 %v1663
        %v1665 = vand.u32 %v218, 4294901760
        %1666 = vmatpush.msra.mxu0 %v1665
        %v1667 = vand.u32 %v1420, 4294901760
        %v1668 = vsub.f32 %v1420, %v1667
        %v1669 = vand.u32 %v1668, 4294901760
        %1670 = vmatmul.f32.gmra.mxu0 %v1669
        %v1671 = vpop.f32.mrf.mxu0
        %v1672 = vadd.f32 %v1628, %v1671
        %v1673 = vand.u32 %v1421, 4294901760
        %v1674 = vsub.f32 %v1421, %v1673
        %v1675 = vand.u32 %v1674, 4294901760
        %1676 = vmatmul.f32.gmra.mxu0 %v1675
        %v1677 = vpop.f32.mrf.mxu0
        %v1678 = vadd.f32 %v1633, %v1677
        %1679 = vdwg.mxu0
        %v1680 = vand.u32 %v233, 4294901760
        %v1681 = vsub.f32 %v233, %v1680
        %v1682 = vand.u32 %v1681, 4294901760
        %1683 = vmatpush.msra.mxu0 %v1682
        %v1684 = vand.u32 %v232, 4294901760
        %v1685 = vsub.f32 %v232, %v1684
        %v1686 = vand.u32 %v1685, 4294901760
        %1687 = vmatpush.msra.mxu0 %v1686
        %v1688 = vand.u32 %v231, 4294901760
        %v1689 = vsub.f32 %v231, %v1688
        %v1690 = vand.u32 %v1689, 4294901760
        %1691 = vmatpush.msra.mxu0 %v1690
        %v1692 = vand.u32 %v230, 4294901760
        %v1693 = vsub.f32 %v230, %v1692
        %v1694 = vand.u32 %v1693, 4294901760
        %1695 = vmatpush.msra.mxu0 %v1694
        %v1696 = vand.u32 %v229, 4294901760
        %v1697 = vsub.f32 %v229, %v1696
        %v1698 = vand.u32 %v1697, 4294901760
        %1699 = vmatpush.msra.mxu0 %v1698
        %v1700 = vand.u32 %v228, 4294901760
        %v1701 = vsub.f32 %v228, %v1700
        %v1702 = vand.u32 %v1701, 4294901760
        %1703 = vmatpush.msra.mxu0 %v1702
        %v1704 = vand.u32 %v227, 4294901760
        %v1705 = vsub.f32 %v227, %v1704
        %v1706 = vand.u32 %v1705, 4294901760
        %1707 = vmatpush.msra.mxu0 %v1706
        %v1708 = vand.u32 %v226, 4294901760
        %v1709 = vsub.f32 %v226, %v1708
        %v1710 = vand.u32 %v1709, 4294901760
        %1711 = vmatpush.msra.mxu0 %v1710
        %v1712 = vand.u32 %v225, 4294901760
        %v1713 = vsub.f32 %v225, %v1712
        %v1714 = vand.u32 %v1713, 4294901760
        %1715 = vmatpush.msra.mxu0 %v1714
        %v1716 = vand.u32 %v224, 4294901760
        %v1717 = vsub.f32 %v224, %v1716
        %v1718 = vand.u32 %v1717, 4294901760
        %1719 = vmatpush.msra.mxu0 %v1718
        %v1720 = vand.u32 %v223, 4294901760
        %v1721 = vsub.f32 %v223, %v1720
        %v1722 = vand.u32 %v1721, 4294901760
        %1723 = vmatpush.msra.mxu0 %v1722
        %v1724 = vand.u32 %v222, 4294901760
        %v1725 = vsub.f32 %v222, %v1724
        %v1726 = vand.u32 %v1725, 4294901760
        %1727 = vmatpush.msra.mxu0 %v1726
        %v1728 = vand.u32 %v221, 4294901760
        %v1729 = vsub.f32 %v221, %v1728
        %v1730 = vand.u32 %v1729, 4294901760
        %1731 = vmatpush.msra.mxu0 %v1730
        %v1732 = vand.u32 %v220, 4294901760
        %v1733 = vsub.f32 %v220, %v1732
        %v1734 = vand.u32 %v1733, 4294901760
        %1735 = vmatpush.msra.mxu0 %v1734
        %v1736 = vand.u32 %v219, 4294901760
        %v1737 = vsub.f32 %v219, %v1736
        %v1738 = vand.u32 %v1737, 4294901760
        %1739 = vmatpush.msra.mxu0 %v1738
        %v1740 = vand.u32 %v218, 4294901760
        %v1741 = vsub.f32 %v218, %v1740
        %v1742 = vand.u32 %v1741, 4294901760
        %1743 = vmatpush.msra.mxu0 %v1742
        %v1744 = vand.u32 %v1420, 4294901760
        %1745 = vmatmul.f32.gmra.mxu0 %v1744
        %v1746 = vpop.f32.mrf.mxu0
        %v1747 = vadd.f32 %v1672, %v1746
        %v1748 = vand.u32 %v1421, 4294901760
        %1749 = vmatmul.f32.gmra.mxu0 %v1748
        %v1750 = vpop.f32.mrf.mxu0
        %v1751 = vadd.f32 %v1678, %v1750
        %1752 = vdwg.mxu0
        %v1753 = vand.u32 %v233, 4294901760
        %1754 = vmatpush.msra.mxu0 %v1753
        %v1755 = vand.u32 %v232, 4294901760
        %1756 = vmatpush.msra.mxu0 %v1755
        %v1757 = vand.u32 %v231, 4294901760
        %1758 = vmatpush.msra.mxu0 %v1757
        %v1759 = vand.u32 %v230, 4294901760
        %1760 = vmatpush.msra.mxu0 %v1759
        %v1761 = vand.u32 %v229, 4294901760
        %1762 = vmatpush.msra.mxu0 %v1761
        %v1763 = vand.u32 %v228, 4294901760
        %1764 = vmatpush.msra.mxu0 %v1763
        %v1765 = vand.u32 %v227, 4294901760
        %1766 = vmatpush.msra.mxu0 %v1765
        %v1767 = vand.u32 %v226, 4294901760
        %1768 = vmatpush.msra.mxu0 %v1767
        %v1769 = vand.u32 %v225, 4294901760
        %1770 = vmatpush.msra.mxu0 %v1769
        %v1771 = vand.u32 %v224, 4294901760
        %1772 = vmatpush.msra.mxu0 %v1771
        %v1773 = vand.u32 %v223, 4294901760
        %1774 = vmatpush.msra.mxu0 %v1773
        %v1775 = vand.u32 %v222, 4294901760
        %1776 = vmatpush.msra.mxu0 %v1775
        %v1777 = vand.u32 %v221, 4294901760
        %1778 = vmatpush.msra.mxu0 %v1777
        %v1779 = vand.u32 %v220, 4294901760
        %1780 = vmatpush.msra.mxu0 %v1779
        %v1781 = vand.u32 %v219, 4294901760
        %1782 = vmatpush.msra.mxu0 %v1781
        %v1783 = vand.u32 %v218, 4294901760
        %1784 = vmatpush.msra.mxu0 %v1783
        %v1785 = vand.u32 %v1420, 4294901760
        %1786 = vmatmul.f32.gmra.mxu0 %v1785
        %v1787 = vpop.f32.mrf.mxu0
        %v1788 = vadd.f32 %v1747, %v1787
        %v1789 = vand.u32 %v1421, 4294901760
        %1790 = vmatmul.f32.gmra.mxu0 %v1789
        %v1791 = vpop.f32.mrf.mxu0
        %v1792 = vadd.f32 %v1751, %v1791
        %1793 = vdwg.mxu0
        %v1794 = vsub.f32 %v1788, %v1419
        %v1795 = vsub.f32 %v1792, %v1419
        %v1796 = vmul.f32 %v1794, %v1794
        %v1797 = vmul.f32 %v1795, %v1795
        %v1798 = vadd.f32 %v1417, %v1796
        %v1799 = vadd.f32 %v1418, %v1797
        %v1800 = vrsqrt.pop %v1798
        %v1801 = vmul.f32 %v1800, %v1798
        %v1802 = vmul.f32 %v1801, %v1800
        %v1803 = vmul.f32 0.5, %v1802
        %v1804 = vsub.f32 1.5, %v1803
        %v1805 = vmul.f32 %v1800, %v1804
        %v1806 = vmul.f32 %v1798, %v1805
        %vm1807 = vcmp.eq.f32.partialorder %v1798, inf
        %v1808 = vsel %vm1807, %v1798, %v1806
        %vm1809 = vcmp.eq.f32.partialorder %v1798, 0.0
        %v1810 = vand.u32 %v1798, 2147483648
        %v1811 = vsel %vm1809, %v1810, %v1808
        %v1812 = vrsqrt.pop %v1799
        %v1813 = vmul.f32 %v1812, %v1799
        %v1814 = vmul.f32 %v1813, %v1812
        %v1815 = vmul.f32 0.5, %v1814
        %v1816 = vsub.f32 1.5, %v1815
        %v1817 = vmul.f32 %v1812, %v1816
        %v1818 = vmul.f32 %v1799, %v1817
        %vm1819 = vcmp.eq.f32.partialorder %v1799, inf
        %v1820 = vsel %vm1819, %v1799, %v1818
        %vm1821 = vcmp.eq.f32.partialorder %v1799, 0.0
        %v1822 = vand.u32 %v1799, 2147483648
        %v1823 = vsel %vm1821, %v1822, %v1820
        %v1824 = vmul.f32 %v1021, %v1811
        %v1825 = vmul.f32 %v1021, %v1823
        %v1826 = vmul.f32 %v1824, 1.442695
        %v1827 = vpow.pop %v1826
        %v1828 = vmul.f32 %v1825, 1.442695
        %v1829 = vpow.pop %v1828
        %v1830 = vmul.f32 %v1028, %v1827
        %v1831 = vmul.f32 %v1028, %v1829
        %v1832 = vadd.f32 %v1830, %v1032
        %v1833 = vadd.f32 %v1831, %v1033
        %vm1834 = vcmp.eq.s32.totalorder %v195, 0
        %vm1835 = vcmp.eq.s32.totalorder %v196, 0
        %vm1836 = vcmp.eq.s32.totalorder %v210, 0
        %v1837 = vsel %vm1836, 1, 0
        %vm1838 = vcmp.eq.s32.totalorder %v1837, 1
        %v1839 = vsel %vm1838, %v1034, 0.0
        %v1840 = vsel %vm1838, %v1035, 0.0
        %1841 = vrot.lane.b32.xlu0 %v1839, 1
        %v1842 = vpop.permute.xlu0 %1841
        %1843 = vrot.lane.b32.xlu0 %v1840, 1
        %v1844 = vpop.permute.xlu0 %1843
        %v1845 = vadd.f32 %v1839, %v1842
        %v1846 = vadd.f32 %v1840, %v1844
        %1847 = vrot.lane.b32.xlu0 %v1845, 2
        %v1848 = vpop.permute.xlu0 %1847
        %1849 = vrot.lane.b32.xlu0 %v1846, 2
        %v1850 = vpop.permute.xlu0 %1849
        %v1851 = vadd.f32 %v1845, %v1848
        %v1852 = vadd.f32 %v1846, %v1850
        %1853 = vrot.lane.b32.xlu0 %v1851, 4
        %v1854 = vpop.permute.xlu0 %1853
        %1855 = vrot.lane.b32.xlu0 %v1852, 4
        %v1856 = vpop.permute.xlu0 %1855
        %v1857 = vadd.f32 %v1851, %v1854
        %v1858 = vadd.f32 %v1852, %v1856
        %1859 = vrot.lane.b32.xlu0 %v1857, 8
        %v1860 = vpop.permute.xlu0 %1859
        %1861 = vrot.lane.b32.xlu0 %v1858, 8
        %v1862 = vpop.permute.xlu0 %1861
        %v1863 = vadd.f32 %v1857, %v1860
        %v1864 = vadd.f32 %v1858, %v1862
        %v1865 = vrcp.pop %v1863
        %v1866 = vmul.f32 %v1863, %v1865
        %v1867 = vsub.f32 2.0, %v1866
        %v1868 = vmul.f32 %v1865, %v1867
        %v1869 = vmul.f32 %v1034, %v1868
        %v1870 = vmul.f32 %v215, %v1868
        %v1871 = vsel %vm1838, %v1832, 0.0
        %v1872 = vsel %vm1838, %v1833, 0.0
        %1873 = vrot.lane.b32.xlu0 %v1871, 1
        %v1874 = vpop.permute.xlu0 %1873
        %1875 = vrot.lane.b32.xlu0 %v1872, 1
        %v1876 = vpop.permute.xlu0 %1875
        %v1877 = vadd.f32 %v1871, %v1874
        %v1878 = vadd.f32 %v1872, %v1876
        %1879 = vrot.lane.b32.xlu0 %v1877, 2
        %v1880 = vpop.permute.xlu0 %1879
        %1881 = vrot.lane.b32.xlu0 %v1878, 2
        %v1882 = vpop.permute.xlu0 %1881
        %v1883 = vadd.f32 %v1877, %v1880
        %v1884 = vadd.f32 %v1878, %v1882
        %1885 = vrot.lane.b32.xlu0 %v1883, 4
        %v1886 = vpop.permute.xlu0 %1885
        %1887 = vrot.lane.b32.xlu0 %v1884, 4
        %v1888 = vpop.permute.xlu0 %1887
        %v1889 = vadd.f32 %v1883, %v1886
        %v1890 = vadd.f32 %v1884, %v1888
        %1891 = vrot.lane.b32.xlu0 %v1889, 8
        %v1892 = vpop.permute.xlu0 %1891
        %1893 = vrot.lane.b32.xlu0 %v1890, 8
        %v1894 = vpop.permute.xlu0 %1893
        %v1895 = vadd.f32 %v1889, %v1892
        %v1896 = vadd.f32 %v1890, %v1894
        %v1897 = vrcp.pop %v1895
        %v1898 = vmul.f32 %v1895, %v1897
        %v1899 = vsub.f32 2.0, %v1898
        %v1900 = vmul.f32 %v1897, %v1899
        %v1901 = vmul.f32 %v1832, %v1900
        %v1902 = vmul.f32 %v215, %v1900
        %v1903 = vperm.slane %v1869, 0
        %v1904 = vmul.f32 %v1863, %v1903
        %v1905 = vmul.f32 %v1864, %v1903
        %v1906 = vsub.f32 %v1034, %v1904
        %v1907 = vsub.f32 %v1035, %v1905
        %v1908 = vsel %vm1834, 1, 0
        %v1909 = vsel %vm1835, 1, 0
        %vm1910 = vcmp.eq.s32.totalorder %v1908, 1
        %vm1911 = vcmp.eq.s32.totalorder %v1909, 1
        %v1912 = vsel %vm1910, %v1903, %v1906
        %v1913 = vsel %vm1911, %v1903, %v1907
        %v1914 = vperm.slane %v1870, 0
        %v1915 = vmul.f32 %v1863, %v1914
        %v1916 = vmul.f32 %v1864, %v1914
        %v1917 = vsub.f32 %v215, %v1915
        %v1918 = vsub.f32 %v216, %v1916
        %v1919 = vsel %vm1910, %v1914, %v1917
        %v1920 = vsel %vm1911, %v1914, %v1918
        %v1921 = vperm.slane %v1901, 0
        %v1922 = vmul.f32 %v1895, %v1921
        %v1923 = vmul.f32 %v1896, %v1921
        %v1924 = vsub.f32 %v1832, %v1922
        %v1925 = vsub.f32 %v1833, %v1923
        %v1926 = vsel %vm1910, %v1921, %v1924
        %v1927 = vsel %vm1911, %v1921, %v1925
        %v1928 = vperm.slane %v1902, 0
        %v1929 = vmul.f32 %v1895, %v1928
        %v1930 = vmul.f32 %v1896, %v1928
        %v1931 = vsub.f32 %v215, %v1929
        %v1932 = vsub.f32 %v216, %v1930
        %v1933 = vsel %vm1910, %v1928, %v1931
        %v1934 = vsel %vm1911, %v1928, %v1932
        %vm1935 = vcmp.eq.s32.totalorder %v195, 1
        %vm1936 = vcmp.eq.s32.totalorder %v196, 1
        %vm1937 = vcmp.eq.s32.totalorder %v210, 1
        %v1938 = vsel %vm1937, 1, 0
        %vm1939 = vcmp.eq.s32.totalorder %v1938, 1
        %v1940 = vsel %vm1939, %v1912, 0.0
        %v1941 = vsel %vm1939, %v1913, 0.0
        %1942 = vrot.lane.b32.xlu0 %v1940, 127
        %v1943 = vpop.permute.xlu0 %1942
        %1944 = vrot.lane.b32.xlu0 %v1941, 127
        %v1945 = vpop.permute.xlu0 %1944
        %1946 = vrot.lane.b32.xlu0 %v1943, 1
        %v1947 = vpop.permute.xlu0 %1946
        %1948 = vrot.lane.b32.xlu0 %v1945, 1
        %v1949 = vpop.permute.xlu0 %1948
        %v1950 = vadd.f32 %v1943, %v1947
        %v1951 = vadd.f32 %v1945, %v1949
        %1952 = vrot.lane.b32.xlu0 %v1950, 2
        %v1953 = vpop.permute.xlu0 %1952
        %1954 = vrot.lane.b32.xlu0 %v1951, 2
        %v1955 = vpop.permute.xlu0 %1954
        %v1956 = vadd.f32 %v1950, %v1953
        %v1957 = vadd.f32 %v1951, %v1955
        %1958 = vrot.lane.b32.xlu0 %v1956, 4
        %v1959 = vpop.permute.xlu0 %1958
        %1960 = vrot.lane.b32.xlu0 %v1957, 4
        %v1961 = vpop.permute.xlu0 %1960
        %v1962 = vadd.f32 %v1956, %v1959
        %v1963 = vadd.f32 %v1957, %v1961
        %1964 = vrot.lane.b32.xlu0 %v1962, 8
        %v1965 = vpop.permute.xlu0 %1964
        %1966 = vrot.lane.b32.xlu0 %v1963, 8
        %v1967 = vpop.permute.xlu0 %1966
        %v1968 = vadd.f32 %v1962, %v1965
        %v1969 = vadd.f32 %v1963, %v1967
        %v1970 = vrcp.pop %v1968
        %v1971 = vmul.f32 %v1968, %v1970
        %v1972 = vsub.f32 2.0, %v1971
        %v1973 = vmul.f32 %v1970, %v1972
        %v1974 = vmul.f32 %v1912, %v1973
        %v1975 = vmul.f32 %v1919, %v1973
        %v1976 = vsel %vm1939, %v1926, 0.0
        %v1977 = vsel %vm1939, %v1927, 0.0
        %1978 = vrot.lane.b32.xlu0 %v1976, 127
        %v1979 = vpop.permute.xlu0 %1978
        %1980 = vrot.lane.b32.xlu0 %v1977, 127
        %v1981 = vpop.permute.xlu0 %1980
        %1982 = vrot.lane.b32.xlu0 %v1979, 1
        %v1983 = vpop.permute.xlu0 %1982
        %1984 = vrot.lane.b32.xlu0 %v1981, 1
        %v1985 = vpop.permute.xlu0 %1984
        %v1986 = vadd.f32 %v1979, %v1983
        %v1987 = vadd.f32 %v1981, %v1985
        %1988 = vrot.lane.b32.xlu0 %v1986, 2
        %v1989 = vpop.permute.xlu0 %1988
        %1990 = vrot.lane.b32.xlu0 %v1987, 2
        %v1991 = vpop.permute.xlu0 %1990
        %v1992 = vadd.f32 %v1986, %v1989
        %v1993 = vadd.f32 %v1987, %v1991
        %1994 = vrot.lane.b32.xlu0 %v1992, 4
        %v1995 = vpop.permute.xlu0 %1994
        %1996 = vrot.lane.b32.xlu0 %v1993, 4
        %v1997 = vpop.permute.xlu0 %1996
        %v1998 = vadd.f32 %v1992, %v1995
        %v1999 = vadd.f32 %v1993, %v1997
        %2000 = vrot.lane.b32.xlu0 %v1998, 8
        %v2001 = vpop.permute.xlu0 %2000
        %2002 = vrot.lane.b32.xlu0 %v1999, 8
        %v2003 = vpop.permute.xlu0 %2002
        %v2004 = vadd.f32 %v1998, %v2001
        %v2005 = vadd.f32 %v1999, %v2003
        %v2006 = vrcp.pop %v2004
        %v2007 = vmul.f32 %v2004, %v2006
        %v2008 = vsub.f32 2.0, %v2007
        %v2009 = vmul.f32 %v2006, %v2008
        %v2010 = vmul.f32 %v1926, %v2009
        %v2011 = vmul.f32 %v1933, %v2009
        %v2012 = vperm.slane %v1974, 1
        %v2013 = vmul.f32 %v1968, %v2012
        %v2014 = vmul.f32 %v1969, %v2012
        %v2015 = vsub.f32 %v1912, %v2013
        %v2016 = vsub.f32 %v1913, %v2014
        %v2017 = vsel %vm1935, 1, 0
        %v2018 = vsel %vm1936, 1, 0
        %vm2019 = vcmp.eq.s32.totalorder %v2017, 1
        %vm2020 = vcmp.eq.s32.totalorder %v2018, 1
        %v2021 = vsel %vm2019, %v2012, %v2015
        %v2022 = vsel %vm2020, %v2012, %v2016
        %v2023 = vperm.slane %v1975, 1
        %v2024 = vmul.f32 %v1968, %v2023
        %v2025 = vmul.f32 %v1969, %v2023
        %v2026 = vsub.f32 %v1919, %v2024
        %v2027 = vsub.f32 %v1920, %v2025
        %v2028 = vsel %vm2019, %v2023, %v2026
        %v2029 = vsel %vm2020, %v2023, %v2027
        %v2030 = vperm.slane %v2010, 1
        %v2031 = vmul.f32 %v2004, %v2030
        %v2032 = vmul.f32 %v2005, %v2030
        %v2033 = vsub.f32 %v1926, %v2031
        %v2034 = vsub.f32 %v1927, %v2032
        %v2035 = vsel %vm2019, %v2030, %v2033
        %v2036 = vsel %vm2020, %v2030, %v2034
        %v2037 = vperm.slane %v2011, 1
        %v2038 = vmul.f32 %v2004, %v2037
        %v2039 = vmul.f32 %v2005, %v2037
        %v2040 = vsub.f32 %v1933, %v2038
        %v2041 = vsub.f32 %v1934, %v2039
        %v2042 = vsel %vm2019, %v2037, %v2040
        %v2043 = vsel %vm2020, %v2037, %v2041
        %vm2044 = vcmp.eq.s32.totalorder %v195, 2
        %vm2045 = vcmp.eq.s32.totalorder %v196, 2
        %vm2046 = vcmp.eq.s32.totalorder %v210, 2
        %v2047 = vsel %vm2046, 1, 0
        %vm2048 = vcmp.eq.s32.totalorder %v2047, 1
        %v2049 = vsel %vm2048, %v2021, 0.0
        %v2050 = vsel %vm2048, %v2022, 0.0
        %2051 = vrot.lane.b32.xlu0 %v2049, 126
        %v2052 = vpop.permute.xlu0 %2051
        %2053 = vrot.lane.b32.xlu0 %v2050, 126
        %v2054 = vpop.permute.xlu0 %2053
        %2055 = vrot.lane.b32.xlu0 %v2052, 1
        %v2056 = vpop.permute.xlu0 %2055
        %2057 = vrot.lane.b32.xlu0 %v2054, 1
        %v2058 = vpop.permute.xlu0 %2057
        %v2059 = vadd.f32 %v2052, %v2056
        %v2060 = vadd.f32 %v2054, %v2058
        %2061 = vrot.lane.b32.xlu0 %v2059, 2
        %v2062 = vpop.permute.xlu0 %2061
        %2063 = vrot.lane.b32.xlu0 %v2060, 2
        %v2064 = vpop.permute.xlu0 %2063
        %v2065 = vadd.f32 %v2059, %v2062
        %v2066 = vadd.f32 %v2060, %v2064
        %2067 = vrot.lane.b32.xlu0 %v2065, 4
        %v2068 = vpop.permute.xlu0 %2067
        %2069 = vrot.lane.b32.xlu0 %v2066, 4
        %v2070 = vpop.permute.xlu0 %2069
        %v2071 = vadd.f32 %v2065, %v2068
        %v2072 = vadd.f32 %v2066, %v2070
        %2073 = vrot.lane.b32.xlu0 %v2071, 8
        %v2074 = vpop.permute.xlu0 %2073
        %2075 = vrot.lane.b32.xlu0 %v2072, 8
        %v2076 = vpop.permute.xlu0 %2075
        %v2077 = vadd.f32 %v2071, %v2074
        %v2078 = vadd.f32 %v2072, %v2076
        %v2079 = vrcp.pop %v2077
        %v2080 = vmul.f32 %v2077, %v2079
        %v2081 = vsub.f32 2.0, %v2080
        %v2082 = vmul.f32 %v2079, %v2081
        %v2083 = vmul.f32 %v2021, %v2082
        %v2084 = vmul.f32 %v2028, %v2082
        %v2085 = vsel %vm2048, %v2035, 0.0
        %v2086 = vsel %vm2048, %v2036, 0.0
        %2087 = vrot.lane.b32.xlu0 %v2085, 126
        %v2088 = vpop.permute.xlu0 %2087
        %2089 = vrot.lane.b32.xlu0 %v2086, 126
        %v2090 = vpop.permute.xlu0 %2089
        %2091 = vrot.lane.b32.xlu0 %v2088, 1
        %v2092 = vpop.permute.xlu0 %2091
        %2093 = vrot.lane.b32.xlu0 %v2090, 1
        %v2094 = vpop.permute.xlu0 %2093
        %v2095 = vadd.f32 %v2088, %v2092
        %v2096 = vadd.f32 %v2090, %v2094
        %2097 = vrot.lane.b32.xlu0 %v2095, 2
        %v2098 = vpop.permute.xlu0 %2097
        %2099 = vrot.lane.b32.xlu0 %v2096, 2
        %v2100 = vpop.permute.xlu0 %2099
        %v2101 = vadd.f32 %v2095, %v2098
        %v2102 = vadd.f32 %v2096, %v2100
        %2103 = vrot.lane.b32.xlu0 %v2101, 4
        %v2104 = vpop.permute.xlu0 %2103
        %2105 = vrot.lane.b32.xlu0 %v2102, 4
        %v2106 = vpop.permute.xlu0 %2105
        %v2107 = vadd.f32 %v2101, %v2104
        %v2108 = vadd.f32 %v2102, %v2106
        %2109 = vrot.lane.b32.xlu0 %v2107, 8
        %v2110 = vpop.permute.xlu0 %2109
        %2111 = vrot.lane.b32.xlu0 %v2108, 8
        %v2112 = vpop.permute.xlu0 %2111
        %v2113 = vadd.f32 %v2107, %v2110
        %v2114 = vadd.f32 %v2108, %v2112
        %v2115 = vrcp.pop %v2113
        %v2116 = vmul.f32 %v2113, %v2115
        %v2117 = vsub.f32 2.0, %v2116
        %v2118 = vmul.f32 %v2115, %v2117
        %v2119 = vmul.f32 %v2035, %v2118
        %v2120 = vmul.f32 %v2042, %v2118
        %v2121 = vperm.slane %v2083, 2
        %v2122 = vmul.f32 %v2077, %v2121
        %v2123 = vmul.f32 %v2078, %v2121
        %v2124 = vsub.f32 %v2021, %v2122
        %v2125 = vsub.f32 %v2022, %v2123
        %v2126 = vsel %vm2044, 1, 0
        %v2127 = vsel %vm2045, 1, 0
        %vm2128 = vcmp.eq.s32.totalorder %v2126, 1
        %vm2129 = vcmp.eq.s32.totalorder %v2127, 1
        %v2130 = vsel %vm2128, %v2121, %v2124
        %v2131 = vsel %vm2129, %v2121, %v2125
        %v2132 = vperm.slane %v2084, 2
        %v2133 = vmul.f32 %v2077, %v2132
        %v2134 = vmul.f32 %v2078, %v2132
        %v2135 = vsub.f32 %v2028, %v2133
        %v2136 = vsub.f32 %v2029, %v2134
        %v2137 = vsel %vm2128, %v2132, %v2135
        %v2138 = vsel %vm2129, %v2132, %v2136
        %v2139 = vperm.slane %v2119, 2
        %v2140 = vmul.f32 %v2113, %v2139
        %v2141 = vmul.f32 %v2114, %v2139
        %v2142 = vsub.f32 %v2035, %v2140
        %v2143 = vsub.f32 %v2036, %v2141
        %v2144 = vsel %vm2128, %v2139, %v2142
        %v2145 = vsel %vm2129, %v2139, %v2143
        %v2146 = vperm.slane %v2120, 2
        %v2147 = vmul.f32 %v2113, %v2146
        %v2148 = vmul.f32 %v2114, %v2146
        %v2149 = vsub.f32 %v2042, %v2147
        %v2150 = vsub.f32 %v2043, %v2148
        %v2151 = vsel %vm2128, %v2146, %v2149
        %v2152 = vsel %vm2129, %v2146, %v2150
        %vm2153 = vcmp.eq.s32.totalorder %v195, 3
        %vm2154 = vcmp.eq.s32.totalorder %v196, 3
        %vm2155 = vcmp.eq.s32.totalorder %v210, 3
        %v2156 = vsel %vm2155, 1, 0
        %vm2157 = vcmp.eq.s32.totalorder %v2156, 1
        %v2158 = vsel %vm2157, %v2130, 0.0
        %v2159 = vsel %vm2157, %v2131, 0.0
        %2160 = vrot.lane.b32.xlu0 %v2158, 125
        %v2161 = vpop.permute.xlu0 %2160
        %2162 = vrot.lane.b32.xlu0 %v2159, 125
        %v2163 = vpop.permute.xlu0 %2162
        %2164 = vrot.lane.b32.xlu0 %v2161, 1
        %v2165 = vpop.permute.xlu0 %2164
        %2166 = vrot.lane.b32.xlu0 %v2163, 1
        %v2167 = vpop.permute.xlu0 %2166
        %v2168 = vadd.f32 %v2161, %v2165
        %v2169 = vadd.f32 %v2163, %v2167
        %2170 = vrot.lane.b32.xlu0 %v2168, 2
        %v2171 = vpop.permute.xlu0 %2170
        %2172 = vrot.lane.b32.xlu0 %v2169, 2
        %v2173 = vpop.permute.xlu0 %2172
        %v2174 = vadd.f32 %v2168, %v2171
        %v2175 = vadd.f32 %v2169, %v2173
        %2176 = vrot.lane.b32.xlu0 %v2174, 4
        %v2177 = vpop.permute.xlu0 %2176
        %2178 = vrot.lane.b32.xlu0 %v2175, 4
        %v2179 = vpop.permute.xlu0 %2178
        %v2180 = vadd.f32 %v2174, %v2177
        %v2181 = vadd.f32 %v2175, %v2179
        %2182 = vrot.lane.b32.xlu0 %v2180, 8
        %v2183 = vpop.permute.xlu0 %2182
        %2184 = vrot.lane.b32.xlu0 %v2181, 8
        %v2185 = vpop.permute.xlu0 %2184
        %v2186 = vadd.f32 %v2180, %v2183
        %v2187 = vadd.f32 %v2181, %v2185
        %v2188 = vrcp.pop %v2186
        %v2189 = vmul.f32 %v2186, %v2188
        %v2190 = vsub.f32 2.0, %v2189
        %v2191 = vmul.f32 %v2188, %v2190
        %v2192 = vmul.f32 %v2130, %v2191
        %v2193 = vmul.f32 %v2137, %v2191
        %v2194 = vsel %vm2157, %v2144, 0.0
        %v2195 = vsel %vm2157, %v2145, 0.0
        %2196 = vrot.lane.b32.xlu0 %v2194, 125
        %v2197 = vpop.permute.xlu0 %2196
        %2198 = vrot.lane.b32.xlu0 %v2195, 125
        %v2199 = vpop.permute.xlu0 %2198
        %2200 = vrot.lane.b32.xlu0 %v2197, 1
        %v2201 = vpop.permute.xlu0 %2200
        %2202 = vrot.lane.b32.xlu0 %v2199, 1
        %v2203 = vpop.permute.xlu0 %2202
        %v2204 = vadd.f32 %v2197, %v2201
        %v2205 = vadd.f32 %v2199, %v2203
        %2206 = vrot.lane.b32.xlu0 %v2204, 2
        %v2207 = vpop.permute.xlu0 %2206
        %2208 = vrot.lane.b32.xlu0 %v2205, 2
        %v2209 = vpop.permute.xlu0 %2208
        %v2210 = vadd.f32 %v2204, %v2207
        %v2211 = vadd.f32 %v2205, %v2209
        %2212 = vrot.lane.b32.xlu0 %v2210, 4
        %v2213 = vpop.permute.xlu0 %2212
        %2214 = vrot.lane.b32.xlu0 %v2211, 4
        %v2215 = vpop.permute.xlu0 %2214
        %v2216 = vadd.f32 %v2210, %v2213
        %v2217 = vadd.f32 %v2211, %v2215
        %2218 = vrot.lane.b32.xlu0 %v2216, 8
        %v2219 = vpop.permute.xlu0 %2218
        %2220 = vrot.lane.b32.xlu0 %v2217, 8
        %v2221 = vpop.permute.xlu0 %2220
        %v2222 = vadd.f32 %v2216, %v2219
        %v2223 = vadd.f32 %v2217, %v2221
        %v2224 = vrcp.pop %v2222
        %v2225 = vmul.f32 %v2222, %v2224
        %v2226 = vsub.f32 2.0, %v2225
        %v2227 = vmul.f32 %v2224, %v2226
        %v2228 = vmul.f32 %v2144, %v2227
        %v2229 = vmul.f32 %v2151, %v2227
        %v2230 = vperm.slane %v2192, 3
        %v2231 = vmul.f32 %v2186, %v2230
        %v2232 = vmul.f32 %v2187, %v2230
        %v2233 = vsub.f32 %v2130, %v2231
        %v2234 = vsub.f32 %v2131, %v2232
        %v2235 = vsel %vm2153, 1, 0
        %v2236 = vsel %vm2154, 1, 0
        %vm2237 = vcmp.eq.s32.totalorder %v2235, 1
        %vm2238 = vcmp.eq.s32.totalorder %v2236, 1
        %v2239 = vsel %vm2237, %v2230, %v2233
        %v2240 = vsel %vm2238, %v2230, %v2234
        %v2241 = vperm.slane %v2193, 3
        %v2242 = vmul.f32 %v2186, %v2241
        %v2243 = vmul.f32 %v2187, %v2241
        %v2244 = vsub.f32 %v2137, %v2242
        %v2245 = vsub.f32 %v2138, %v2243
        %v2246 = vsel %vm2237, %v2241, %v2244
        %v2247 = vsel %vm2238, %v2241, %v2245
        %v2248 = vperm.slane %v2228, 3
        %v2249 = vmul.f32 %v2222, %v2248
        %v2250 = vmul.f32 %v2223, %v2248
        %v2251 = vsub.f32 %v2144, %v2249
        %v2252 = vsub.f32 %v2145, %v2250
        %v2253 = vsel %vm2237, %v2248, %v2251
        %v2254 = vsel %vm2238, %v2248, %v2252
        %v2255 = vperm.slane %v2229, 3
        %v2256 = vmul.f32 %v2222, %v2255
        %v2257 = vmul.f32 %v2223, %v2255
        %v2258 = vsub.f32 %v2151, %v2256
        %v2259 = vsub.f32 %v2152, %v2257
        %v2260 = vsel %vm2237, %v2255, %v2258
        %v2261 = vsel %vm2238, %v2255, %v2259
        %vm2262 = vcmp.eq.s32.totalorder %v195, 4
        %vm2263 = vcmp.eq.s32.totalorder %v196, 4
        %vm2264 = vcmp.eq.s32.totalorder %v210, 4
        %v2265 = vsel %vm2264, 1, 0
        %vm2266 = vcmp.eq.s32.totalorder %v2265, 1
        %v2267 = vsel %vm2266, %v2239, 0.0
        %v2268 = vsel %vm2266, %v2240, 0.0
        %2269 = vrot.lane.b32.xlu0 %v2267, 124
        %v2270 = vpop.permute.xlu0 %2269
        %2271 = vrot.lane.b32.xlu0 %v2268, 124
        %v2272 = vpop.permute.xlu0 %2271
        %2273 = vrot.lane.b32.xlu0 %v2270, 1
        %v2274 = vpop.permute.xlu0 %2273
        %2275 = vrot.lane.b32.xlu0 %v2272, 1
        %v2276 = vpop.permute.xlu0 %2275
        %v2277 = vadd.f32 %v2270, %v2274
        %v2278 = vadd.f32 %v2272, %v2276
        %2279 = vrot.lane.b32.xlu0 %v2277, 2
        %v2280 = vpop.permute.xlu0 %2279
        %2281 = vrot.lane.b32.xlu0 %v2278, 2
        %v2282 = vpop.permute.xlu0 %2281
        %v2283 = vadd.f32 %v2277, %v2280
        %v2284 = vadd.f32 %v2278, %v2282
        %2285 = vrot.lane.b32.xlu0 %v2283, 4
        %v2286 = vpop.permute.xlu0 %2285
        %2287 = vrot.lane.b32.xlu0 %v2284, 4
        %v2288 = vpop.permute.xlu0 %2287
        %v2289 = vadd.f32 %v2283, %v2286
        %v2290 = vadd.f32 %v2284, %v2288
        %2291 = vrot.lane.b32.xlu0 %v2289, 8
        %v2292 = vpop.permute.xlu0 %2291
        %2293 = vrot.lane.b32.xlu0 %v2290, 8
        %v2294 = vpop.permute.xlu0 %2293
        %v2295 = vadd.f32 %v2289, %v2292
        %v2296 = vadd.f32 %v2290, %v2294
        %v2297 = vrcp.pop %v2295
        %v2298 = vmul.f32 %v2295, %v2297
        %v2299 = vsub.f32 2.0, %v2298
        %v2300 = vmul.f32 %v2297, %v2299
        %v2301 = vmul.f32 %v2239, %v2300
        %v2302 = vmul.f32 %v2246, %v2300
        %v2303 = vsel %vm2266, %v2253, 0.0
        %v2304 = vsel %vm2266, %v2254, 0.0
        %2305 = vrot.lane.b32.xlu0 %v2303, 124
        %v2306 = vpop.permute.xlu0 %2305
        %2307 = vrot.lane.b32.xlu0 %v2304, 124
        %v2308 = vpop.permute.xlu0 %2307
        %2309 = vrot.lane.b32.xlu0 %v2306, 1
        %v2310 = vpop.permute.xlu0 %2309
        %2311 = vrot.lane.b32.xlu0 %v2308, 1
        %v2312 = vpop.permute.xlu0 %2311
        %v2313 = vadd.f32 %v2306, %v2310
        %v2314 = vadd.f32 %v2308, %v2312
        %2315 = vrot.lane.b32.xlu0 %v2313, 2
        %v2316 = vpop.permute.xlu0 %2315
        %2317 = vrot.lane.b32.xlu0 %v2314, 2
        %v2318 = vpop.permute.xlu0 %2317
        %v2319 = vadd.f32 %v2313, %v2316
        %v2320 = vadd.f32 %v2314, %v2318
        %2321 = vrot.lane.b32.xlu0 %v2319, 4
        %v2322 = vpop.permute.xlu0 %2321
        %2323 = vrot.lane.b32.xlu0 %v2320, 4
        %v2324 = vpop.permute.xlu0 %2323
        %v2325 = vadd.f32 %v2319, %v2322
        %v2326 = vadd.f32 %v2320, %v2324
        %2327 = vrot.lane.b32.xlu0 %v2325, 8
        %v2328 = vpop.permute.xlu0 %2327
        %2329 = vrot.lane.b32.xlu0 %v2326, 8
        %v2330 = vpop.permute.xlu0 %2329
        %v2331 = vadd.f32 %v2325, %v2328
        %v2332 = vadd.f32 %v2326, %v2330
        %v2333 = vrcp.pop %v2331
        %v2334 = vmul.f32 %v2331, %v2333
        %v2335 = vsub.f32 2.0, %v2334
        %v2336 = vmul.f32 %v2333, %v2335
        %v2337 = vmul.f32 %v2253, %v2336
        %v2338 = vmul.f32 %v2260, %v2336
        %v2339 = vperm.slane %v2301, 4
        %v2340 = vmul.f32 %v2295, %v2339
        %v2341 = vmul.f32 %v2296, %v2339
        %v2342 = vsub.f32 %v2239, %v2340
        %v2343 = vsub.f32 %v2240, %v2341
        %v2344 = vsel %vm2262, 1, 0
        %v2345 = vsel %vm2263, 1, 0
        %vm2346 = vcmp.eq.s32.totalorder %v2344, 1
        %vm2347 = vcmp.eq.s32.totalorder %v2345, 1
        %v2348 = vsel %vm2346, %v2339, %v2342
        %v2349 = vsel %vm2347, %v2339, %v2343
        %v2350 = vperm.slane %v2302, 4
        %v2351 = vmul.f32 %v2295, %v2350
        %v2352 = vmul.f32 %v2296, %v2350
        %v2353 = vsub.f32 %v2246, %v2351
        %v2354 = vsub.f32 %v2247, %v2352
        %v2355 = vsel %vm2346, %v2350, %v2353
        %v2356 = vsel %vm2347, %v2350, %v2354
        %v2357 = vperm.slane %v2337, 4
        %v2358 = vmul.f32 %v2331, %v2357
        %v2359 = vmul.f32 %v2332, %v2357
        %v2360 = vsub.f32 %v2253, %v2358
        %v2361 = vsub.f32 %v2254, %v2359
        %v2362 = vsel %vm2346, %v2357, %v2360
        %v2363 = vsel %vm2347, %v2357, %v2361
        %v2364 = vperm.slane %v2338, 4
        %v2365 = vmul.f32 %v2331, %v2364
        %v2366 = vmul.f32 %v2332, %v2364
        %v2367 = vsub.f32 %v2260, %v2365
        %v2368 = vsub.f32 %v2261, %v2366
        %v2369 = vsel %vm2346, %v2364, %v2367
        %v2370 = vsel %vm2347, %v2364, %v2368
        %vm2371 = vcmp.eq.s32.totalorder %v195, 5
        %vm2372 = vcmp.eq.s32.totalorder %v196, 5
        %vm2373 = vcmp.eq.s32.totalorder %v210, 5
        %v2374 = vsel %vm2373, 1, 0
        %vm2375 = vcmp.eq.s32.totalorder %v2374, 1
        %v2376 = vsel %vm2375, %v2348, 0.0
        %v2377 = vsel %vm2375, %v2349, 0.0
        %2378 = vrot.lane.b32.xlu0 %v2376, 123
        %v2379 = vpop.permute.xlu0 %2378
        %2380 = vrot.lane.b32.xlu0 %v2377, 123
        %v2381 = vpop.permute.xlu0 %2380
        %2382 = vrot.lane.b32.xlu0 %v2379, 1
        %v2383 = vpop.permute.xlu0 %2382
        %2384 = vrot.lane.b32.xlu0 %v2381, 1
        %v2385 = vpop.permute.xlu0 %2384
        %v2386 = vadd.f32 %v2379, %v2383
        %v2387 = vadd.f32 %v2381, %v2385
        %2388 = vrot.lane.b32.xlu0 %v2386, 2
        %v2389 = vpop.permute.xlu0 %2388
        %2390 = vrot.lane.b32.xlu0 %v2387, 2
        %v2391 = vpop.permute.xlu0 %2390
        %v2392 = vadd.f32 %v2386, %v2389
        %v2393 = vadd.f32 %v2387, %v2391
        %2394 = vrot.lane.b32.xlu0 %v2392, 4
        %v2395 = vpop.permute.xlu0 %2394
        %2396 = vrot.lane.b32.xlu0 %v2393, 4
        %v2397 = vpop.permute.xlu0 %2396
        %v2398 = vadd.f32 %v2392, %v2395
        %v2399 = vadd.f32 %v2393, %v2397
        %2400 = vrot.lane.b32.xlu0 %v2398, 8
        %v2401 = vpop.permute.xlu0 %2400
        %2402 = vrot.lane.b32.xlu0 %v2399, 8
        %v2403 = vpop.permute.xlu0 %2402
        %v2404 = vadd.f32 %v2398, %v2401
        %v2405 = vadd.f32 %v2399, %v2403
        %v2406 = vrcp.pop %v2404
        %v2407 = vmul.f32 %v2404, %v2406
        %v2408 = vsub.f32 2.0, %v2407
        %v2409 = vmul.f32 %v2406, %v2408
        %v2410 = vmul.f32 %v2348, %v2409
        %v2411 = vmul.f32 %v2355, %v2409
        %v2412 = vsel %vm2375, %v2362, 0.0
        %v2413 = vsel %vm2375, %v2363, 0.0
        %2414 = vrot.lane.b32.xlu0 %v2412, 123
        %v2415 = vpop.permute.xlu0 %2414
        %2416 = vrot.lane.b32.xlu0 %v2413, 123
        %v2417 = vpop.permute.xlu0 %2416
        %2418 = vrot.lane.b32.xlu0 %v2415, 1
        %v2419 = vpop.permute.xlu0 %2418
        %2420 = vrot.lane.b32.xlu0 %v2417, 1
        %v2421 = vpop.permute.xlu0 %2420
        %v2422 = vadd.f32 %v2415, %v2419
        %v2423 = vadd.f32 %v2417, %v2421
        %2424 = vrot.lane.b32.xlu0 %v2422, 2
        %v2425 = vpop.permute.xlu0 %2424
        %2426 = vrot.lane.b32.xlu0 %v2423, 2
        %v2427 = vpop.permute.xlu0 %2426
        %v2428 = vadd.f32 %v2422, %v2425
        %v2429 = vadd.f32 %v2423, %v2427
        %2430 = vrot.lane.b32.xlu0 %v2428, 4
        %v2431 = vpop.permute.xlu0 %2430
        %2432 = vrot.lane.b32.xlu0 %v2429, 4
        %v2433 = vpop.permute.xlu0 %2432
        %v2434 = vadd.f32 %v2428, %v2431
        %v2435 = vadd.f32 %v2429, %v2433
        %2436 = vrot.lane.b32.xlu0 %v2434, 8
        %v2437 = vpop.permute.xlu0 %2436
        %2438 = vrot.lane.b32.xlu0 %v2435, 8
        %v2439 = vpop.permute.xlu0 %2438
        %v2440 = vadd.f32 %v2434, %v2437
        %v2441 = vadd.f32 %v2435, %v2439
        %v2442 = vrcp.pop %v2440
        %v2443 = vmul.f32 %v2440, %v2442
        %v2444 = vsub.f32 2.0, %v2443
        %v2445 = vmul.f32 %v2442, %v2444
        %v2446 = vmul.f32 %v2362, %v2445
        %v2447 = vmul.f32 %v2369, %v2445
        %v2448 = vperm.slane %v2410, 5
        %v2449 = vmul.f32 %v2404, %v2448
        %v2450 = vmul.f32 %v2405, %v2448
        %v2451 = vsub.f32 %v2348, %v2449
        %v2452 = vsub.f32 %v2349, %v2450
        %v2453 = vsel %vm2371, 1, 0
        %v2454 = vsel %vm2372, 1, 0
        %vm2455 = vcmp.eq.s32.totalorder %v2453, 1
        %vm2456 = vcmp.eq.s32.totalorder %v2454, 1
        %v2457 = vsel %vm2455, %v2448, %v2451
        %v2458 = vsel %vm2456, %v2448, %v2452
        %v2459 = vperm.slane %v2411, 5
        %v2460 = vmul.f32 %v2404, %v2459
        %v2461 = vmul.f32 %v2405, %v2459
        %v2462 = vsub.f32 %v2355, %v2460
        %v2463 = vsub.f32 %v2356, %v2461
        %v2464 = vsel %vm2455, %v2459, %v2462
        %v2465 = vsel %vm2456, %v2459, %v2463
        %v2466 = vperm.slane %v2446, 5
        %v2467 = vmul.f32 %v2440, %v2466
        %v2468 = vmul.f32 %v2441, %v2466
        %v2469 = vsub.f32 %v2362, %v2467
        %v2470 = vsub.f32 %v2363, %v2468
        %v2471 = vsel %vm2455, %v2466, %v2469
        %v2472 = vsel %vm2456, %v2466, %v2470
        %v2473 = vperm.slane %v2447, 5
        %v2474 = vmul.f32 %v2440, %v2473
        %v2475 = vmul.f32 %v2441, %v2473
        %v2476 = vsub.f32 %v2369, %v2474
        %v2477 = vsub.f32 %v2370, %v2475
        %v2478 = vsel %vm2455, %v2473, %v2476
        %v2479 = vsel %vm2456, %v2473, %v2477
        %vm2480 = vcmp.eq.s32.totalorder %v195, 6
        %vm2481 = vcmp.eq.s32.totalorder %v196, 6
        %vm2482 = vcmp.eq.s32.totalorder %v210, 6
        %v2483 = vsel %vm2482, 1, 0
        %vm2484 = vcmp.eq.s32.totalorder %v2483, 1
        %v2485 = vsel %vm2484, %v2457, 0.0
        %v2486 = vsel %vm2484, %v2458, 0.0
        %2487 = vrot.lane.b32.xlu0 %v2485, 122
        %v2488 = vpop.permute.xlu0 %2487
        %2489 = vrot.lane.b32.xlu0 %v2486, 122
        %v2490 = vpop.permute.xlu0 %2489
        %2491 = vrot.lane.b32.xlu0 %v2488, 1
        %v2492 = vpop.permute.xlu0 %2491
        %2493 = vrot.lane.b32.xlu0 %v2490, 1
        %v2494 = vpop.permute.xlu0 %2493
        %v2495 = vadd.f32 %v2488, %v2492
        %v2496 = vadd.f32 %v2490, %v2494
        %2497 = vrot.lane.b32.xlu0 %v2495, 2
        %v2498 = vpop.permute.xlu0 %2497
        %2499 = vrot.lane.b32.xlu0 %v2496, 2
        %v2500 = vpop.permute.xlu0 %2499
        %v2501 = vadd.f32 %v2495, %v2498
        %v2502 = vadd.f32 %v2496, %v2500
        %2503 = vrot.lane.b32.xlu0 %v2501, 4
        %v2504 = vpop.permute.xlu0 %2503
        %2505 = vrot.lane.b32.xlu0 %v2502, 4
        %v2506 = vpop.permute.xlu0 %2505
        %v2507 = vadd.f32 %v2501, %v2504
        %v2508 = vadd.f32 %v2502, %v2506
        %2509 = vrot.lane.b32.xlu0 %v2507, 8
        %v2510 = vpop.permute.xlu0 %2509
        %2511 = vrot.lane.b32.xlu0 %v2508, 8
        %v2512 = vpop.permute.xlu0 %2511
        %v2513 = vadd.f32 %v2507, %v2510
        %v2514 = vadd.f32 %v2508, %v2512
        %v2515 = vrcp.pop %v2513
        %v2516 = vmul.f32 %v2513, %v2515
        %v2517 = vsub.f32 2.0, %v2516
        %v2518 = vmul.f32 %v2515, %v2517
        %v2519 = vmul.f32 %v2457, %v2518
        %v2520 = vmul.f32 %v2464, %v2518
        %v2521 = vsel %vm2484, %v2471, 0.0
        %v2522 = vsel %vm2484, %v2472, 0.0
        %2523 = vrot.lane.b32.xlu0 %v2521, 122
        %v2524 = vpop.permute.xlu0 %2523
        %2525 = vrot.lane.b32.xlu0 %v2522, 122
        %v2526 = vpop.permute.xlu0 %2525
        %2527 = vrot.lane.b32.xlu0 %v2524, 1
        %v2528 = vpop.permute.xlu0 %2527
        %2529 = vrot.lane.b32.xlu0 %v2526, 1
        %v2530 = vpop.permute.xlu0 %2529
        %v2531 = vadd.f32 %v2524, %v2528
        %v2532 = vadd.f32 %v2526, %v2530
        %2533 = vrot.lane.b32.xlu0 %v2531, 2
        %v2534 = vpop.permute.xlu0 %2533
        %2535 = vrot.lane.b32.xlu0 %v2532, 2
        %v2536 = vpop.permute.xlu0 %2535
        %v2537 = vadd.f32 %v2531, %v2534
        %v2538 = vadd.f32 %v2532, %v2536
        %2539 = vrot.lane.b32.xlu0 %v2537, 4
        %v2540 = vpop.permute.xlu0 %2539
        %2541 = vrot.lane.b32.xlu0 %v2538, 4
        %v2542 = vpop.permute.xlu0 %2541
        %v2543 = vadd.f32 %v2537, %v2540
        %v2544 = vadd.f32 %v2538, %v2542
        %2545 = vrot.lane.b32.xlu0 %v2543, 8
        %v2546 = vpop.permute.xlu0 %2545
        %2547 = vrot.lane.b32.xlu0 %v2544, 8
        %v2548 = vpop.permute.xlu0 %2547
        %v2549 = vadd.f32 %v2543, %v2546
        %v2550 = vadd.f32 %v2544, %v2548
        %v2551 = vrcp.pop %v2549
        %v2552 = vmul.f32 %v2549, %v2551
        %v2553 = vsub.f32 2.0, %v2552
        %v2554 = vmul.f32 %v2551, %v2553
        %v2555 = vmul.f32 %v2471, %v2554
        %v2556 = vmul.f32 %v2478, %v2554
        %v2557 = vperm.slane %v2519, 6
        %v2558 = vmul.f32 %v2513, %v2557
        %v2559 = vmul.f32 %v2514, %v2557
        %v2560 = vsub.f32 %v2457, %v2558
        %v2561 = vsub.f32 %v2458, %v2559
        %v2562 = vsel %vm2480, 1, 0
        %v2563 = vsel %vm2481, 1, 0
        %vm2564 = vcmp.eq.s32.totalorder %v2562, 1
        %vm2565 = vcmp.eq.s32.totalorder %v2563, 1
        %v2566 = vsel %vm2564, %v2557, %v2560
        %v2567 = vsel %vm2565, %v2557, %v2561
        %v2568 = vperm.slane %v2520, 6
        %v2569 = vmul.f32 %v2513, %v2568
        %v2570 = vmul.f32 %v2514, %v2568
        %v2571 = vsub.f32 %v2464, %v2569
        %v2572 = vsub.f32 %v2465, %v2570
        %v2573 = vsel %vm2564, %v2568, %v2571
        %v2574 = vsel %vm2565, %v2568, %v2572
        %v2575 = vperm.slane %v2555, 6
        %v2576 = vmul.f32 %v2549, %v2575
        %v2577 = vmul.f32 %v2550, %v2575
        %v2578 = vsub.f32 %v2471, %v2576
        %v2579 = vsub.f32 %v2472, %v2577
        %v2580 = vsel %vm2564, %v2575, %v2578
        %v2581 = vsel %vm2565, %v2575, %v2579
        %v2582 = vperm.slane %v2556, 6
        %v2583 = vmul.f32 %v2549, %v2582
        %v2584 = vmul.f32 %v2550, %v2582
        %v2585 = vsub.f32 %v2478, %v2583
        %v2586 = vsub.f32 %v2479, %v2584
        %v2587 = vsel %vm2564, %v2582, %v2585
        %v2588 = vsel %vm2565, %v2582, %v2586
        %vm2589 = vcmp.eq.s32.totalorder %v195, 7
        %vm2590 = vcmp.eq.s32.totalorder %v196, 7
        %vm2591 = vcmp.eq.s32.totalorder %v210, 7
        %v2592 = vsel %vm2591, 1, 0
        %vm2593 = vcmp.eq.s32.totalorder %v2592, 1
        %v2594 = vsel %vm2593, %v2566, 0.0
        %v2595 = vsel %vm2593, %v2567, 0.0
        %2596 = vrot.lane.b32.xlu0 %v2594, 121
        %v2597 = vpop.permute.xlu0 %2596
        %2598 = vrot.lane.b32.xlu0 %v2595, 121
        %v2599 = vpop.permute.xlu0 %2598
        %2600 = vrot.lane.b32.xlu0 %v2597, 1
        %v2601 = vpop.permute.xlu0 %2600
        %2602 = vrot.lane.b32.xlu0 %v2599, 1
        %v2603 = vpop.permute.xlu0 %2602
        %v2604 = vadd.f32 %v2597, %v2601
        %v2605 = vadd.f32 %v2599, %v2603
        %2606 = vrot.lane.b32.xlu0 %v2604, 2
        %v2607 = vpop.permute.xlu0 %2606
        %2608 = vrot.lane.b32.xlu0 %v2605, 2
        %v2609 = vpop.permute.xlu0 %2608
        %v2610 = vadd.f32 %v2604, %v2607
        %v2611 = vadd.f32 %v2605, %v2609
        %2612 = vrot.lane.b32.xlu0 %v2610, 4
        %v2613 = vpop.permute.xlu0 %2612
        %2614 = vrot.lane.b32.xlu0 %v2611, 4
        %v2615 = vpop.permute.xlu0 %2614
        %v2616 = vadd.f32 %v2610, %v2613
        %v2617 = vadd.f32 %v2611, %v2615
        %2618 = vrot.lane.b32.xlu0 %v2616, 8
        %v2619 = vpop.permute.xlu0 %2618
        %2620 = vrot.lane.b32.xlu0 %v2617, 8
        %v2621 = vpop.permute.xlu0 %2620
        %v2622 = vadd.f32 %v2616, %v2619
        %v2623 = vadd.f32 %v2617, %v2621
        %v2624 = vrcp.pop %v2622
        %v2625 = vmul.f32 %v2622, %v2624
        %v2626 = vsub.f32 2.0, %v2625
        %v2627 = vmul.f32 %v2624, %v2626
        %v2628 = vmul.f32 %v2566, %v2627
        %v2629 = vmul.f32 %v2573, %v2627
        %v2630 = vsel %vm2593, %v2580, 0.0
        %v2631 = vsel %vm2593, %v2581, 0.0
        %2632 = vrot.lane.b32.xlu0 %v2630, 121
        %v2633 = vpop.permute.xlu0 %2632
        %2634 = vrot.lane.b32.xlu0 %v2631, 121
        %v2635 = vpop.permute.xlu0 %2634
        %2636 = vrot.lane.b32.xlu0 %v2633, 1
        %v2637 = vpop.permute.xlu0 %2636
        %2638 = vrot.lane.b32.xlu0 %v2635, 1
        %v2639 = vpop.permute.xlu0 %2638
        %v2640 = vadd.f32 %v2633, %v2637
        %v2641 = vadd.f32 %v2635, %v2639
        %2642 = vrot.lane.b32.xlu0 %v2640, 2
        %v2643 = vpop.permute.xlu0 %2642
        %2644 = vrot.lane.b32.xlu0 %v2641, 2
        %v2645 = vpop.permute.xlu0 %2644
        %v2646 = vadd.f32 %v2640, %v2643
        %v2647 = vadd.f32 %v2641, %v2645
        %2648 = vrot.lane.b32.xlu0 %v2646, 4
        %v2649 = vpop.permute.xlu0 %2648
        %2650 = vrot.lane.b32.xlu0 %v2647, 4
        %v2651 = vpop.permute.xlu0 %2650
        %v2652 = vadd.f32 %v2646, %v2649
        %v2653 = vadd.f32 %v2647, %v2651
        %2654 = vrot.lane.b32.xlu0 %v2652, 8
        %v2655 = vpop.permute.xlu0 %2654
        %2656 = vrot.lane.b32.xlu0 %v2653, 8
        %v2657 = vpop.permute.xlu0 %2656
        %v2658 = vadd.f32 %v2652, %v2655
        %v2659 = vadd.f32 %v2653, %v2657
        %v2660 = vrcp.pop %v2658
        %v2661 = vmul.f32 %v2658, %v2660
        %v2662 = vsub.f32 2.0, %v2661
        %v2663 = vmul.f32 %v2660, %v2662
        %v2664 = vmul.f32 %v2580, %v2663
        %v2665 = vmul.f32 %v2587, %v2663
        %v2666 = vperm.slane %v2628, 7
        %v2667 = vmul.f32 %v2622, %v2666
        %v2668 = vmul.f32 %v2623, %v2666
        %v2669 = vsub.f32 %v2566, %v2667
        %v2670 = vsub.f32 %v2567, %v2668
        %v2671 = vsel %vm2589, 1, 0
        %v2672 = vsel %vm2590, 1, 0
        %vm2673 = vcmp.eq.s32.totalorder %v2671, 1
        %vm2674 = vcmp.eq.s32.totalorder %v2672, 1
        %v2675 = vsel %vm2673, %v2666, %v2669
        %v2676 = vsel %vm2674, %v2666, %v2670
        %v2677 = vperm.slane %v2629, 7
        %v2678 = vmul.f32 %v2622, %v2677
        %v2679 = vmul.f32 %v2623, %v2677
        %v2680 = vsub.f32 %v2573, %v2678
        %v2681 = vsub.f32 %v2574, %v2679
        %v2682 = vsel %vm2673, %v2677, %v2680
        %v2683 = vsel %vm2674, %v2677, %v2681
        %v2684 = vperm.slane %v2664, 7
        %v2685 = vmul.f32 %v2658, %v2684
        %v2686 = vmul.f32 %v2659, %v2684
        %v2687 = vsub.f32 %v2580, %v2685
        %v2688 = vsub.f32 %v2581, %v2686
        %v2689 = vsel %vm2673, %v2684, %v2687
        %v2690 = vsel %vm2674, %v2684, %v2688
        %v2691 = vperm.slane %v2665, 7
        %v2692 = vmul.f32 %v2658, %v2691
        %v2693 = vmul.f32 %v2659, %v2691
        %v2694 = vsub.f32 %v2587, %v2692
        %v2695 = vsub.f32 %v2588, %v2693
        %v2696 = vsel %vm2673, %v2691, %v2694
        %v2697 = vsel %vm2674, %v2691, %v2695
        %vm2698 = vcmp.eq.s32.totalorder %v195, 8
        %vm2699 = vcmp.eq.s32.totalorder %v196, 8
        %vm2700 = vcmp.eq.s32.totalorder %v210, 8
        %v2701 = vsel %vm2700, 1, 0
        %vm2702 = vcmp.eq.s32.totalorder %v2701, 1
        %v2703 = vsel %vm2702, %v2675, 0.0
        %v2704 = vsel %vm2702, %v2676, 0.0
        %2705 = vrot.lane.b32.xlu0 %v2703, 120
        %v2706 = vpop.permute.xlu0 %2705
        %2707 = vrot.lane.b32.xlu0 %v2704, 120
        %v2708 = vpop.permute.xlu0 %2707
        %2709 = vrot.lane.b32.xlu0 %v2706, 1
        %v2710 = vpop.permute.xlu0 %2709
        %2711 = vrot.lane.b32.xlu0 %v2708, 1
        %v2712 = vpop.permute.xlu0 %2711
        %v2713 = vadd.f32 %v2706, %v2710
        %v2714 = vadd.f32 %v2708, %v2712
        %2715 = vrot.lane.b32.xlu0 %v2713, 2
        %v2716 = vpop.permute.xlu0 %2715
        %2717 = vrot.lane.b32.xlu0 %v2714, 2
        %v2718 = vpop.permute.xlu0 %2717
        %v2719 = vadd.f32 %v2713, %v2716
        %v2720 = vadd.f32 %v2714, %v2718
        %2721 = vrot.lane.b32.xlu0 %v2719, 4
        %v2722 = vpop.permute.xlu0 %2721
        %2723 = vrot.lane.b32.xlu0 %v2720, 4
        %v2724 = vpop.permute.xlu0 %2723
        %v2725 = vadd.f32 %v2719, %v2722
        %v2726 = vadd.f32 %v2720, %v2724
        %2727 = vrot.lane.b32.xlu0 %v2725, 8
        %v2728 = vpop.permute.xlu0 %2727
        %2729 = vrot.lane.b32.xlu0 %v2726, 8
        %v2730 = vpop.permute.xlu0 %2729
        %v2731 = vadd.f32 %v2725, %v2728
        %v2732 = vadd.f32 %v2726, %v2730
        %v2733 = vrcp.pop %v2732
        %v2734 = vmul.f32 %v2732, %v2733
        %v2735 = vsub.f32 2.0, %v2734
        %v2736 = vmul.f32 %v2733, %v2735
        %v2737 = vmul.f32 %v2676, %v2736
        %v2738 = vmul.f32 %v2683, %v2736
        %v2739 = vsel %vm2702, %v2689, 0.0
        %v2740 = vsel %vm2702, %v2690, 0.0
        %2741 = vrot.lane.b32.xlu0 %v2739, 120
        %v2742 = vpop.permute.xlu0 %2741
        %2743 = vrot.lane.b32.xlu0 %v2740, 120
        %v2744 = vpop.permute.xlu0 %2743
        %2745 = vrot.lane.b32.xlu0 %v2742, 1
        %v2746 = vpop.permute.xlu0 %2745
        %2747 = vrot.lane.b32.xlu0 %v2744, 1
        %v2748 = vpop.permute.xlu0 %2747
        %v2749 = vadd.f32 %v2742, %v2746
        %v2750 = vadd.f32 %v2744, %v2748
        %2751 = vrot.lane.b32.xlu0 %v2749, 2
        %v2752 = vpop.permute.xlu0 %2751
        %2753 = vrot.lane.b32.xlu0 %v2750, 2
        %v2754 = vpop.permute.xlu0 %2753
        %v2755 = vadd.f32 %v2749, %v2752
        %v2756 = vadd.f32 %v2750, %v2754
        %2757 = vrot.lane.b32.xlu0 %v2755, 4
        %v2758 = vpop.permute.xlu0 %2757
        %2759 = vrot.lane.b32.xlu0 %v2756, 4
        %v2760 = vpop.permute.xlu0 %2759
        %v2761 = vadd.f32 %v2755, %v2758
        %v2762 = vadd.f32 %v2756, %v2760
        %2763 = vrot.lane.b32.xlu0 %v2761, 8
        %v2764 = vpop.permute.xlu0 %2763
        %2765 = vrot.lane.b32.xlu0 %v2762, 8
        %v2766 = vpop.permute.xlu0 %2765
        %v2767 = vadd.f32 %v2761, %v2764
        %v2768 = vadd.f32 %v2762, %v2766
        %v2769 = vrcp.pop %v2768
        %v2770 = vmul.f32 %v2768, %v2769
        %v2771 = vsub.f32 2.0, %v2770
        %v2772 = vmul.f32 %v2769, %v2771
        %v2773 = vmul.f32 %v2690, %v2772
        %v2774 = vmul.f32 %v2697, %v2772
        %v2775 = vperm.slane %v2737, 0
        %v2776 = vmul.f32 %v2731, %v2775
        %v2777 = vmul.f32 %v2732, %v2775
        %v2778 = vsub.f32 %v2675, %v2776
        %v2779 = vsub.f32 %v2676, %v2777
        %v2780 = vsel %vm2698, 1, 0
        %v2781 = vsel %vm2699, 1, 0
        %vm2782 = vcmp.eq.s32.totalorder %v2780, 1
        %vm2783 = vcmp.eq.s32.totalorder %v2781, 1
        %v2784 = vsel %vm2782, %v2775, %v2778
        %v2785 = vsel %vm2783, %v2775, %v2779
        %v2786 = vperm.slane %v2738, 0
        %v2787 = vmul.f32 %v2731, %v2786
        %v2788 = vmul.f32 %v2732, %v2786
        %v2789 = vsub.f32 %v2682, %v2787
        %v2790 = vsub.f32 %v2683, %v2788
        %v2791 = vsel %vm2782, %v2786, %v2789
        %v2792 = vsel %vm2783, %v2786, %v2790
        %v2793 = vperm.slane %v2773, 0
        %v2794 = vmul.f32 %v2767, %v2793
        %v2795 = vmul.f32 %v2768, %v2793
        %v2796 = vsub.f32 %v2689, %v2794
        %v2797 = vsub.f32 %v2690, %v2795
        %v2798 = vsel %vm2782, %v2793, %v2796
        %v2799 = vsel %vm2783, %v2793, %v2797
        %v2800 = vperm.slane %v2774, 0
        %v2801 = vmul.f32 %v2767, %v2800
        %v2802 = vmul.f32 %v2768, %v2800
        %v2803 = vsub.f32 %v2696, %v2801
        %v2804 = vsub.f32 %v2697, %v2802
        %v2805 = vsel %vm2782, %v2800, %v2803
        %v2806 = vsel %vm2783, %v2800, %v2804
        %vm2807 = vcmp.eq.s32.totalorder %v195, 9
        %vm2808 = vcmp.eq.s32.totalorder %v196, 9
        %vm2809 = vcmp.eq.s32.totalorder %v210, 9
        %v2810 = vsel %vm2809, 1, 0
        %vm2811 = vcmp.eq.s32.totalorder %v2810, 1
        %v2812 = vsel %vm2811, %v2784, 0.0
        %v2813 = vsel %vm2811, %v2785, 0.0
        %2814 = vrot.lane.b32.xlu0 %v2812, 119
        %v2815 = vpop.permute.xlu0 %2814
        %2816 = vrot.lane.b32.xlu0 %v2813, 119
        %v2817 = vpop.permute.xlu0 %2816
        %2818 = vrot.lane.b32.xlu0 %v2815, 1
        %v2819 = vpop.permute.xlu0 %2818
        %2820 = vrot.lane.b32.xlu0 %v2817, 1
        %v2821 = vpop.permute.xlu0 %2820
        %v2822 = vadd.f32 %v2815, %v2819
        %v2823 = vadd.f32 %v2817, %v2821
        %2824 = vrot.lane.b32.xlu0 %v2822, 2
        %v2825 = vpop.permute.xlu0 %2824
        %2826 = vrot.lane.b32.xlu0 %v2823, 2
        %v2827 = vpop.permute.xlu0 %2826
        %v2828 = vadd.f32 %v2822, %v2825
        %v2829 = vadd.f32 %v2823, %v2827
        %2830 = vrot.lane.b32.xlu0 %v2828, 4
        %v2831 = vpop.permute.xlu0 %2830
        %2832 = vrot.lane.b32.xlu0 %v2829, 4
        %v2833 = vpop.permute.xlu0 %2832
        %v2834 = vadd.f32 %v2828, %v2831
        %v2835 = vadd.f32 %v2829, %v2833
        %2836 = vrot.lane.b32.xlu0 %v2834, 8
        %v2837 = vpop.permute.xlu0 %2836
        %2838 = vrot.lane.b32.xlu0 %v2835, 8
        %v2839 = vpop.permute.xlu0 %2838
        %v2840 = vadd.f32 %v2834, %v2837
        %v2841 = vadd.f32 %v2835, %v2839
        %v2842 = vrcp.pop %v2841
        %v2843 = vmul.f32 %v2841, %v2842
        %v2844 = vsub.f32 2.0, %v2843
        %v2845 = vmul.f32 %v2842, %v2844
        %v2846 = vmul.f32 %v2785, %v2845
        %v2847 = vmul.f32 %v2792, %v2845
        %v2848 = vsel %vm2811, %v2798, 0.0
        %v2849 = vsel %vm2811, %v2799, 0.0
        %2850 = vrot.lane.b32.xlu0 %v2848, 119
        %v2851 = vpop.permute.xlu0 %2850
        %2852 = vrot.lane.b32.xlu0 %v2849, 119
        %v2853 = vpop.permute.xlu0 %2852
        %2854 = vrot.lane.b32.xlu0 %v2851, 1
        %v2855 = vpop.permute.xlu0 %2854
        %2856 = vrot.lane.b32.xlu0 %v2853, 1
        %v2857 = vpop.permute.xlu0 %2856
        %v2858 = vadd.f32 %v2851, %v2855
        %v2859 = vadd.f32 %v2853, %v2857
        %2860 = vrot.lane.b32.xlu0 %v2858, 2
        %v2861 = vpop.permute.xlu0 %2860
        %2862 = vrot.lane.b32.xlu0 %v2859, 2
        %v2863 = vpop.permute.xlu0 %2862
        %v2864 = vadd.f32 %v2858, %v2861
        %v2865 = vadd.f32 %v2859, %v2863
        %2866 = vrot.lane.b32.xlu0 %v2864, 4
        %v2867 = vpop.permute.xlu0 %2866
        %2868 = vrot.lane.b32.xlu0 %v2865, 4
        %v2869 = vpop.permute.xlu0 %2868
        %v2870 = vadd.f32 %v2864, %v2867
        %v2871 = vadd.f32 %v2865, %v2869
        %2872 = vrot.lane.b32.xlu0 %v2870, 8
        %v2873 = vpop.permute.xlu0 %2872
        %2874 = vrot.lane.b32.xlu0 %v2871, 8
        %v2875 = vpop.permute.xlu0 %2874
        %v2876 = vadd.f32 %v2870, %v2873
        %v2877 = vadd.f32 %v2871, %v2875
        %v2878 = vrcp.pop %v2877
        %v2879 = vmul.f32 %v2877, %v2878
        %v2880 = vsub.f32 2.0, %v2879
        %v2881 = vmul.f32 %v2878, %v2880
        %v2882 = vmul.f32 %v2799, %v2881
        %v2883 = vmul.f32 %v2806, %v2881
        %v2884 = vperm.slane %v2846, 1
        %v2885 = vmul.f32 %v2840, %v2884
        %v2886 = vmul.f32 %v2841, %v2884
        %v2887 = vsub.f32 %v2784, %v2885
        %v2888 = vsub.f32 %v2785, %v2886
        %v2889 = vsel %vm2807, 1, 0
        %v2890 = vsel %vm2808, 1, 0
        %vm2891 = vcmp.eq.s32.totalorder %v2889, 1
        %vm2892 = vcmp.eq.s32.totalorder %v2890, 1
        %v2893 = vsel %vm2891, %v2884, %v2887
        %v2894 = vsel %vm2892, %v2884, %v2888
        %v2895 = vperm.slane %v2847, 1
        %v2896 = vmul.f32 %v2840, %v2895
        %v2897 = vmul.f32 %v2841, %v2895
        %v2898 = vsub.f32 %v2791, %v2896
        %v2899 = vsub.f32 %v2792, %v2897
        %v2900 = vsel %vm2891, %v2895, %v2898
        %v2901 = vsel %vm2892, %v2895, %v2899
        %v2902 = vperm.slane %v2882, 1
        %v2903 = vmul.f32 %v2876, %v2902
        %v2904 = vmul.f32 %v2877, %v2902
        %v2905 = vsub.f32 %v2798, %v2903
        %v2906 = vsub.f32 %v2799, %v2904
        %v2907 = vsel %vm2891, %v2902, %v2905
        %v2908 = vsel %vm2892, %v2902, %v2906
        %v2909 = vperm.slane %v2883, 1
        %v2910 = vmul.f32 %v2876, %v2909
        %v2911 = vmul.f32 %v2877, %v2909
        %v2912 = vsub.f32 %v2805, %v2910
        %v2913 = vsub.f32 %v2806, %v2911
        %v2914 = vsel %vm2891, %v2909, %v2912
        %v2915 = vsel %vm2892, %v2909, %v2913
        %vm2916 = vcmp.eq.s32.totalorder %v195, 10
        %vm2917 = vcmp.eq.s32.totalorder %v196, 10
        %vm2918 = vcmp.eq.s32.totalorder %v210, 10
        %v2919 = vsel %vm2918, 1, 0
        %vm2920 = vcmp.eq.s32.totalorder %v2919, 1
        %v2921 = vsel %vm2920, %v2893, 0.0
        %v2922 = vsel %vm2920, %v2894, 0.0
        %2923 = vrot.lane.b32.xlu0 %v2921, 118
        %v2924 = vpop.permute.xlu0 %2923
        %2925 = vrot.lane.b32.xlu0 %v2922, 118
        %v2926 = vpop.permute.xlu0 %2925
        %2927 = vrot.lane.b32.xlu0 %v2924, 1
        %v2928 = vpop.permute.xlu0 %2927
        %2929 = vrot.lane.b32.xlu0 %v2926, 1
        %v2930 = vpop.permute.xlu0 %2929
        %v2931 = vadd.f32 %v2924, %v2928
        %v2932 = vadd.f32 %v2926, %v2930
        %2933 = vrot.lane.b32.xlu0 %v2931, 2
        %v2934 = vpop.permute.xlu0 %2933
        %2935 = vrot.lane.b32.xlu0 %v2932, 2
        %v2936 = vpop.permute.xlu0 %2935
        %v2937 = vadd.f32 %v2931, %v2934
        %v2938 = vadd.f32 %v2932, %v2936
        %2939 = vrot.lane.b32.xlu0 %v2937, 4
        %v2940 = vpop.permute.xlu0 %2939
        %2941 = vrot.lane.b32.xlu0 %v2938, 4
        %v2942 = vpop.permute.xlu0 %2941
        %v2943 = vadd.f32 %v2937, %v2940
        %v2944 = vadd.f32 %v2938, %v2942
        %2945 = vrot.lane.b32.xlu0 %v2943, 8
        %v2946 = vpop.permute.xlu0 %2945
        %2947 = vrot.lane.b32.xlu0 %v2944, 8
        %v2948 = vpop.permute.xlu0 %2947
        %v2949 = vadd.f32 %v2943, %v2946
        %v2950 = vadd.f32 %v2944, %v2948
        %v2951 = vrcp.pop %v2950
        %v2952 = vmul.f32 %v2950, %v2951
        %v2953 = vsub.f32 2.0, %v2952
        %v2954 = vmul.f32 %v2951, %v2953
        %v2955 = vmul.f32 %v2894, %v2954
        %v2956 = vmul.f32 %v2901, %v2954
        %v2957 = vsel %vm2920, %v2907, 0.0
        %v2958 = vsel %vm2920, %v2908, 0.0
        %2959 = vrot.lane.b32.xlu0 %v2957, 118
        %v2960 = vpop.permute.xlu0 %2959
        %2961 = vrot.lane.b32.xlu0 %v2958, 118
        %v2962 = vpop.permute.xlu0 %2961
        %2963 = vrot.lane.b32.xlu0 %v2960, 1
        %v2964 = vpop.permute.xlu0 %2963
        %2965 = vrot.lane.b32.xlu0 %v2962, 1
        %v2966 = vpop.permute.xlu0 %2965
        %v2967 = vadd.f32 %v2960, %v2964
        %v2968 = vadd.f32 %v2962, %v2966
        %2969 = vrot.lane.b32.xlu0 %v2967, 2
        %v2970 = vpop.permute.xlu0 %2969
        %2971 = vrot.lane.b32.xlu0 %v2968, 2
        %v2972 = vpop.permute.xlu0 %2971
        %v2973 = vadd.f32 %v2967, %v2970
        %v2974 = vadd.f32 %v2968, %v2972
        %2975 = vrot.lane.b32.xlu0 %v2973, 4
        %v2976 = vpop.permute.xlu0 %2975
        %2977 = vrot.lane.b32.xlu0 %v2974, 4
        %v2978 = vpop.permute.xlu0 %2977
        %v2979 = vadd.f32 %v2973, %v2976
        %v2980 = vadd.f32 %v2974, %v2978
        %2981 = vrot.lane.b32.xlu0 %v2979, 8
        %v2982 = vpop.permute.xlu0 %2981
        %2983 = vrot.lane.b32.xlu0 %v2980, 8
        %v2984 = vpop.permute.xlu0 %2983
        %v2985 = vadd.f32 %v2979, %v2982
        %v2986 = vadd.f32 %v2980, %v2984
        %v2987 = vrcp.pop %v2986
        %v2988 = vmul.f32 %v2986, %v2987
        %v2989 = vsub.f32 2.0, %v2988
        %v2990 = vmul.f32 %v2987, %v2989
        %v2991 = vmul.f32 %v2908, %v2990
        %v2992 = vmul.f32 %v2915, %v2990
        %v2993 = vperm.slane %v2955, 2
        %v2994 = vmul.f32 %v2949, %v2993
        %v2995 = vmul.f32 %v2950, %v2993
        %v2996 = vsub.f32 %v2893, %v2994
        %v2997 = vsub.f32 %v2894, %v2995
        %v2998 = vsel %vm2916, 1, 0
        %v2999 = vsel %vm2917, 1, 0
        %vm3000 = vcmp.eq.s32.totalorder %v2998, 1
        %vm3001 = vcmp.eq.s32.totalorder %v2999, 1
        %v3002 = vsel %vm3000, %v2993, %v2996
        %v3003 = vsel %vm3001, %v2993, %v2997
        %v3004 = vperm.slane %v2956, 2
        %v3005 = vmul.f32 %v2949, %v3004
        %v3006 = vmul.f32 %v2950, %v3004
        %v3007 = vsub.f32 %v2900, %v3005
        %v3008 = vsub.f32 %v2901, %v3006
        %v3009 = vsel %vm3000, %v3004, %v3007
        %v3010 = vsel %vm3001, %v3004, %v3008
        %v3011 = vperm.slane %v2991, 2
        %v3012 = vmul.f32 %v2985, %v3011
        %v3013 = vmul.f32 %v2986, %v3011
        %v3014 = vsub.f32 %v2907, %v3012
        %v3015 = vsub.f32 %v2908, %v3013
        %v3016 = vsel %vm3000, %v3011, %v3014
        %v3017 = vsel %vm3001, %v3011, %v3015
        %v3018 = vperm.slane %v2992, 2
        %v3019 = vmul.f32 %v2985, %v3018
        %v3020 = vmul.f32 %v2986, %v3018
        %v3021 = vsub.f32 %v2914, %v3019
        %v3022 = vsub.f32 %v2915, %v3020
        %v3023 = vsel %vm3000, %v3018, %v3021
        %v3024 = vsel %vm3001, %v3018, %v3022
        %vm3025 = vcmp.eq.s32.totalorder %v195, 11
        %vm3026 = vcmp.eq.s32.totalorder %v196, 11
        %vm3027 = vcmp.eq.s32.totalorder %v210, 11
        %v3028 = vsel %vm3027, 1, 0
        %vm3029 = vcmp.eq.s32.totalorder %v3028, 1
        %v3030 = vsel %vm3029, %v3002, 0.0
        %v3031 = vsel %vm3029, %v3003, 0.0
        %3032 = vrot.lane.b32.xlu0 %v3030, 117
        %v3033 = vpop.permute.xlu0 %3032
        %3034 = vrot.lane.b32.xlu0 %v3031, 117
        %v3035 = vpop.permute.xlu0 %3034
        %3036 = vrot.lane.b32.xlu0 %v3033, 1
        %v3037 = vpop.permute.xlu0 %3036
        %3038 = vrot.lane.b32.xlu0 %v3035, 1
        %v3039 = vpop.permute.xlu0 %3038
        %v3040 = vadd.f32 %v3033, %v3037
        %v3041 = vadd.f32 %v3035, %v3039
        %3042 = vrot.lane.b32.xlu0 %v3040, 2
        %v3043 = vpop.permute.xlu0 %3042
        %3044 = vrot.lane.b32.xlu0 %v3041, 2
        %v3045 = vpop.permute.xlu0 %3044
        %v3046 = vadd.f32 %v3040, %v3043
        %v3047 = vadd.f32 %v3041, %v3045
        %3048 = vrot.lane.b32.xlu0 %v3046, 4
        %v3049 = vpop.permute.xlu0 %3048
        %3050 = vrot.lane.b32.xlu0 %v3047, 4
        %v3051 = vpop.permute.xlu0 %3050
        %v3052 = vadd.f32 %v3046, %v3049
        %v3053 = vadd.f32 %v3047, %v3051
        %3054 = vrot.lane.b32.xlu0 %v3052, 8
        %v3055 = vpop.permute.xlu0 %3054
        %3056 = vrot.lane.b32.xlu0 %v3053, 8
        %v3057 = vpop.permute.xlu0 %3056
        %v3058 = vadd.f32 %v3052, %v3055
        %v3059 = vadd.f32 %v3053, %v3057
        %v3060 = vrcp.pop %v3059
        %v3061 = vmul.f32 %v3059, %v3060
        %v3062 = vsub.f32 2.0, %v3061
        %v3063 = vmul.f32 %v3060, %v3062
        %v3064 = vmul.f32 %v3003, %v3063
        %v3065 = vmul.f32 %v3010, %v3063
        %v3066 = vsel %vm3029, %v3016, 0.0
        %v3067 = vsel %vm3029, %v3017, 0.0
        %3068 = vrot.lane.b32.xlu0 %v3066, 117
        %v3069 = vpop.permute.xlu0 %3068
        %3070 = vrot.lane.b32.xlu0 %v3067, 117
        %v3071 = vpop.permute.xlu0 %3070
        %3072 = vrot.lane.b32.xlu0 %v3069, 1
        %v3073 = vpop.permute.xlu0 %3072
        %3074 = vrot.lane.b32.xlu0 %v3071, 1
        %v3075 = vpop.permute.xlu0 %3074
        %v3076 = vadd.f32 %v3069, %v3073
        %v3077 = vadd.f32 %v3071, %v3075
        %3078 = vrot.lane.b32.xlu0 %v3076, 2
        %v3079 = vpop.permute.xlu0 %3078
        %3080 = vrot.lane.b32.xlu0 %v3077, 2
        %v3081 = vpop.permute.xlu0 %3080
        %v3082 = vadd.f32 %v3076, %v3079
        %v3083 = vadd.f32 %v3077, %v3081
        %3084 = vrot.lane.b32.xlu0 %v3082, 4
        %v3085 = vpop.permute.xlu0 %3084
        %3086 = vrot.lane.b32.xlu0 %v3083, 4
        %v3087 = vpop.permute.xlu0 %3086
        %v3088 = vadd.f32 %v3082, %v3085
        %v3089 = vadd.f32 %v3083, %v3087
        %3090 = vrot.lane.b32.xlu0 %v3088, 8
        %v3091 = vpop.permute.xlu0 %3090
        %3092 = vrot.lane.b32.xlu0 %v3089, 8
        %v3093 = vpop.permute.xlu0 %3092
        %v3094 = vadd.f32 %v3088, %v3091
        %v3095 = vadd.f32 %v3089, %v3093
        %v3096 = vrcp.pop %v3095
        %v3097 = vmul.f32 %v3095, %v3096
        %v3098 = vsub.f32 2.0, %v3097
        %v3099 = vmul.f32 %v3096, %v3098
        %v3100 = vmul.f32 %v3017, %v3099
        %v3101 = vmul.f32 %v3024, %v3099
        %v3102 = vperm.slane %v3064, 3
        %v3103 = vmul.f32 %v3058, %v3102
        %v3104 = vmul.f32 %v3059, %v3102
        %v3105 = vsub.f32 %v3002, %v3103
        %v3106 = vsub.f32 %v3003, %v3104
        %v3107 = vsel %vm3025, 1, 0
        %v3108 = vsel %vm3026, 1, 0
        %vm3109 = vcmp.eq.s32.totalorder %v3107, 1
        %vm3110 = vcmp.eq.s32.totalorder %v3108, 1
        %v3111 = vsel %vm3109, %v3102, %v3105
        %v3112 = vsel %vm3110, %v3102, %v3106
        %v3113 = vperm.slane %v3065, 3
        %v3114 = vmul.f32 %v3058, %v3113
        %v3115 = vmul.f32 %v3059, %v3113
        %v3116 = vsub.f32 %v3009, %v3114
        %v3117 = vsub.f32 %v3010, %v3115
        %v3118 = vsel %vm3109, %v3113, %v3116
        %v3119 = vsel %vm3110, %v3113, %v3117
        %v3120 = vperm.slane %v3100, 3
        %v3121 = vmul.f32 %v3094, %v3120
        %v3122 = vmul.f32 %v3095, %v3120
        %v3123 = vsub.f32 %v3016, %v3121
        %v3124 = vsub.f32 %v3017, %v3122
        %v3125 = vsel %vm3109, %v3120, %v3123
        %v3126 = vsel %vm3110, %v3120, %v3124
        %v3127 = vperm.slane %v3101, 3
        %v3128 = vmul.f32 %v3094, %v3127
        %v3129 = vmul.f32 %v3095, %v3127
        %v3130 = vsub.f32 %v3023, %v3128
        %v3131 = vsub.f32 %v3024, %v3129
        %v3132 = vsel %vm3109, %v3127, %v3130
        %v3133 = vsel %vm3110, %v3127, %v3131
        %vm3134 = vcmp.eq.s32.totalorder %v195, 12
        %vm3135 = vcmp.eq.s32.totalorder %v196, 12
        %vm3136 = vcmp.eq.s32.totalorder %v210, 12
        %v3137 = vsel %vm3136, 1, 0
        %vm3138 = vcmp.eq.s32.totalorder %v3137, 1
        %v3139 = vsel %vm3138, %v3111, 0.0
        %v3140 = vsel %vm3138, %v3112, 0.0
        %3141 = vrot.lane.b32.xlu0 %v3139, 116
        %v3142 = vpop.permute.xlu0 %3141
        %3143 = vrot.lane.b32.xlu0 %v3140, 116
        %v3144 = vpop.permute.xlu0 %3143
        %3145 = vrot.lane.b32.xlu0 %v3142, 1
        %v3146 = vpop.permute.xlu0 %3145
        %3147 = vrot.lane.b32.xlu0 %v3144, 1
        %v3148 = vpop.permute.xlu0 %3147
        %v3149 = vadd.f32 %v3142, %v3146
        %v3150 = vadd.f32 %v3144, %v3148
        %3151 = vrot.lane.b32.xlu0 %v3149, 2
        %v3152 = vpop.permute.xlu0 %3151
        %3153 = vrot.lane.b32.xlu0 %v3150, 2
        %v3154 = vpop.permute.xlu0 %3153
        %v3155 = vadd.f32 %v3149, %v3152
        %v3156 = vadd.f32 %v3150, %v3154
        %3157 = vrot.lane.b32.xlu0 %v3155, 4
        %v3158 = vpop.permute.xlu0 %3157
        %3159 = vrot.lane.b32.xlu0 %v3156, 4
        %v3160 = vpop.permute.xlu0 %3159
        %v3161 = vadd.f32 %v3155, %v3158
        %v3162 = vadd.f32 %v3156, %v3160
        %3163 = vrot.lane.b32.xlu0 %v3161, 8
        %v3164 = vpop.permute.xlu0 %3163
        %3165 = vrot.lane.b32.xlu0 %v3162, 8
        %v3166 = vpop.permute.xlu0 %3165
        %v3167 = vadd.f32 %v3161, %v3164
        %v3168 = vadd.f32 %v3162, %v3166
        %v3169 = vrcp.pop %v3168
        %v3170 = vmul.f32 %v3168, %v3169
        %v3171 = vsub.f32 2.0, %v3170
        %v3172 = vmul.f32 %v3169, %v3171
        %v3173 = vmul.f32 %v3112, %v3172
        %v3174 = vmul.f32 %v3119, %v3172
        %v3175 = vsel %vm3138, %v3125, 0.0
        %v3176 = vsel %vm3138, %v3126, 0.0
        %3177 = vrot.lane.b32.xlu0 %v3175, 116
        %v3178 = vpop.permute.xlu0 %3177
        %3179 = vrot.lane.b32.xlu0 %v3176, 116
        %v3180 = vpop.permute.xlu0 %3179
        %3181 = vrot.lane.b32.xlu0 %v3178, 1
        %v3182 = vpop.permute.xlu0 %3181
        %3183 = vrot.lane.b32.xlu0 %v3180, 1
        %v3184 = vpop.permute.xlu0 %3183
        %v3185 = vadd.f32 %v3178, %v3182
        %v3186 = vadd.f32 %v3180, %v3184
        %3187 = vrot.lane.b32.xlu0 %v3185, 2
        %v3188 = vpop.permute.xlu0 %3187
        %3189 = vrot.lane.b32.xlu0 %v3186, 2
        %v3190 = vpop.permute.xlu0 %3189
        %v3191 = vadd.f32 %v3185, %v3188
        %v3192 = vadd.f32 %v3186, %v3190
        %3193 = vrot.lane.b32.xlu0 %v3191, 4
        %v3194 = vpop.permute.xlu0 %3193
        %3195 = vrot.lane.b32.xlu0 %v3192, 4
        %v3196 = vpop.permute.xlu0 %3195
        %v3197 = vadd.f32 %v3191, %v3194
        %v3198 = vadd.f32 %v3192, %v3196
        %3199 = vrot.lane.b32.xlu0 %v3197, 8
        %v3200 = vpop.permute.xlu0 %3199
        %3201 = vrot.lane.b32.xlu0 %v3198, 8
        %v3202 = vpop.permute.xlu0 %3201
        %v3203 = vadd.f32 %v3197, %v3200
        %v3204 = vadd.f32 %v3198, %v3202
        %v3205 = vrcp.pop %v3204
        %v3206 = vmul.f32 %v3204, %v3205
        %v3207 = vsub.f32 2.0, %v3206
        %v3208 = vmul.f32 %v3205, %v3207
        %v3209 = vmul.f32 %v3126, %v3208
        %v3210 = vmul.f32 %v3133, %v3208
        %v3211 = vperm.slane %v3173, 4
        %v3212 = vmul.f32 %v3167, %v3211
        %v3213 = vmul.f32 %v3168, %v3211
        %v3214 = vsub.f32 %v3111, %v3212
        %v3215 = vsub.f32 %v3112, %v3213
        %v3216 = vsel %vm3134, 1, 0
        %v3217 = vsel %vm3135, 1, 0
        %vm3218 = vcmp.eq.s32.totalorder %v3216, 1
        %vm3219 = vcmp.eq.s32.totalorder %v3217, 1
        %v3220 = vsel %vm3218, %v3211, %v3214
        %v3221 = vsel %vm3219, %v3211, %v3215
        %v3222 = vperm.slane %v3174, 4
        %v3223 = vmul.f32 %v3167, %v3222
        %v3224 = vmul.f32 %v3168, %v3222
        %v3225 = vsub.f32 %v3118, %v3223
        %v3226 = vsub.f32 %v3119, %v3224
        %v3227 = vsel %vm3218, %v3222, %v3225
        %v3228 = vsel %vm3219, %v3222, %v3226
        %v3229 = vperm.slane %v3209, 4
        %v3230 = vmul.f32 %v3203, %v3229
        %v3231 = vmul.f32 %v3204, %v3229
        %v3232 = vsub.f32 %v3125, %v3230
        %v3233 = vsub.f32 %v3126, %v3231
        %v3234 = vsel %vm3218, %v3229, %v3232
        %v3235 = vsel %vm3219, %v3229, %v3233
        %v3236 = vperm.slane %v3210, 4
        %v3237 = vmul.f32 %v3203, %v3236
        %v3238 = vmul.f32 %v3204, %v3236
        %v3239 = vsub.f32 %v3132, %v3237
        %v3240 = vsub.f32 %v3133, %v3238
        %v3241 = vsel %vm3218, %v3236, %v3239
        %v3242 = vsel %vm3219, %v3236, %v3240
        %vm3243 = vcmp.eq.s32.totalorder %v195, 13
        %vm3244 = vcmp.eq.s32.totalorder %v196, 13
        %vm3245 = vcmp.eq.s32.totalorder %v210, 13
        %v3246 = vsel %vm3245, 1, 0
        %vm3247 = vcmp.eq.s32.totalorder %v3246, 1
        %v3248 = vsel %vm3247, %v3220, 0.0
        %v3249 = vsel %vm3247, %v3221, 0.0
        %3250 = vrot.lane.b32.xlu0 %v3248, 115
        %v3251 = vpop.permute.xlu0 %3250
        %3252 = vrot.lane.b32.xlu0 %v3249, 115
        %v3253 = vpop.permute.xlu0 %3252
        %3254 = vrot.lane.b32.xlu0 %v3251, 1
        %v3255 = vpop.permute.xlu0 %3254
        %3256 = vrot.lane.b32.xlu0 %v3253, 1
        %v3257 = vpop.permute.xlu0 %3256
        %v3258 = vadd.f32 %v3251, %v3255
        %v3259 = vadd.f32 %v3253, %v3257
        %3260 = vrot.lane.b32.xlu0 %v3258, 2
        %v3261 = vpop.permute.xlu0 %3260
        %3262 = vrot.lane.b32.xlu0 %v3259, 2
        %v3263 = vpop.permute.xlu0 %3262
        %v3264 = vadd.f32 %v3258, %v3261
        %v3265 = vadd.f32 %v3259, %v3263
        %3266 = vrot.lane.b32.xlu0 %v3264, 4
        %v3267 = vpop.permute.xlu0 %3266
        %3268 = vrot.lane.b32.xlu0 %v3265, 4
        %v3269 = vpop.permute.xlu0 %3268
        %v3270 = vadd.f32 %v3264, %v3267
        %v3271 = vadd.f32 %v3265, %v3269
        %3272 = vrot.lane.b32.xlu0 %v3270, 8
        %v3273 = vpop.permute.xlu0 %3272
        %3274 = vrot.lane.b32.xlu0 %v3271, 8
        %v3275 = vpop.permute.xlu0 %3274
        %v3276 = vadd.f32 %v3270, %v3273
        %v3277 = vadd.f32 %v3271, %v3275
        %v3278 = vrcp.pop %v3277
        %v3279 = vmul.f32 %v3277, %v3278
        %v3280 = vsub.f32 2.0, %v3279
        %v3281 = vmul.f32 %v3278, %v3280
        %v3282 = vmul.f32 %v3221, %v3281
        %v3283 = vmul.f32 %v3228, %v3281
        %v3284 = vsel %vm3247, %v3234, 0.0
        %v3285 = vsel %vm3247, %v3235, 0.0
        %3286 = vrot.lane.b32.xlu0 %v3284, 115
        %v3287 = vpop.permute.xlu0 %3286
        %3288 = vrot.lane.b32.xlu0 %v3285, 115
        %v3289 = vpop.permute.xlu0 %3288
        %3290 = vrot.lane.b32.xlu0 %v3287, 1
        %v3291 = vpop.permute.xlu0 %3290
        %3292 = vrot.lane.b32.xlu0 %v3289, 1
        %v3293 = vpop.permute.xlu0 %3292
        %v3294 = vadd.f32 %v3287, %v3291
        %v3295 = vadd.f32 %v3289, %v3293
        %3296 = vrot.lane.b32.xlu0 %v3294, 2
        %v3297 = vpop.permute.xlu0 %3296
        %3298 = vrot.lane.b32.xlu0 %v3295, 2
        %v3299 = vpop.permute.xlu0 %3298
        %v3300 = vadd.f32 %v3294, %v3297
        %v3301 = vadd.f32 %v3295, %v3299
        %3302 = vrot.lane.b32.xlu0 %v3300, 4
        %v3303 = vpop.permute.xlu0 %3302
        %3304 = vrot.lane.b32.xlu0 %v3301, 4
        %v3305 = vpop.permute.xlu0 %3304
        %v3306 = vadd.f32 %v3300, %v3303
        %v3307 = vadd.f32 %v3301, %v3305
        %3308 = vrot.lane.b32.xlu0 %v3306, 8
        %v3309 = vpop.permute.xlu0 %3308
        %3310 = vrot.lane.b32.xlu0 %v3307, 8
        %v3311 = vpop.permute.xlu0 %3310
        %v3312 = vadd.f32 %v3306, %v3309
        %v3313 = vadd.f32 %v3307, %v3311
        %v3314 = vrcp.pop %v3313
        %v3315 = vmul.f32 %v3313, %v3314
        %v3316 = vsub.f32 2.0, %v3315
        %v3317 = vmul.f32 %v3314, %v3316
        %v3318 = vmul.f32 %v3235, %v3317
        %v3319 = vmul.f32 %v3242, %v3317
        %v3320 = vperm.slane %v3282, 5
        %v3321 = vmul.f32 %v3276, %v3320
        %v3322 = vmul.f32 %v3277, %v3320
        %v3323 = vsub.f32 %v3220, %v3321
        %v3324 = vsub.f32 %v3221, %v3322
        %v3325 = vsel %vm3243, 1, 0
        %v3326 = vsel %vm3244, 1, 0
        %vm3327 = vcmp.eq.s32.totalorder %v3325, 1
        %vm3328 = vcmp.eq.s32.totalorder %v3326, 1
        %v3329 = vsel %vm3327, %v3320, %v3323
        %v3330 = vsel %vm3328, %v3320, %v3324
        %v3331 = vperm.slane %v3283, 5
        %v3332 = vmul.f32 %v3276, %v3331
        %v3333 = vmul.f32 %v3277, %v3331
        %v3334 = vsub.f32 %v3227, %v3332
        %v3335 = vsub.f32 %v3228, %v3333
        %v3336 = vsel %vm3327, %v3331, %v3334
        %v3337 = vsel %vm3328, %v3331, %v3335
        %v3338 = vperm.slane %v3318, 5
        %v3339 = vmul.f32 %v3312, %v3338
        %v3340 = vmul.f32 %v3313, %v3338
        %v3341 = vsub.f32 %v3234, %v3339
        %v3342 = vsub.f32 %v3235, %v3340
        %v3343 = vsel %vm3327, %v3338, %v3341
        %v3344 = vsel %vm3328, %v3338, %v3342
        %v3345 = vperm.slane %v3319, 5
        %v3346 = vmul.f32 %v3312, %v3345
        %v3347 = vmul.f32 %v3313, %v3345
        %v3348 = vsub.f32 %v3241, %v3346
        %v3349 = vsub.f32 %v3242, %v3347
        %v3350 = vsel %vm3327, %v3345, %v3348
        %v3351 = vsel %vm3328, %v3345, %v3349
        %vm3352 = vcmp.eq.s32.totalorder %v195, 14
        %vm3353 = vcmp.eq.s32.totalorder %v196, 14
        %vm3354 = vcmp.eq.s32.totalorder %v210, 14
        %v3355 = vsel %vm3354, 1, 0
        %vm3356 = vcmp.eq.s32.totalorder %v3355, 1
        %v3357 = vsel %vm3356, %v3329, 0.0
        %v3358 = vsel %vm3356, %v3330, 0.0
        %3359 = vrot.lane.b32.xlu0 %v3357, 114
        %v3360 = vpop.permute.xlu0 %3359
        %3361 = vrot.lane.b32.xlu0 %v3358, 114
        %v3362 = vpop.permute.xlu0 %3361
        %3363 = vrot.lane.b32.xlu0 %v3360, 1
        %v3364 = vpop.permute.xlu0 %3363
        %3365 = vrot.lane.b32.xlu0 %v3362, 1
        %v3366 = vpop.permute.xlu0 %3365
        %v3367 = vadd.f32 %v3360, %v3364
        %v3368 = vadd.f32 %v3362, %v3366
        %3369 = vrot.lane.b32.xlu0 %v3367, 2
        %v3370 = vpop.permute.xlu0 %3369
        %3371 = vrot.lane.b32.xlu0 %v3368, 2
        %v3372 = vpop.permute.xlu0 %3371
        %v3373 = vadd.f32 %v3367, %v3370
        %v3374 = vadd.f32 %v3368, %v3372
        %3375 = vrot.lane.b32.xlu0 %v3373, 4
        %v3376 = vpop.permute.xlu0 %3375
        %3377 = vrot.lane.b32.xlu0 %v3374, 4
        %v3378 = vpop.permute.xlu0 %3377
        %v3379 = vadd.f32 %v3373, %v3376
        %v3380 = vadd.f32 %v3374, %v3378
        %3381 = vrot.lane.b32.xlu0 %v3379, 8
        %v3382 = vpop.permute.xlu0 %3381
        %3383 = vrot.lane.b32.xlu0 %v3380, 8
        %v3384 = vpop.permute.xlu0 %3383
        %v3385 = vadd.f32 %v3379, %v3382
        %v3386 = vadd.f32 %v3380, %v3384
        %v3387 = vrcp.pop %v3386
        %v3388 = vmul.f32 %v3386, %v3387
        %v3389 = vsub.f32 2.0, %v3388
        %v3390 = vmul.f32 %v3387, %v3389
        %v3391 = vmul.f32 %v3330, %v3390
        %v3392 = vmul.f32 %v3337, %v3390
        %v3393 = vsel %vm3356, %v3343, 0.0
        %v3394 = vsel %vm3356, %v3344, 0.0
        %3395 = vrot.lane.b32.xlu0 %v3393, 114
        %v3396 = vpop.permute.xlu0 %3395
        %3397 = vrot.lane.b32.xlu0 %v3394, 114
        %v3398 = vpop.permute.xlu0 %3397
        %3399 = vrot.lane.b32.xlu0 %v3396, 1
        %v3400 = vpop.permute.xlu0 %3399
        %3401 = vrot.lane.b32.xlu0 %v3398, 1
        %v3402 = vpop.permute.xlu0 %3401
        %v3403 = vadd.f32 %v3396, %v3400
        %v3404 = vadd.f32 %v3398, %v3402
        %3405 = vrot.lane.b32.xlu0 %v3403, 2
        %v3406 = vpop.permute.xlu0 %3405
        %3407 = vrot.lane.b32.xlu0 %v3404, 2
        %v3408 = vpop.permute.xlu0 %3407
        %v3409 = vadd.f32 %v3403, %v3406
        %v3410 = vadd.f32 %v3404, %v3408
        %3411 = vrot.lane.b32.xlu0 %v3409, 4
        %v3412 = vpop.permute.xlu0 %3411
        %3413 = vrot.lane.b32.xlu0 %v3410, 4
        %v3414 = vpop.permute.xlu0 %3413
        %v3415 = vadd.f32 %v3409, %v3412
        %v3416 = vadd.f32 %v3410, %v3414
        %3417 = vrot.lane.b32.xlu0 %v3415, 8
        %v3418 = vpop.permute.xlu0 %3417
        %3419 = vrot.lane.b32.xlu0 %v3416, 8
        %v3420 = vpop.permute.xlu0 %3419
        %v3421 = vadd.f32 %v3415, %v3418
        %v3422 = vadd.f32 %v3416, %v3420
        %v3423 = vrcp.pop %v3422
        %v3424 = vmul.f32 %v3422, %v3423
        %v3425 = vsub.f32 2.0, %v3424
        %v3426 = vmul.f32 %v3423, %v3425
        %v3427 = vmul.f32 %v3344, %v3426
        %v3428 = vmul.f32 %v3351, %v3426
        %v3429 = vperm.slane %v3391, 6
        %v3430 = vmul.f32 %v3385, %v3429
        %v3431 = vmul.f32 %v3386, %v3429
        %v3432 = vsub.f32 %v3329, %v3430
        %v3433 = vsub.f32 %v3330, %v3431
        %v3434 = vsel %vm3352, 1, 0
        %v3435 = vsel %vm3353, 1, 0
        %vm3436 = vcmp.eq.s32.totalorder %v3434, 1
        %vm3437 = vcmp.eq.s32.totalorder %v3435, 1
        %v3438 = vsel %vm3436, %v3429, %v3432
        %v3439 = vsel %vm3437, %v3429, %v3433
        %v3440 = vperm.slane %v3392, 6
        %v3441 = vmul.f32 %v3385, %v3440
        %v3442 = vmul.f32 %v3386, %v3440
        %v3443 = vsub.f32 %v3336, %v3441
        %v3444 = vsub.f32 %v3337, %v3442
        %v3445 = vsel %vm3436, %v3440, %v3443
        %v3446 = vsel %vm3437, %v3440, %v3444
        %v3447 = vperm.slane %v3427, 6
        %v3448 = vmul.f32 %v3421, %v3447
        %v3449 = vmul.f32 %v3422, %v3447
        %v3450 = vsub.f32 %v3343, %v3448
        %v3451 = vsub.f32 %v3344, %v3449
        %v3452 = vsel %vm3436, %v3447, %v3450
        %v3453 = vsel %vm3437, %v3447, %v3451
        %v3454 = vperm.slane %v3428, 6
        %v3455 = vmul.f32 %v3421, %v3454
        %v3456 = vmul.f32 %v3422, %v3454
        %v3457 = vsub.f32 %v3350, %v3455
        %v3458 = vsub.f32 %v3351, %v3456
        %v3459 = vsel %vm3436, %v3454, %v3457
        %v3460 = vsel %vm3437, %v3454, %v3458
        %vm3461 = vcmp.eq.s32.totalorder %v195, 15
        %vm3462 = vcmp.eq.s32.totalorder %v196, 15
        %vm3463 = vcmp.eq.s32.totalorder %v210, 15
        %v3464 = vsel %vm3463, 1, 0
        %vm3465 = vcmp.eq.s32.totalorder %v3464, 1
        %v3466 = vsel %vm3465, %v3438, 0.0
        %v3467 = vsel %vm3465, %v3439, 0.0
        %3468 = vrot.lane.b32.xlu0 %v3466, 113
        %v3469 = vpop.permute.xlu0 %3468
        %3470 = vrot.lane.b32.xlu0 %v3467, 113
        %v3471 = vpop.permute.xlu0 %3470
        %3472 = vrot.lane.b32.xlu0 %v3469, 1
        %v3473 = vpop.permute.xlu0 %3472
        %3474 = vrot.lane.b32.xlu0 %v3471, 1
        %v3475 = vpop.permute.xlu0 %3474
        %v3476 = vadd.f32 %v3469, %v3473
        %v3477 = vadd.f32 %v3471, %v3475
        %3478 = vrot.lane.b32.xlu0 %v3476, 2
        %v3479 = vpop.permute.xlu0 %3478
        %3480 = vrot.lane.b32.xlu0 %v3477, 2
        %v3481 = vpop.permute.xlu0 %3480
        %v3482 = vadd.f32 %v3476, %v3479
        %v3483 = vadd.f32 %v3477, %v3481
        %3484 = vrot.lane.b32.xlu0 %v3482, 4
        %v3485 = vpop.permute.xlu0 %3484
        %3486 = vrot.lane.b32.xlu0 %v3483, 4
        %v3487 = vpop.permute.xlu0 %3486
        %v3488 = vadd.f32 %v3482, %v3485
        %v3489 = vadd.f32 %v3483, %v3487
        %3490 = vrot.lane.b32.xlu0 %v3488, 8
        %v3491 = vpop.permute.xlu0 %3490
        %3492 = vrot.lane.b32.xlu0 %v3489, 8
        %v3493 = vpop.permute.xlu0 %3492
        %v3494 = vadd.f32 %v3488, %v3491
        %v3495 = vadd.f32 %v3489, %v3493
        %v3496 = vrcp.pop %v3495
        %v3497 = vmul.f32 %v3495, %v3496
        %v3498 = vsub.f32 2.0, %v3497
        %v3499 = vmul.f32 %v3496, %v3498
        %v3500 = vmul.f32 %v3446, %v3499
        %v3501 = vsel %vm3465, %v3452, 0.0
        %v3502 = vsel %vm3465, %v3453, 0.0
        %3503 = vrot.lane.b32.xlu0 %v3501, 113
        %v3504 = vpop.permute.xlu0 %3503
        %3505 = vrot.lane.b32.xlu0 %v3502, 113
        %v3506 = vpop.permute.xlu0 %3505
        %3507 = vrot.lane.b32.xlu0 %v3504, 1
        %v3508 = vpop.permute.xlu0 %3507
        %3509 = vrot.lane.b32.xlu0 %v3506, 1
        %v3510 = vpop.permute.xlu0 %3509
        %v3511 = vadd.f32 %v3504, %v3508
        %v3512 = vadd.f32 %v3506, %v3510
        %3513 = vrot.lane.b32.xlu0 %v3511, 2
        %v3514 = vpop.permute.xlu0 %3513
        %3515 = vrot.lane.b32.xlu0 %v3512, 2
        %v3516 = vpop.permute.xlu0 %3515
        %v3517 = vadd.f32 %v3511, %v3514
        %v3518 = vadd.f32 %v3512, %v3516
        %3519 = vrot.lane.b32.xlu0 %v3517, 4
        %v3520 = vpop.permute.xlu0 %3519
        %3521 = vrot.lane.b32.xlu0 %v3518, 4
        %v3522 = vpop.permute.xlu0 %3521
        %v3523 = vadd.f32 %v3517, %v3520
        %v3524 = vadd.f32 %v3518, %v3522
        %3525 = vrot.lane.b32.xlu0 %v3523, 8
        %v3526 = vpop.permute.xlu0 %3525
        %3527 = vrot.lane.b32.xlu0 %v3524, 8
        %v3528 = vpop.permute.xlu0 %3527
        %v3529 = vadd.f32 %v3523, %v3526
        %v3530 = vadd.f32 %v3524, %v3528
        %v3531 = vrcp.pop %v3530
        %v3532 = vmul.f32 %v3530, %v3531
        %v3533 = vsub.f32 2.0, %v3532
        %v3534 = vmul.f32 %v3531, %v3533
        %v3535 = vmul.f32 %v3460, %v3534
        %v3536 = vperm.slane %v3500, 7
        %v3537 = vmul.f32 %v3494, %v3536
        %v3538 = vmul.f32 %v3495, %v3536
        %v3539 = vsub.f32 %v3445, %v3537
        %v3540 = vsub.f32 %v3446, %v3538
        %v3541 = vsel %vm3461, 1, 0
        %v3542 = vsel %vm3462, 1, 0
        %vm3543 = vcmp.eq.s32.totalorder %v3541, 1
        %vm3544 = vcmp.eq.s32.totalorder %v3542, 1
        %v3545 = vsel %vm3543, %v3536, %v3539
        %v3546 = vsel %vm3544, %v3536, %v3540
        %v3547 = vperm.slane %v3535, 7
        %v3548 = vmul.f32 %v3529, %v3547
        %v3549 = vmul.f32 %v3530, %v3547
        %v3550 = vsub.f32 %v3459, %v3548
        %v3551 = vsub.f32 %v3460, %v3549
        %v3552 = vsel %vm3543, %v3547, %v3550
        %v3553 = vsel %vm3544, %v3547, %v3551
        %3554 = vst [vmem:[%s188] sm:$0xff] %v3545
        %3555 = vst [vmem:[%s188 + $0x8] sm:$0xff] %v3546
        %s3556 = scalar_lea.vmem %s188, 16
        %3557 = vst [vmem:[%s3556] sm:$0xff] %v3552
        %3558 = vst [vmem:[%s3556 + $0x8] sm:$0xff] %v3553
        %s3559 = smul.u32 2, %s15
        %p3560 = scmp.lt.s32.totalorder %s3559, 3
        %s3561 = scalar_select %p3560, %s3559, 3
        %s3562 = smul.addr %s3561, 2
        %s3563 = smul.addr %s3562, 8
        %s3564 = scalar_lea.vmem %s3, %s3563
        // Predicated region
        $region37: #{inverse_cov_from_positions.1} parent=31 // pred_check
          %p3565 = pneg %p101
        $region38: #{inverse_cov_from_positions.1} parent=31 // pred_check_branch
          %3567 = sbr.rel (%p3565) target = $region40
        $region39: #{inverse_cov_from_positions.1} parent=31 // pred_region
          %s3568 = smul.u32 2, %s15
        $region40: #{inverse_cov_from_positions.1} parent=31 // pred_fallthru
          _
      $region32: #{inverse_cov_from_positions.1} parent=5 // pred_fallthru
        _
      %p3569 = scmp.le.s32.totalorder 2, %s10
      // Predicated region
      $region41: #{inverse_cov_from_positions.1} parent=5 // pred_check
        %p3570 = pneg %p3569
      $region42: #{inverse_cov_from_positions.1} parent=5 // pred_check_branch
        %3572 = sbr.rel (%p3570) target = $region44
      $region43: #{inverse_cov_from_positions.1} parent=5 // pred_region
        %s3573 = ssub.s32 %s10, 2
        // Predicated region
        $region45: #{inverse_cov_from_positions.1} parent=43 // pred_check
          %p3574 = pneg %p107
        $region46: #{inverse_cov_from_positions.1} parent=43 // pred_check_branch
          %3576 = sbr.rel (%p3574) target = $region48
        $region47: #{inverse_cov_from_positions.1} parent=43 // pred_region
          %s3577 = smul.u32 2, %s16
          %p3578 = scmp.lt.s32.totalorder %s3577, 3
          %s3579 = scalar_select %p3578, %s3577, 3
          %s3580 = smul.addr %s3579, 2
          %s3581 = smul.addr %s3580, 8
          %s3582 = scalar_lea.vmem %s3, %s3581
        $region48: #{inverse_cov_from_positions.1} parent=43 // pred_fallthru
          _
      $region44: #{inverse_cov_from_positions.1} parent=5 // pred_fallthru
        _
    $region6: #{inverse_cov_from_positions.1} parent=1 // loop_footer
      %s14 = sadd.s32 1, %s10
    $region7: #{inverse_cov_from_positions.1} parent=1 // loop_footer_branch
      %9 = sbr.rel target = $region3
    $region8: #{inverse_cov_from_positions.1} parent=1 // loop_exit
      _
    %3583 = vsyncpa [#allocation3], 1
    %s3584 = scalar_lea.sflag [#allocation3], 1
    %3585 = vsyncpa %s3584, 1

</llo_original>
